<compile_context>
chip_gen: v6e
topology: v6e:2x2x1
jax: 0.10.0
libtpu: 0.0.40
codegen_flags: <defaults>
</compile_context>

<pallas_src>
import math
from functools import partial

import jax
import jax.numpy as jnp
from jax.experimental import pallas as pl
from jax.experimental.pallas import tpu as pltpu


# ------------------------------ fused kernel -------------------------------

def fused_transformer_block_kernel(*refs, has_conv, num_heads, num_layers, eps):
    if has_conv:
        (x_ref, wconv_ref, gamma_ref, beta_ref,
         wlin_ref, blin_ref, wslab_ref, bslab_ref, o_ref) = refs
    else:
        (x_ref, wlin_ref, blin_ref, wslab_ref, bslab_ref, o_ref) = refs

    B = x_ref.shape[0]                    # batch elements (grid size)
    S = x_ref.shape[2]                    # tokens per batch element (W*H)
    C = wlin_ref.shape[0]
    hd = C // num_heads
    b = pl.program_id(0)                  # batch element handled by this step

    # --- Conv(1x1, no bias) + BatchNorm2d (batch stats) + SiLU ---------------
    # BN statistics span ALL B*S tokens, so the (tiny) conv is recomputed on
    # the full input on every core/step -> no cross-core stat exchange needed.
    if has_conv:
        wc = wconv_ref[...]                                    # (C, c1) bf16
        n_tok = float(B * S)
        s1 = jnp.zeros((C, 1), jnp.float32)
        s2 = jnp.zeros((C, 1), jnp.float32)
        for i in range(B):                                     # static loop
            yi = jnp.dot(wc, x_ref[i].astype(jnp.bfloat16),
                         preferred_element_type=jnp.float32)   # (C, S)
            s1 = s1 + jnp.sum(yi, axis=1, keepdims=True)
            s2 = s2 + jnp.sum(yi * yi, axis=1, keepdims=True)
        mean = s1 / n_tok
        var = jnp.maximum(s2 / n_tok - mean * mean, 0.0)       # biased variance
        inv = jax.lax.rsqrt(var + eps)
        y = jnp.dot(wc, x_ref[b].astype(jnp.bfloat16),
                    preferred_element_type=jnp.float32)        # (C, S) my batch
        y = (y - mean) * inv * gamma_ref[...] + beta_ref[...]
        y = y * jax.nn.sigmoid(y)                              # SiLU
    else:
        y = x_ref[b].astype(jnp.float32)                       # c1 == c2

    # --- p + Linear(p), feature-major: x = y + Wlin @ y + blin ---------------
    x = y + jnp.dot(wlin_ref[...], y.astype(jnp.bfloat16),
                    preferred_element_type=jnp.float32) + blin_ref[...]

    # --- transformer layers (static unroll; tiny per-head temporaries) -------
    for l in range(num_layers):
        wq = wslab_ref[5 * l + 0]         # (C,C) bf16 folded q-path (scaled)
        wk = wslab_ref[5 * l + 1]         # (C,C) folded k-path
        wv = wslab_ref[5 * l + 2]         # (C,C) folded v-path
        wo = wslab_ref[5 * l + 3]         # (C,C) out_proj
        wf = wslab_ref[5 * l + 4]         # (C,C) folded fc2@fc1
        bq = bslab_ref[4 * l + 0]         # (C,1) f32 (scale applied)
        bk = bslab_ref[4 * l + 1]
        bv = bslab_ref[4 * l + 2]
        bo = bslab_ref[4 * l + 3]

        xb = x.astype(jnp.bfloat16)
        q = jnp.dot(wq, xb, preferred_element_type=jnp.float32) + bq   # (C,S)
        k = jnp.dot(wk, xb, preferred_element_type=jnp.float32) + bk
        v = jnp.dot(wv, xb, preferred_element_type=jnp.float32) + bv

        kt = jnp.transpose(k)             # (S, C): ONE transpose per layer

        ctx_heads = []
        for h in range(num_heads):
            cs = slice(h * hd, (h + 1) * hd)        # head = 8-row sublane slice
            kt_h = kt[:, cs].astype(jnp.bfloat16)   # (S, hd)
            q_h = q[cs, :].astype(jnp.bfloat16)     # (hd, S)
            v_h = v[cs, :].astype(jnp.bfloat16)     # (hd, S)
            # scores in [key, query] orientation -> both matmuls native form
            st = jnp.dot(kt_h, q_h, preferred_element_type=jnp.float32)  # (S,S)
            st = st - jnp.max(st, axis=0, keepdims=True)
            p = jnp.exp(st)                                             # f32 exp
            p = p * pl.reciprocal(jnp.sum(p, axis=0, keepdims=True), approx=True)
            ctx_heads.append(jnp.dot(v_h, p.astype(jnp.bfloat16),
                                     preferred_element_type=jnp.float32))  # (hd,S)
        ctx = jnp.concatenate(ctx_heads, axis=0).astype(jnp.bfloat16)      # (C,S)

        x = jnp.dot(wo, ctx, preferred_element_type=jnp.float32) + bo + x  # res 1
        x = jnp.dot(wf, x.astype(jnp.bfloat16),
                    preferred_element_type=jnp.float32) + x                # res 2

    o_ref[...] = x.astype(o_ref.dtype)    # (C, S) block of the (B, C, S) output


# --------------------------------- wrapper ----------------------------------

def transformer_block(x_nchw, params, num_heads):
    B, c1, W_, H_ = x_nchw.shape
    S = W_ * H_
    has_conv = params["conv_w"] is not None
    c2 = params["wlin"].shape[0]
    num_layers = params["wslab"].shape[0] // 5

    x_r = x_nchw.reshape(B, c1, S)        # pure reshape, no transpose

    args = [x_r]
    in_specs = [pl.BlockSpec((B, c1, S), lambda b: (0, 0, 0))]
    if has_conv:
        args += [params["conv_w"], params["gamma"], params["beta"]]
        in_specs += [pl.BlockSpec((c2, c1), lambda b: (0, 0)),
                     pl.BlockSpec((c2, 1), lambda b: (0, 0)),
                     pl.BlockSpec((c2, 1), lambda b: (0, 0))]
    args += [params["wlin"], params["blin"], params["wslab"], params["bslab"]]
    in_specs += [pl.BlockSpec((c2, c2), lambda b: (0, 0)),
                 pl.BlockSpec((c2, 1), lambda b: (0, 0)),
                 pl.BlockSpec((5 * num_layers, c2, c2), lambda b: (0, 0, 0)),
                 pl.BlockSpec((4 * num_layers, c2, 1), lambda b: (0, 0, 0))]

    out = pl.pallas_call(
        partial(fused_transformer_block_kernel,
                has_conv=has_conv, num_heads=num_heads,
                num_layers=num_layers, eps=params["bn_eps"]),
        out_shape=jax.ShapeDtypeStruct((B, c2, S), x_nchw.dtype),
        grid=(B,),
        in_specs=in_specs,
        out_specs=pl.BlockSpec((None, c2, S), lambda b: (b, 0, 0)),
        compiler_params=pltpu.CompilerParams(dimension_semantics=("parallel",)),
    )(*args)

    return out.reshape(B, c2, W_, H_)     # zero output transposes


# --------------------- deterministic params + weight folding ----------------

def init_params(key, c1, c2, num_heads, num_layers, bn_eps=1e-5):
    assert c2 % num_heads == 0
    hd = c2 // num_heads
    scale = 1.0 / math.sqrt(hd)
    ks = jax.random.split(key, 3 + num_layers)

    def dense(k, shape, s=0.1):
        return jax.random.normal(k, shape, jnp.float32) * s

    params = {"bn_eps": bn_eps}
    if c1 != c2:
        k0, k1, k2 = jax.random.split(ks[0], 3)
        params["conv_w"] = dense(k0, (c2, c1)).astype(jnp.bfloat16)  # y = Wc @ x
        params["gamma"] = 1.0 + dense(k1, (c2, 1), 0.2)              # f32
        params["beta"] = dense(k2, (c2, 1), 0.1)                     # f32
    else:
        params["conv_w"] = None
        params["gamma"] = None
        params["beta"] = None

    kl0, kl1 = jax.random.split(ks[1], 2)
    params["wlin"] = dense(kl0, (c2, c2)).astype(jnp.bfloat16)  # PyTorch (out,in)
    params["blin"] = dense(kl1, (c2, 1))                        # f32

    wslab, bslab = [], []
    for li in range(num_layers):
        lk = jax.random.split(ks[2 + li], 9)
        wq_pt = dense(lk[0], (c2, c2))             # PyTorch Linear layout (out,in)
        wk_pt = dense(lk[1], (c2, c2))
        wv_pt = dense(lk[2], (c2, c2))
        in_proj_w = dense(lk[3], (3 * c2, c2))     # MHA in_proj_weight
        in_proj_b = dense(lk[4], (3 * c2,))        # MHA in_proj_bias
        out_w = dense(lk[5], (c2, c2))             # MHA out_proj weight
        out_b = dense(lk[6], (c2,))                # MHA out_proj bias
        fc1_pt = dense(lk[7], (c2, c2))
        fc2_pt = dense(lk[8], (c2, c2))

        # Feature-major (y = W @ x) folding, exact algebra in f32:
        wq_f = (in_proj_w[:c2] @ wq_pt) * scale    # q Linear + in_proj q + scale
        wk_f = in_proj_w[c2:2 * c2] @ wk_pt
        wv_f = in_proj_w[2 * c2:] @ wv_pt
        wo = out_w
        wf = fc2_pt @ fc1_pt                       # fc2(fc1(x)) = (W2 W1) x
        bq = (in_proj_b[:c2] * scale).reshape(c2, 1)
        bk = in_proj_b[c2:2 * c2].reshape(c2, 1)
        bv = in_proj_b[2 * c2:].reshape(c2, 1)
        bo = out_b.reshape(c2, 1)

        wslab += [wq_f, wk_f, wv_f, wo, wf]
        bslab += [bq, bk, bv, bo]

    params["wslab"] = jnp.stack(wslab, axis=0).astype(jnp.bfloat16)  # (5L,C,C)
    params["bslab"] = jnp.stack(bslab, axis=0)                       # (4L,C,1) f32
    return params


# ----------------------------------- main ------------------------------------

if __name__ == "__main__":
    B, c1, c2 = 2, 4, 32
    W_, H_ = 8, 8
    num_heads, num_layers = 4, 2

    key = jax.random.PRNGKey(0)
    kx, kp = jax.random.split(key)
    x = jax.random.normal(kx, (B, c1, W_, H_), jnp.float32)
    params = init_params(kp, c1, c2, num_heads, num_layers)

    out = transformer_block(x, params, num_heads)
    jax.block_until_ready(out)
    assert out.shape == (B, c2, W_, H_), out.shape
    assert bool(jnp.all(jnp.isfinite(out)))
    print("KERNEL_OK")
</pallas_src>

<mosaic_0001>
module attributes {stable_mosaic.version = 11 : i64} {
  func.func @fused_transformer_block_kernel(%arg0: i32, %arg1: memref<2x4x64xf32, #tpu.memory_space<vmem>>, %arg2: memref<32x4xbf16, #tpu.memory_space<vmem>>, %arg3: memref<32x1xf32, #tpu.memory_space<vmem>>, %arg4: memref<32x1xf32, #tpu.memory_space<vmem>>, %arg5: memref<32x32xbf16, #tpu.memory_space<vmem>>, %arg6: memref<32x1xf32, #tpu.memory_space<vmem>>, %arg7: memref<10x32x32xbf16, #tpu.memory_space<vmem>>, %arg8: memref<8x32x1xf32, #tpu.memory_space<vmem>>, %arg9: memref<1x32x64xf32, #tpu.memory_space<vmem>>) attributes {dimension_semantics = [#tpu.dimension_semantics<parallel>], iteration_bounds = array<i64: 2>, scalar_prefetch = 0 : i64, scratch_operands = 0 : i64, tpu.core_type = #tpu.core_type<tc>, window_params = [{pipeline_mode = #tpu.pipeline_mode<synchronous>, transform_indices = @transform_0, window_bounds = array<i64: 2, 4, 64>}, {pipeline_mode = #tpu.pipeline_mode<synchronous>, transform_indices = @transform_1, window_bounds = array<i64: 32, 4>}, {pipeline_mode = #tpu.pipeline_mode<synchronous>, transform_indices = @transform_2, window_bounds = array<i64: 32, 1>}, {pipeline_mode = #tpu.pipeline_mode<synchronous>, transform_indices = @transform_3, window_bounds = array<i64: 32, 1>}, {pipeline_mode = #tpu.pipeline_mode<synchronous>, transform_indices = @transform_4, window_bounds = array<i64: 32, 32>}, {pipeline_mode = #tpu.pipeline_mode<synchronous>, transform_indices = @transform_5, window_bounds = array<i64: 32, 1>}, {pipeline_mode = #tpu.pipeline_mode<synchronous>, transform_indices = @transform_6, window_bounds = array<i64: 10, 32, 32>}, {pipeline_mode = #tpu.pipeline_mode<synchronous>, transform_indices = @transform_7, window_bounds = array<i64: 8, 32, 1>}, {transform_indices = @transform_8, window_bounds = array<i64: 1, 32, 64>}]} {
    %c0 = arith.constant 0 : index
    %c0_0 = arith.constant 0 : index
    %0 = vector.load %arg2[%c0, %c0_0] : memref<32x4xbf16, #tpu.memory_space<vmem>>, vector<32x4xbf16>
    %cst = arith.constant 0.000000e+00 : f32
    %1 = vector.broadcast %cst : f32 to vector<32x1xf32>
    %cst_1 = arith.constant 0.000000e+00 : f32
    %2 = vector.broadcast %cst_1 : f32 to vector<32x1xf32>
    %c0_2 = arith.constant 0 : index
    %c0_3 = arith.constant 0 : index
    %c0_4 = arith.constant 0 : index
    %3 = vector.load %arg1[%c0_2, %c0_3, %c0_4] : memref<2x4x64xf32, #tpu.memory_space<vmem>>, vector<1x4x64xf32>
    %4 = vector.shape_cast %3 : vector<1x4x64xf32> to vector<4x64xf32>
    %5 = arith.truncf %4 : vector<4x64xf32> to vector<4x64xbf16>
    %cst_5 = arith.constant dense<0.000000e+00> : vector<32x64xf32>
    %6 = tpu.matmul %0, %5, %cst_5 {dimension_numbers = #tpu.dot_dimension_numbers<[1], [0], [0], [1], [0, 0, 1, 1], [], []>} : vector<32x4xbf16>, vector<4x64xbf16>, vector<32x64xf32> -> vector<32x64xf32>
    %cst_6 = arith.constant dense<0.000000e+00> : vector<32xf32>
    %7 = vector.multi_reduction <add>, %6, %cst_6 [1] : vector<32x64xf32> to vector<32xf32>
    %8 = vector.shape_cast %7 : vector<32xf32> to vector<32x1xf32>
    %9 = arith.addf %1, %8 : vector<32x1xf32>
    %10 = arith.mulf %6, %6 : vector<32x64xf32>
    %cst_7 = arith.constant dense<0.000000e+00> : vector<32xf32>
    %11 = vector.multi_reduction <add>, %10, %cst_7 [1] : vector<32x64xf32> to vector<32xf32>
    %12 = vector.shape_cast %11 : vector<32xf32> to vector<32x1xf32>
    %13 = arith.addf %2, %12 : vector<32x1xf32>
    %c1 = arith.constant 1 : index
    %c0_8 = arith.constant 0 : index
    %c0_9 = arith.constant 0 : index
    %14 = vector.load %arg1[%c1, %c0_8, %c0_9] : memref<2x4x64xf32, #tpu.memory_space<vmem>>, vector<1x4x64xf32>
    %15 = vector.shape_cast %14 : vector<1x4x64xf32> to vector<4x64xf32>
    %16 = arith.truncf %15 : vector<4x64xf32> to vector<4x64xbf16>
    %cst_10 = arith.constant dense<0.000000e+00> : vector<32x64xf32>
    %17 = tpu.matmul %0, %16, %cst_10 {dimension_numbers = #tpu.dot_dimension_numbers<[1], [0], [0], [1], [0, 0, 1, 1], [], []>} : vector<32x4xbf16>, vector<4x64xbf16>, vector<32x64xf32> -> vector<32x64xf32>
    %cst_11 = arith.constant dense<0.000000e+00> : vector<32xf32>
    %18 = vector.multi_reduction <add>, %17, %cst_11 [1] : vector<32x64xf32> to vector<32xf32>
    %19 = vector.shape_cast %18 : vector<32xf32> to vector<32x1xf32>
    %20 = arith.addf %9, %19 : vector<32x1xf32>
    %21 = arith.mulf %17, %17 : vector<32x64xf32>
    %cst_12 = arith.constant dense<0.000000e+00> : vector<32xf32>
    %22 = vector.multi_reduction <add>, %21, %cst_12 [1] : vector<32x64xf32> to vector<32xf32>
    %23 = vector.shape_cast %22 : vector<32xf32> to vector<32x1xf32>
    %24 = arith.addf %13, %23 : vector<32x1xf32>
    %cst_13 = arith.constant 1.280000e+02 : f32
    %25 = vector.broadcast %cst_13 : f32 to vector<32x1xf32>
    %26 = arith.divf %20, %25 : vector<32x1xf32>
    %cst_14 = arith.constant 1.280000e+02 : f32
    %27 = vector.broadcast %cst_14 : f32 to vector<32x1xf32>
    %28 = arith.divf %24, %27 : vector<32x1xf32>
    %29 = arith.mulf %26, %26 : vector<32x1xf32>
    %30 = arith.subf %28, %29 : vector<32x1xf32>
    %cst_15 = arith.constant 0.000000e+00 : f32
    %31 = vector.broadcast %cst_15 : f32 to vector<32x1xf32>
    %32 = arith.maximumf %30, %31 : vector<32x1xf32>
    %cst_16 = arith.constant 9.99999974E-6 : f32
    %33 = vector.broadcast %cst_16 : f32 to vector<32x1xf32>
    %34 = arith.addf %32, %33 : vector<32x1xf32>
    %35 = math.rsqrt %34 : vector<32x1xf32>
    %36 = arith.index_cast %arg0 : i32 to index
    %c0_17 = arith.constant 0 : index
    %c0_18 = arith.constant 0 : index
    %37 = vector.load %arg1[%36, %c0_17, %c0_18] : memref<2x4x64xf32, #tpu.memory_space<vmem>>, vector<1x4x64xf32>
    %38 = vector.shape_cast %37 : vector<1x4x64xf32> to vector<4x64xf32>
    %39 = arith.truncf %38 : vector<4x64xf32> to vector<4x64xbf16>
    %cst_19 = arith.constant dense<0.000000e+00> : vector<32x64xf32>
    %40 = tpu.matmul %0, %39, %cst_19 {dimension_numbers = #tpu.dot_dimension_numbers<[1], [0], [0], [1], [0, 0, 1, 1], [], []>} : vector<32x4xbf16>, vector<4x64xbf16>, vector<32x64xf32> -> vector<32x64xf32>
    %41 = vector.broadcast %26 : vector<32x1xf32> to vector<32x64xf32>
    %42 = arith.subf %40, %41 : vector<32x64xf32>
    %43 = vector.broadcast %35 : vector<32x1xf32> to vector<32x64xf32>
    %44 = arith.mulf %42, %43 : vector<32x64xf32>
    %c0_20 = arith.constant 0 : index
    %c0_21 = arith.constant 0 : index
    %45 = vector.load %arg3[%c0_20, %c0_21] : memref<32x1xf32, #tpu.memory_space<vmem>>, vector<32x1xf32>
    %46 = vector.broadcast %45 : vector<32x1xf32> to vector<32x64xf32>
    %47 = arith.mulf %44, %46 : vector<32x64xf32>
    %c0_22 = arith.constant 0 : index
    %c0_23 = arith.constant 0 : index
    %48 = vector.load %arg4[%c0_22, %c0_23] : memref<32x1xf32, #tpu.memory_space<vmem>>, vector<32x1xf32>
    %49 = vector.broadcast %48 : vector<32x1xf32> to vector<32x64xf32>
    %50 = arith.addf %47, %49 : vector<32x64xf32>
    %51 = arith.negf %50 : vector<32x64xf32>
    %52 = math.exp %51 : vector<32x64xf32>
    %cst_24 = arith.constant 1.000000e+00 : f32
    %53 = vector.broadcast %cst_24 : f32 to vector<32x64xf32>
    %54 = arith.addf %53, %52 : vector<32x64xf32>
    %55 = arith.divf %53, %54 : vector<32x64xf32>
    %56 = arith.mulf %50, %55 : vector<32x64xf32>
    %c0_25 = arith.constant 0 : index
    %c0_26 = arith.constant 0 : index
    %57 = vector.load %arg5[%c0_25, %c0_26] : memref<32x32xbf16, #tpu.memory_space<vmem>>, vector<32x32xbf16>
    %58 = arith.truncf %56 : vector<32x64xf32> to vector<32x64xbf16>
    %cst_27 = arith.constant dense<0.000000e+00> : vector<32x64xf32>
    %59 = tpu.matmul %57, %58, %cst_27 {dimension_numbers = #tpu.dot_dimension_numbers<[1], [0], [0], [1], [0, 0, 1, 1], [], []>} : vector<32x32xbf16>, vector<32x64xbf16>, vector<32x64xf32> -> vector<32x64xf32>
    %60 = arith.addf %56, %59 : vector<32x64xf32>
    %c0_28 = arith.constant 0 : index
    %c0_29 = arith.constant 0 : index
    %61 = vector.load %arg6[%c0_28, %c0_29] : memref<32x1xf32, #tpu.memory_space<vmem>>, vector<32x1xf32>
    %62 = vector.broadcast %61 : vector<32x1xf32> to vector<32x64xf32>
    %63 = arith.addf %60, %62 : vector<32x64xf32>
    %c0_30 = arith.constant 0 : index
    %c0_31 = arith.constant 0 : index
    %c0_32 = arith.constant 0 : index
    %64 = vector.load %arg7[%c0_30, %c0_31, %c0_32] : memref<10x32x32xbf16, #tpu.memory_space<vmem>>, vector<1x32x32xbf16>
    %65 = vector.shape_cast %64 : vector<1x32x32xbf16> to vector<32x32xbf16>
    %c1_33 = arith.constant 1 : index
    %c0_34 = arith.constant 0 : index
    %c0_35 = arith.constant 0 : index
    %66 = vector.load %arg7[%c1_33, %c0_34, %c0_35] : memref<10x32x32xbf16, #tpu.memory_space<vmem>>, vector<1x32x32xbf16>
    %67 = vector.shape_cast %66 : vector<1x32x32xbf16> to vector<32x32xbf16>
    %c2 = arith.constant 2 : index
    %c0_36 = arith.constant 0 : index
    %c0_37 = arith.constant 0 : index
    %68 = vector.load %arg7[%c2, %c0_36, %c0_37] : memref<10x32x32xbf16, #tpu.memory_space<vmem>>, vector<1x32x32xbf16>
    %69 = vector.shape_cast %68 : vector<1x32x32xbf16> to vector<32x32xbf16>
    %c3 = arith.constant 3 : index
    %c0_38 = arith.constant 0 : index
    %c0_39 = arith.constant 0 : index
    %70 = vector.load %arg7[%c3, %c0_38, %c0_39] : memref<10x32x32xbf16, #tpu.memory_space<vmem>>, vector<1x32x32xbf16>
    %71 = vector.shape_cast %70 : vector<1x32x32xbf16> to vector<32x32xbf16>
    %c4 = arith.constant 4 : index
    %c0_40 = arith.constant 0 : index
    %c0_41 = arith.constant 0 : index
    %72 = vector.load %arg7[%c4, %c0_40, %c0_41] : memref<10x32x32xbf16, #tpu.memory_space<vmem>>, vector<1x32x32xbf16>
    %73 = vector.shape_cast %72 : vector<1x32x32xbf16> to vector<32x32xbf16>
    %c0_42 = arith.constant 0 : index
    %c0_43 = arith.constant 0 : index
    %c0_44 = arith.constant 0 : index
    %74 = vector.load %arg8[%c0_42, %c0_43, %c0_44] : memref<8x32x1xf32, #tpu.memory_space<vmem>>, vector<1x32x1xf32>
    %75 = vector.shape_cast %74 : vector<1x32x1xf32> to vector<32x1xf32>
    %c1_45 = arith.constant 1 : index
    %c0_46 = arith.constant 0 : index
    %c0_47 = arith.constant 0 : index
    %76 = vector.load %arg8[%c1_45, %c0_46, %c0_47] : memref<8x32x1xf32, #tpu.memory_space<vmem>>, vector<1x32x1xf32>
    %77 = vector.shape_cast %76 : vector<1x32x1xf32> to vector<32x1xf32>
    %c2_48 = arith.constant 2 : index
    %c0_49 = arith.constant 0 : index
    %c0_50 = arith.constant 0 : index
    %78 = vector.load %arg8[%c2_48, %c0_49, %c0_50] : memref<8x32x1xf32, #tpu.memory_space<vmem>>, vector<1x32x1xf32>
    %79 = vector.shape_cast %78 : vector<1x32x1xf32> to vector<32x1xf32>
    %c3_51 = arith.constant 3 : index
    %c0_52 = arith.constant 0 : index
    %c0_53 = arith.constant 0 : index
    %80 = vector.load %arg8[%c3_51, %c0_52, %c0_53] : memref<8x32x1xf32, #tpu.memory_space<vmem>>, vector<1x32x1xf32>
    %81 = vector.shape_cast %80 : vector<1x32x1xf32> to vector<32x1xf32>
    %82 = arith.truncf %63 : vector<32x64xf32> to vector<32x64xbf16>
    %cst_54 = arith.constant dense<0.000000e+00> : vector<32x64xf32>
    %83 = tpu.matmul %65, %82, %cst_54 {dimension_numbers = #tpu.dot_dimension_numbers<[1], [0], [0], [1], [0, 0, 1, 1], [], []>} : vector<32x32xbf16>, vector<32x64xbf16>, vector<32x64xf32> -> vector<32x64xf32>
    %84 = vector.broadcast %75 : vector<32x1xf32> to vector<32x64xf32>
    %85 = arith.addf %83, %84 : vector<32x64xf32>
    %cst_55 = arith.constant dense<0.000000e+00> : vector<32x64xf32>
    %86 = tpu.matmul %67, %82, %cst_55 {dimension_numbers = #tpu.dot_dimension_numbers<[1], [0], [0], [1], [0, 0, 1, 1], [], []>} : vector<32x32xbf16>, vector<32x64xbf16>, vector<32x64xf32> -> vector<32x64xf32>
    %87 = vector.broadcast %77 : vector<32x1xf32> to vector<32x64xf32>
    %88 = arith.addf %86, %87 : vector<32x64xf32>
    %cst_56 = arith.constant dense<0.000000e+00> : vector<32x64xf32>
    %89 = tpu.matmul %69, %82, %cst_56 {dimension_numbers = #tpu.dot_dimension_numbers<[1], [0], [0], [1], [0, 0, 1, 1], [], []>} : vector<32x32xbf16>, vector<32x64xbf16>, vector<32x64xf32> -> vector<32x64xf32>
    %90 = vector.broadcast %79 : vector<32x1xf32> to vector<32x64xf32>
    %91 = arith.addf %89, %90 : vector<32x64xf32>
    %92 = tpu.transpose %88, [1, 0] : vector<32x64xf32> -> vector<64x32xf32>
    %93 = vector.extract_strided_slice %92 {offsets = [0, 0], sizes = [64, 8], strides = [1, 1]} : vector<64x32xf32> to vector<64x8xf32>
    %94 = arith.truncf %93 : vector<64x8xf32> to vector<64x8xbf16>
    %95 = vector.extract_strided_slice %85 {offsets = [0, 0], sizes = [8, 64], strides = [1, 1]} : vector<32x64xf32> to vector<8x64xf32>
    %96 = arith.truncf %95 : vector<8x64xf32> to vector<8x64xbf16>
    %97 = vector.extract_strided_slice %91 {offsets = [0, 0], sizes = [8, 64], strides = [1, 1]} : vector<32x64xf32> to vector<8x64xf32>
    %98 = arith.truncf %97 : vector<8x64xf32> to vector<8x64xbf16>
    %cst_57 = arith.constant dense<0.000000e+00> : vector<64x64xf32>
    %99 = tpu.matmul %94, %96, %cst_57 {dimension_numbers = #tpu.dot_dimension_numbers<[1], [0], [0], [1], [0, 0, 1, 1], [], []>} : vector<64x8xbf16>, vector<8x64xbf16>, vector<64x64xf32> -> vector<64x64xf32>
    %cst_58 = arith.constant dense<0xFF800000> : vector<64xf32>
    %100 = vector.multi_reduction <maximumf>, %99, %cst_58 [0] : vector<64x64xf32> to vector<64xf32>
    %101 = vector.shape_cast %100 : vector<64xf32> to vector<1x64xf32>
    %102 = vector.broadcast %101 : vector<1x64xf32> to vector<64x64xf32>
    %103 = arith.subf %99, %102 : vector<64x64xf32>
    %104 = math.exp %103 : vector<64x64xf32>
    %cst_59 = arith.constant dense<0.000000e+00> : vector<64xf32>
    %105 = vector.multi_reduction <add>, %104, %cst_59 [0] : vector<64x64xf32> to vector<64xf32>
    %106 = vector.shape_cast %105 : vector<64xf32> to vector<1x64xf32>
    %107 = tpu.reciprocal %106 {approx = true} : vector<1x64xf32> -> vector<1x64xf32>
    %108 = vector.broadcast %107 : vector<1x64xf32> to vector<64x64xf32>
    %109 = arith.mulf %104, %108 : vector<64x64xf32>
    %110 = arith.truncf %109 : vector<64x64xf32> to vector<64x64xbf16>
    %cst_60 = arith.constant dense<0.000000e+00> : vector<8x64xf32>
    %111 = tpu.matmul %98, %110, %cst_60 {dimension_numbers = #tpu.dot_dimension_numbers<[1], [0], [0], [1], [0, 0, 1, 1], [], []>} : vector<8x64xbf16>, vector<64x64xbf16>, vector<8x64xf32> -> vector<8x64xf32>
    %112 = vector.extract_strided_slice %92 {offsets = [0, 8], sizes = [64, 8], strides = [1, 1]} : vector<64x32xf32> to vector<64x8xf32>
    %113 = arith.truncf %112 : vector<64x8xf32> to vector<64x8xbf16>
    %114 = vector.extract_strided_slice %85 {offsets = [8, 0], sizes = [8, 64], strides = [1, 1]} : vector<32x64xf32> to vector<8x64xf32>
    %115 = arith.truncf %114 : vector<8x64xf32> to vector<8x64xbf16>
    %116 = vector.extract_strided_slice %91 {offsets = [8, 0], sizes = [8, 64], strides = [1, 1]} : vector<32x64xf32> to vector<8x64xf32>
    %117 = arith.truncf %116 : vector<8x64xf32> to vector<8x64xbf16>
    %cst_61 = arith.constant dense<0.000000e+00> : vector<64x64xf32>
    %118 = tpu.matmul %113, %115, %cst_61 {dimension_numbers = #tpu.dot_dimension_numbers<[1], [0], [0], [1], [0, 0, 1, 1], [], []>} : vector<64x8xbf16>, vector<8x64xbf16>, vector<64x64xf32> -> vector<64x64xf32>
    %cst_62 = arith.constant dense<0xFF800000> : vector<64xf32>
    %119 = vector.multi_reduction <maximumf>, %118, %cst_62 [0] : vector<64x64xf32> to vector<64xf32>
    %120 = vector.shape_cast %119 : vector<64xf32> to vector<1x64xf32>
    %121 = vector.broadcast %120 : vector<1x64xf32> to vector<64x64xf32>
    %122 = arith.subf %118, %121 : vector<64x64xf32>
    %123 = math.exp %122 : vector<64x64xf32>
    %cst_63 = arith.constant dense<0.000000e+00> : vector<64xf32>
    %124 = vector.multi_reduction <add>, %123, %cst_63 [0] : vector<64x64xf32> to vector<64xf32>
    %125 = vector.shape_cast %124 : vector<64xf32> to vector<1x64xf32>
    %126 = tpu.reciprocal %125 {approx = true} : vector<1x64xf32> -> vector<1x64xf32>
    %127 = vector.broadcast %126 : vector<1x64xf32> to vector<64x64xf32>
    %128 = arith.mulf %123, %127 : vector<64x64xf32>
    %129 = arith.truncf %128 : vector<64x64xf32> to vector<64x64xbf16>
    %cst_64 = arith.constant dense<0.000000e+00> : vector<8x64xf32>
    %130 = tpu.matmul %117, %129, %cst_64 {dimension_numbers = #tpu.dot_dimension_numbers<[1], [0], [0], [1], [0, 0, 1, 1], [], []>} : vector<8x64xbf16>, vector<64x64xbf16>, vector<8x64xf32> -> vector<8x64xf32>
    %131 = vector.extract_strided_slice %92 {offsets = [0, 16], sizes = [64, 8], strides = [1, 1]} : vector<64x32xf32> to vector<64x8xf32>
    %132 = arith.truncf %131 : vector<64x8xf32> to vector<64x8xbf16>
    %133 = vector.extract_strided_slice %85 {offsets = [16, 0], sizes = [8, 64], strides = [1, 1]} : vector<32x64xf32> to vector<8x64xf32>
    %134 = arith.truncf %133 : vector<8x64xf32> to vector<8x64xbf16>
    %135 = vector.extract_strided_slice %91 {offsets = [16, 0], sizes = [8, 64], strides = [1, 1]} : vector<32x64xf32> to vector<8x64xf32>
    %136 = arith.truncf %135 : vector<8x64xf32> to vector<8x64xbf16>
    %cst_65 = arith.constant dense<0.000000e+00> : vector<64x64xf32>
    %137 = tpu.matmul %132, %134, %cst_65 {dimension_numbers = #tpu.dot_dimension_numbers<[1], [0], [0], [1], [0, 0, 1, 1], [], []>} : vector<64x8xbf16>, vector<8x64xbf16>, vector<64x64xf32> -> vector<64x64xf32>
    %cst_66 = arith.constant dense<0xFF800000> : vector<64xf32>
    %138 = vector.multi_reduction <maximumf>, %137, %cst_66 [0] : vector<64x64xf32> to vector<64xf32>
    %139 = vector.shape_cast %138 : vector<64xf32> to vector<1x64xf32>
    %140 = vector.broadcast %139 : vector<1x64xf32> to vector<64x64xf32>
    %141 = arith.subf %137, %140 : vector<64x64xf32>
    %142 = math.exp %141 : vector<64x64xf32>
    %cst_67 = arith.constant dense<0.000000e+00> : vector<64xf32>
    %143 = vector.multi_reduction <add>, %142, %cst_67 [0] : vector<64x64xf32> to vector<64xf32>
    %144 = vector.shape_cast %143 : vector<64xf32> to vector<1x64xf32>
    %145 = tpu.reciprocal %144 {approx = true} : vector<1x64xf32> -> vector<1x64xf32>
    %146 = vector.broadcast %145 : vector<1x64xf32> to vector<64x64xf32>
    %147 = arith.mulf %142, %146 : vector<64x64xf32>
    %148 = arith.truncf %147 : vector<64x64xf32> to vector<64x64xbf16>
    %cst_68 = arith.constant dense<0.000000e+00> : vector<8x64xf32>
    %149 = tpu.matmul %136, %148, %cst_68 {dimension_numbers = #tpu.dot_dimension_numbers<[1], [0], [0], [1], [0, 0, 1, 1], [], []>} : vector<8x64xbf16>, vector<64x64xbf16>, vector<8x64xf32> -> vector<8x64xf32>
    %150 = vector.extract_strided_slice %92 {offsets = [0, 24], sizes = [64, 8], strides = [1, 1]} : vector<64x32xf32> to vector<64x8xf32>
    %151 = arith.truncf %150 : vector<64x8xf32> to vector<64x8xbf16>
    %152 = vector.extract_strided_slice %85 {offsets = [24, 0], sizes = [8, 64], strides = [1, 1]} : vector<32x64xf32> to vector<8x64xf32>
    %153 = arith.truncf %152 : vector<8x64xf32> to vector<8x64xbf16>
    %154 = vector.extract_strided_slice %91 {offsets = [24, 0], sizes = [8, 64], strides = [1, 1]} : vector<32x64xf32> to vector<8x64xf32>
    %155 = arith.truncf %154 : vector<8x64xf32> to vector<8x64xbf16>
    %cst_69 = arith.constant dense<0.000000e+00> : vector<64x64xf32>
    %156 = tpu.matmul %151, %153, %cst_69 {dimension_numbers = #tpu.dot_dimension_numbers<[1], [0], [0], [1], [0, 0, 1, 1], [], []>} : vector<64x8xbf16>, vector<8x64xbf16>, vector<64x64xf32> -> vector<64x64xf32>
    %cst_70 = arith.constant dense<0xFF800000> : vector<64xf32>
    %157 = vector.multi_reduction <maximumf>, %156, %cst_70 [0] : vector<64x64xf32> to vector<64xf32>
    %158 = vector.shape_cast %157 : vector<64xf32> to vector<1x64xf32>
    %159 = vector.broadcast %158 : vector<1x64xf32> to vector<64x64xf32>
    %160 = arith.subf %156, %159 : vector<64x64xf32>
    %161 = math.exp %160 : vector<64x64xf32>
    %cst_71 = arith.constant dense<0.000000e+00> : vector<64xf32>
    %162 = vector.multi_reduction <add>, %161, %cst_71 [0] : vector<64x64xf32> to vector<64xf32>
    %163 = vector.shape_cast %162 : vector<64xf32> to vector<1x64xf32>
    %164 = tpu.reciprocal %163 {approx = true} : vector<1x64xf32> -> vector<1x64xf32>
    %165 = vector.broadcast %164 : vector<1x64xf32> to vector<64x64xf32>
    %166 = arith.mulf %161, %165 : vector<64x64xf32>
    %167 = arith.truncf %166 : vector<64x64xf32> to vector<64x64xbf16>
    %cst_72 = arith.constant dense<0.000000e+00> : vector<8x64xf32>
    %168 = tpu.matmul %155, %167, %cst_72 {dimension_numbers = #tpu.dot_dimension_numbers<[1], [0], [0], [1], [0, 0, 1, 1], [], []>} : vector<8x64xbf16>, vector<64x64xbf16>, vector<8x64xf32> -> vector<8x64xf32>
    %169 = tpu.concatenate %111, %130, %149, %168 in 0 : vector<8x64xf32>, vector<8x64xf32>, vector<8x64xf32>, vector<8x64xf32> -> vector<32x64xf32>
    %170 = arith.truncf %169 : vector<32x64xf32> to vector<32x64xbf16>
    %cst_73 = arith.constant dense<0.000000e+00> : vector<32x64xf32>
    %171 = tpu.matmul %71, %170, %cst_73 {dimension_numbers = #tpu.dot_dimension_numbers<[1], [0], [0], [1], [0, 0, 1, 1], [], []>} : vector<32x32xbf16>, vector<32x64xbf16>, vector<32x64xf32> -> vector<32x64xf32>
    %172 = vector.broadcast %81 : vector<32x1xf32> to vector<32x64xf32>
    %173 = arith.addf %171, %172 : vector<32x64xf32>
    %174 = arith.addf %173, %63 : vector<32x64xf32>
    %175 = arith.truncf %174 : vector<32x64xf32> to vector<32x64xbf16>
    %cst_74 = arith.constant dense<0.000000e+00> : vector<32x64xf32>
    %176 = tpu.matmul %73, %175, %cst_74 {dimension_numbers = #tpu.dot_dimension_numbers<[1], [0], [0], [1], [0, 0, 1, 1], [], []>} : vector<32x32xbf16>, vector<32x64xbf16>, vector<32x64xf32> -> vector<32x64xf32>
    %177 = arith.addf %176, %174 : vector<32x64xf32>
    %c5 = arith.constant 5 : index
    %c0_75 = arith.constant 0 : index
    %c0_76 = arith.constant 0 : index
    %178 = vector.load %arg7[%c5, %c0_75, %c0_76] : memref<10x32x32xbf16, #tpu.memory_space<vmem>>, vector<1x32x32xbf16>
    %179 = vector.shape_cast %178 : vector<1x32x32xbf16> to vector<32x32xbf16>
    %c6 = arith.constant 6 : index
    %c0_77 = arith.constant 0 : index
    %c0_78 = arith.constant 0 : index
    %180 = vector.load %arg7[%c6, %c0_77, %c0_78] : memref<10x32x32xbf16, #tpu.memory_space<vmem>>, vector<1x32x32xbf16>
    %181 = vector.shape_cast %180 : vector<1x32x32xbf16> to vector<32x32xbf16>
    %c7 = arith.constant 7 : index
    %c0_79 = arith.constant 0 : index
    %c0_80 = arith.constant 0 : index
    %182 = vector.load %arg7[%c7, %c0_79, %c0_80] : memref<10x32x32xbf16, #tpu.memory_space<vmem>>, vector<1x32x32xbf16>
    %183 = vector.shape_cast %182 : vector<1x32x32xbf16> to vector<32x32xbf16>
    %c8 = arith.constant 8 : index
    %c0_81 = arith.constant 0 : index
    %c0_82 = arith.constant 0 : index
    %184 = vector.load %arg7[%c8, %c0_81, %c0_82] : memref<10x32x32xbf16, #tpu.memory_space<vmem>>, vector<1x32x32xbf16>
    %185 = vector.shape_cast %184 : vector<1x32x32xbf16> to vector<32x32xbf16>
    %c9 = arith.constant 9 : index
    %c0_83 = arith.constant 0 : index
    %c0_84 = arith.constant 0 : index
    %186 = vector.load %arg7[%c9, %c0_83, %c0_84] : memref<10x32x32xbf16, #tpu.memory_space<vmem>>, vector<1x32x32xbf16>
    %187 = vector.shape_cast %186 : vector<1x32x32xbf16> to vector<32x32xbf16>
    %c4_85 = arith.constant 4 : index
    %c0_86 = arith.constant 0 : index
    %c0_87 = arith.constant 0 : index
    %188 = vector.load %arg8[%c4_85, %c0_86, %c0_87] : memref<8x32x1xf32, #tpu.memory_space<vmem>>, vector<1x32x1xf32>
    %189 = vector.shape_cast %188 : vector<1x32x1xf32> to vector<32x1xf32>
    %c5_88 = arith.constant 5 : index
    %c0_89 = arith.constant 0 : index
    %c0_90 = arith.constant 0 : index
    %190 = vector.load %arg8[%c5_88, %c0_89, %c0_90] : memref<8x32x1xf32, #tpu.memory_space<vmem>>, vector<1x32x1xf32>
    %191 = vector.shape_cast %190 : vector<1x32x1xf32> to vector<32x1xf32>
    %c6_91 = arith.constant 6 : index
    %c0_92 = arith.constant 0 : index
    %c0_93 = arith.constant 0 : index
    %192 = vector.load %arg8[%c6_91, %c0_92, %c0_93] : memref<8x32x1xf32, #tpu.memory_space<vmem>>, vector<1x32x1xf32>
    %193 = vector.shape_cast %192 : vector<1x32x1xf32> to vector<32x1xf32>
    %c7_94 = arith.constant 7 : index
    %c0_95 = arith.constant 0 : index
    %c0_96 = arith.constant 0 : index
    %194 = vector.load %arg8[%c7_94, %c0_95, %c0_96] : memref<8x32x1xf32, #tpu.memory_space<vmem>>, vector<1x32x1xf32>
    %195 = vector.shape_cast %194 : vector<1x32x1xf32> to vector<32x1xf32>
    %196 = arith.truncf %177 : vector<32x64xf32> to vector<32x64xbf16>
    %cst_97 = arith.constant dense<0.000000e+00> : vector<32x64xf32>
    %197 = tpu.matmul %179, %196, %cst_97 {dimension_numbers = #tpu.dot_dimension_numbers<[1], [0], [0], [1], [0, 0, 1, 1], [], []>} : vector<32x32xbf16>, vector<32x64xbf16>, vector<32x64xf32> -> vector<32x64xf32>
    %198 = vector.broadcast %189 : vector<32x1xf32> to vector<32x64xf32>
    %199 = arith.addf %197, %198 : vector<32x64xf32>
    %cst_98 = arith.constant dense<0.000000e+00> : vector<32x64xf32>
    %200 = tpu.matmul %181, %196, %cst_98 {dimension_numbers = #tpu.dot_dimension_numbers<[1], [0], [0], [1], [0, 0, 1, 1], [], []>} : vector<32x32xbf16>, vector<32x64xbf16>, vector<32x64xf32> -> vector<32x64xf32>
    %201 = vector.broadcast %191 : vector<32x1xf32> to vector<32x64xf32>
    %202 = arith.addf %200, %201 : vector<32x64xf32>
    %cst_99 = arith.constant dense<0.000000e+00> : vector<32x64xf32>
    %203 = tpu.matmul %183, %196, %cst_99 {dimension_numbers = #tpu.dot_dimension_numbers<[1], [0], [0], [1], [0, 0, 1, 1], [], []>} : vector<32x32xbf16>, vector<32x64xbf16>, vector<32x64xf32> -> vector<32x64xf32>
    %204 = vector.broadcast %193 : vector<32x1xf32> to vector<32x64xf32>
    %205 = arith.addf %203, %204 : vector<32x64xf32>
    %206 = tpu.transpose %202, [1, 0] : vector<32x64xf32> -> vector<64x32xf32>
    %207 = vector.extract_strided_slice %206 {offsets = [0, 0], sizes = [64, 8], strides = [1, 1]} : vector<64x32xf32> to vector<64x8xf32>
    %208 = arith.truncf %207 : vector<64x8xf32> to vector<64x8xbf16>
    %209 = vector.extract_strided_slice %199 {offsets = [0, 0], sizes = [8, 64], strides = [1, 1]} : vector<32x64xf32> to vector<8x64xf32>
    %210 = arith.truncf %209 : vector<8x64xf32> to vector<8x64xbf16>
    %211 = vector.extract_strided_slice %205 {offsets = [0, 0], sizes = [8, 64], strides = [1, 1]} : vector<32x64xf32> to vector<8x64xf32>
    %212 = arith.truncf %211 : vector<8x64xf32> to vector<8x64xbf16>
    %cst_100 = arith.constant dense<0.000000e+00> : vector<64x64xf32>
    %213 = tpu.matmul %208, %210, %cst_100 {dimension_numbers = #tpu.dot_dimension_numbers<[1], [0], [0], [1], [0, 0, 1, 1], [], []>} : vector<64x8xbf16>, vector<8x64xbf16>, vector<64x64xf32> -> vector<64x64xf32>
    %cst_101 = arith.constant dense<0xFF800000> : vector<64xf32>
    %214 = vector.multi_reduction <maximumf>, %213, %cst_101 [0] : vector<64x64xf32> to vector<64xf32>
    %215 = vector.shape_cast %214 : vector<64xf32> to vector<1x64xf32>
    %216 = vector.broadcast %215 : vector<1x64xf32> to vector<64x64xf32>
    %217 = arith.subf %213, %216 : vector<64x64xf32>
    %218 = math.exp %217 : vector<64x64xf32>
    %cst_102 = arith.constant dense<0.000000e+00> : vector<64xf32>
    %219 = vector.multi_reduction <add>, %218, %cst_102 [0] : vector<64x64xf32> to vector<64xf32>
    %220 = vector.shape_cast %219 : vector<64xf32> to vector<1x64xf32>
    %221 = tpu.reciprocal %220 {approx = true} : vector<1x64xf32> -> vector<1x64xf32>
    %222 = vector.broadcast %221 : vector<1x64xf32> to vector<64x64xf32>
    %223 = arith.mulf %218, %222 : vector<64x64xf32>
    %224 = arith.truncf %223 : vector<64x64xf32> to vector<64x64xbf16>
    %cst_103 = arith.constant dense<0.000000e+00> : vector<8x64xf32>
    %225 = tpu.matmul %212, %224, %cst_103 {dimension_numbers = #tpu.dot_dimension_numbers<[1], [0], [0], [1], [0, 0, 1, 1], [], []>} : vector<8x64xbf16>, vector<64x64xbf16>, vector<8x64xf32> -> vector<8x64xf32>
    %226 = vector.extract_strided_slice %206 {offsets = [0, 8], sizes = [64, 8], strides = [1, 1]} : vector<64x32xf32> to vector<64x8xf32>
    %227 = arith.truncf %226 : vector<64x8xf32> to vector<64x8xbf16>
    %228 = vector.extract_strided_slice %199 {offsets = [8, 0], sizes = [8, 64], strides = [1, 1]} : vector<32x64xf32> to vector<8x64xf32>
    %229 = arith.truncf %228 : vector<8x64xf32> to vector<8x64xbf16>
    %230 = vector.extract_strided_slice %205 {offsets = [8, 0], sizes = [8, 64], strides = [1, 1]} : vector<32x64xf32> to vector<8x64xf32>
    %231 = arith.truncf %230 : vector<8x64xf32> to vector<8x64xbf16>
    %cst_104 = arith.constant dense<0.000000e+00> : vector<64x64xf32>
    %232 = tpu.matmul %227, %229, %cst_104 {dimension_numbers = #tpu.dot_dimension_numbers<[1], [0], [0], [1], [0, 0, 1, 1], [], []>} : vector<64x8xbf16>, vector<8x64xbf16>, vector<64x64xf32> -> vector<64x64xf32>
    %cst_105 = arith.constant dense<0xFF800000> : vector<64xf32>
    %233 = vector.multi_reduction <maximumf>, %232, %cst_105 [0] : vector<64x64xf32> to vector<64xf32>
    %234 = vector.shape_cast %233 : vector<64xf32> to vector<1x64xf32>
    %235 = vector.broadcast %234 : vector<1x64xf32> to vector<64x64xf32>
    %236 = arith.subf %232, %235 : vector<64x64xf32>
    %237 = math.exp %236 : vector<64x64xf32>
    %cst_106 = arith.constant dense<0.000000e+00> : vector<64xf32>
    %238 = vector.multi_reduction <add>, %237, %cst_106 [0] : vector<64x64xf32> to vector<64xf32>
    %239 = vector.shape_cast %238 : vector<64xf32> to vector<1x64xf32>
    %240 = tpu.reciprocal %239 {approx = true} : vector<1x64xf32> -> vector<1x64xf32>
    %241 = vector.broadcast %240 : vector<1x64xf32> to vector<64x64xf32>
    %242 = arith.mulf %237, %241 : vector<64x64xf32>
    %243 = arith.truncf %242 : vector<64x64xf32> to vector<64x64xbf16>
    %cst_107 = arith.constant dense<0.000000e+00> : vector<8x64xf32>
    %244 = tpu.matmul %231, %243, %cst_107 {dimension_numbers = #tpu.dot_dimension_numbers<[1], [0], [0], [1], [0, 0, 1, 1], [], []>} : vector<8x64xbf16>, vector<64x64xbf16>, vector<8x64xf32> -> vector<8x64xf32>
    %245 = vector.extract_strided_slice %206 {offsets = [0, 16], sizes = [64, 8], strides = [1, 1]} : vector<64x32xf32> to vector<64x8xf32>
    %246 = arith.truncf %245 : vector<64x8xf32> to vector<64x8xbf16>
    %247 = vector.extract_strided_slice %199 {offsets = [16, 0], sizes = [8, 64], strides = [1, 1]} : vector<32x64xf32> to vector<8x64xf32>
    %248 = arith.truncf %247 : vector<8x64xf32> to vector<8x64xbf16>
    %249 = vector.extract_strided_slice %205 {offsets = [16, 0], sizes = [8, 64], strides = [1, 1]} : vector<32x64xf32> to vector<8x64xf32>
    %250 = arith.truncf %249 : vector<8x64xf32> to vector<8x64xbf16>
    %cst_108 = arith.constant dense<0.000000e+00> : vector<64x64xf32>
    %251 = tpu.matmul %246, %248, %cst_108 {dimension_numbers = #tpu.dot_dimension_numbers<[1], [0], [0], [1], [0, 0, 1, 1], [], []>} : vector<64x8xbf16>, vector<8x64xbf16>, vector<64x64xf32> -> vector<64x64xf32>
    %cst_109 = arith.constant dense<0xFF800000> : vector<64xf32>
    %252 = vector.multi_reduction <maximumf>, %251, %cst_109 [0] : vector<64x64xf32> to vector<64xf32>
    %253 = vector.shape_cast %252 : vector<64xf32> to vector<1x64xf32>
    %254 = vector.broadcast %253 : vector<1x64xf32> to vector<64x64xf32>
    %255 = arith.subf %251, %254 : vector<64x64xf32>
    %256 = math.exp %255 : vector<64x64xf32>
    %cst_110 = arith.constant dense<0.000000e+00> : vector<64xf32>
    %257 = vector.multi_reduction <add>, %256, %cst_110 [0] : vector<64x64xf32> to vector<64xf32>
    %258 = vector.shape_cast %257 : vector<64xf32> to vector<1x64xf32>
    %259 = tpu.reciprocal %258 {approx = true} : vector<1x64xf32> -> vector<1x64xf32>
    %260 = vector.broadcast %259 : vector<1x64xf32> to vector<64x64xf32>
    %261 = arith.mulf %256, %260 : vector<64x64xf32>
    %262 = arith.truncf %261 : vector<64x64xf32> to vector<64x64xbf16>
    %cst_111 = arith.constant dense<0.000000e+00> : vector<8x64xf32>
    %263 = tpu.matmul %250, %262, %cst_111 {dimension_numbers = #tpu.dot_dimension_numbers<[1], [0], [0], [1], [0, 0, 1, 1], [], []>} : vector<8x64xbf16>, vector<64x64xbf16>, vector<8x64xf32> -> vector<8x64xf32>
    %264 = vector.extract_strided_slice %206 {offsets = [0, 24], sizes = [64, 8], strides = [1, 1]} : vector<64x32xf32> to vector<64x8xf32>
    %265 = arith.truncf %264 : vector<64x8xf32> to vector<64x8xbf16>
    %266 = vector.extract_strided_slice %199 {offsets = [24, 0], sizes = [8, 64], strides = [1, 1]} : vector<32x64xf32> to vector<8x64xf32>
    %267 = arith.truncf %266 : vector<8x64xf32> to vector<8x64xbf16>
    %268 = vector.extract_strided_slice %205 {offsets = [24, 0], sizes = [8, 64], strides = [1, 1]} : vector<32x64xf32> to vector<8x64xf32>
    %269 = arith.truncf %268 : vector<8x64xf32> to vector<8x64xbf16>
    %cst_112 = arith.constant dense<0.000000e+00> : vector<64x64xf32>
    %270 = tpu.matmul %265, %267, %cst_112 {dimension_numbers = #tpu.dot_dimension_numbers<[1], [0], [0], [1], [0, 0, 1, 1], [], []>} : vector<64x8xbf16>, vector<8x64xbf16>, vector<64x64xf32> -> vector<64x64xf32>
    %cst_113 = arith.constant dense<0xFF800000> : vector<64xf32>
    %271 = vector.multi_reduction <maximumf>, %270, %cst_113 [0] : vector<64x64xf32> to vector<64xf32>
    %272 = vector.shape_cast %271 : vector<64xf32> to vector<1x64xf32>
    %273 = vector.broadcast %272 : vector<1x64xf32> to vector<64x64xf32>
    %274 = arith.subf %270, %273 : vector<64x64xf32>
    %275 = math.exp %274 : vector<64x64xf32>
    %cst_114 = arith.constant dense<0.000000e+00> : vector<64xf32>
    %276 = vector.multi_reduction <add>, %275, %cst_114 [0] : vector<64x64xf32> to vector<64xf32>
    %277 = vector.shape_cast %276 : vector<64xf32> to vector<1x64xf32>
    %278 = tpu.reciprocal %277 {approx = true} : vector<1x64xf32> -> vector<1x64xf32>
    %279 = vector.broadcast %278 : vector<1x64xf32> to vector<64x64xf32>
    %280 = arith.mulf %275, %279 : vector<64x64xf32>
    %281 = arith.truncf %280 : vector<64x64xf32> to vector<64x64xbf16>
    %cst_115 = arith.constant dense<0.000000e+00> : vector<8x64xf32>
    %282 = tpu.matmul %269, %281, %cst_115 {dimension_numbers = #tpu.dot_dimension_numbers<[1], [0], [0], [1], [0, 0, 1, 1], [], []>} : vector<8x64xbf16>, vector<64x64xbf16>, vector<8x64xf32> -> vector<8x64xf32>
    %283 = tpu.concatenate %225, %244, %263, %282 in 0 : vector<8x64xf32>, vector<8x64xf32>, vector<8x64xf32>, vector<8x64xf32> -> vector<32x64xf32>
    %284 = arith.truncf %283 : vector<32x64xf32> to vector<32x64xbf16>
    %cst_116 = arith.constant dense<0.000000e+00> : vector<32x64xf32>
    %285 = tpu.matmul %185, %284, %cst_116 {dimension_numbers = #tpu.dot_dimension_numbers<[1], [0], [0], [1], [0, 0, 1, 1], [], []>} : vector<32x32xbf16>, vector<32x64xbf16>, vector<32x64xf32> -> vector<32x64xf32>
    %286 = vector.broadcast %195 : vector<32x1xf32> to vector<32x64xf32>
    %287 = arith.addf %285, %286 : vector<32x64xf32>
    %288 = arith.addf %287, %177 : vector<32x64xf32>
    %289 = arith.truncf %288 : vector<32x64xf32> to vector<32x64xbf16>
    %cst_117 = arith.constant dense<0.000000e+00> : vector<32x64xf32>
    %290 = tpu.matmul %187, %289, %cst_117 {dimension_numbers = #tpu.dot_dimension_numbers<[1], [0], [0], [1], [0, 0, 1, 1], [], []>} : vector<32x32xbf16>, vector<32x64xbf16>, vector<32x64xf32> -> vector<32x64xf32>
    %291 = arith.addf %290, %288 : vector<32x64xf32>
    %c0_118 = arith.constant 0 : index
    %c0_119 = arith.constant 0 : index
    %c0_120 = arith.constant 0 : index
    %292 = vector.load %arg9[%c0_118, %c0_119, %c0_120] : memref<1x32x64xf32, #tpu.memory_space<vmem>>, vector<1x32x64xf32>
    %293 = vector.shape_cast %292 : vector<1x32x64xf32> to vector<32x64xf32>
    %294 = vector.shape_cast %291 : vector<32x64xf32> to vector<1x32x64xf32>
    tpu.vector_store %arg9[%c0_118, %c0_119, %c0_120], %294 {strides = array<i32>} : memref<1x32x64xf32, #tpu.memory_space<vmem>>, vector<1x32x64xf32>,
    return
  }
  func.func @transform_0(%arg0: i32) -> (i32, i32, i32) {
    %c0_i32 = arith.constant 0 : i32
    %c0_i32_0 = arith.constant 0 : i32
    %c0_i32_1 = arith.constant 0 : i32
    %c0_i32_2 = arith.constant 0 : i32
    return %c0_i32, %c0_i32_0, %c0_i32_1 : i32, i32, i32
  }
  func.func @transform_1(%arg0: i32) -> (i32, i32) {
    %c0_i32 = arith.constant 0 : i32
    %c0_i32_0 = arith.constant 0 : i32
    %c0_i32_1 = arith.constant 0 : i32
    return %c0_i32, %c0_i32_0 : i32, i32
  }
  func.func @transform_2(%arg0: i32) -> (i32, i32) {
    %c0_i32 = arith.constant 0 : i32
    %c0_i32_0 = arith.constant 0 : i32
    %c0_i32_1 = arith.constant 0 : i32
    return %c0_i32, %c0_i32_0 : i32, i32
  }
  func.func @transform_3(%arg0: i32) -> (i32, i32) {
    %c0_i32 = arith.constant 0 : i32
    %c0_i32_0 = arith.constant 0 : i32
    %c0_i32_1 = arith.constant 0 : i32
    return %c0_i32, %c0_i32_0 : i32, i32
  }
  func.func @transform_4(%arg0: i32) -> (i32, i32) {
    %c0_i32 = arith.constant 0 : i32
    %c0_i32_0 = arith.constant 0 : i32
    %c0_i32_1 = arith.constant 0 : i32
    return %c0_i32, %c0_i32_0 : i32, i32
  }
  func.func @transform_5(%arg0: i32) -> (i32, i32) {
    %c0_i32 = arith.constant 0 : i32
    %c0_i32_0 = arith.constant 0 : i32
    %c0_i32_1 = arith.constant 0 : i32
    return %c0_i32, %c0_i32_0 : i32, i32
  }
  func.func @transform_6(%arg0: i32) -> (i32, i32, i32) {
    %c0_i32 = arith.constant 0 : i32
    %c0_i32_0 = arith.constant 0 : i32
    %c0_i32_1 = arith.constant 0 : i32
    %c0_i32_2 = arith.constant 0 : i32
    return %c0_i32, %c0_i32_0, %c0_i32_1 : i32, i32, i32
  }
  func.func @transform_7(%arg0: i32) -> (i32, i32, i32) {
    %c0_i32 = arith.constant 0 : i32
    %c0_i32_0 = arith.constant 0 : i32
    %c0_i32_1 = arith.constant 0 : i32
    %c0_i32_2 = arith.constant 0 : i32
    return %c0_i32, %c0_i32_0, %c0_i32_1 : i32, i32, i32
  }
  func.func @transform_8(%arg0: i32) -> (i32, i32, i32) {
    %c0_i32 = arith.constant 0 : i32
    %c0_i32_0 = arith.constant 0 : i32
    %c0_i32_1 = arith.constant 0 : i32
    return %arg0, %c0_i32, %c0_i32_0 : i32, i32, i32
  }
}

</mosaic_0001>

<llo_original>
// kernel: tpu_custom_call.1
$region0: #{tpu_custom_call.1}
  #allocation0 [shape = 'u32[]', space=smem, size = 0x4, offset = 0x4, fixed_abs, tag = 'smem constant byte address 0x4 - core index']
  #allocation1 [shape = 'u32[144,128]{1,0:T(1,128)}', space=vmem, size = 0x12000, scoped, tag = 'internal scratch']
  %s0 = inlined_call_operand.vmem [shape: f32[2,4,64], index: 0, kind: input, shape index: {}]
  %s1 = inlined_call_operand.vmem [shape: bf16[32,4], index: 1, kind: input, shape index: {}]
  %s2 = inlined_call_operand.vmem [shape: f32[32,1], index: 2, kind: input, shape index: {}]
  %s3 = inlined_call_operand.vmem [shape: f32[32,1], index: 3, kind: input, shape index: {}]
  %s4 = inlined_call_operand.vmem [shape: bf16[32,32], index: 4, kind: input, shape index: {}]
  %s5 = inlined_call_operand.vmem [shape: f32[32,1], index: 5, kind: input, shape index: {}]
  %s6 = inlined_call_operand.vmem [shape: bf16[10,32,32], index: 6, kind: input, shape index: {}]
  %s7 = inlined_call_operand.vmem [shape: f32[8,32,1], index: 7, kind: input, shape index: {}]
  %s8 = inlined_call_operand.hbm [shape: f32[2,32,64], index: 8, kind: output, shape index: {}]
  %s9 = sld [smem:[#allocation0]]
  $region65: #{tpu_custom_call.1} parent=0
    _
  %s11 = ssub.s32 1, %s9
  %s12 = scalar_select 0, %s11, %s9
  $region1: #{tpu_custom_call.1} parent=0
    #allocation2 [shape = 'u8[32768]{0}', space=vmem, size = 0x8000, scoped, tag = 'output window, operand 0']
    #allocation3 [shape = 's32[2]{0}', space=sflag, size = 0x8, scoped, tag = 'scoped memory for tpu_custom_call.1']
    %13 = vsyncpa [#allocation3], 0
    %s14 = scalar_lea.sflag [#allocation3], 1
    %15 = vsyncpa %s14, 0
    loop: start=0, step=1, limit=4
    $region2: #{tpu_custom_call.1} parent=1 // loop_pre_header
      _
    $region3: #{tpu_custom_call.1} parent=1 // loop_header
      %s17 = sphi 0, %s21
      %p18 = scmp.ge.s32.totalorder %s17, 4
      %s25 = sphi 0, %s25
      %s27 = sphi 0, %s25
      %s28 = sphi 0, %s27
      %s42 = sphi 0, %s28
      %s46 = sphi 0, %s46
      %s48 = sphi 0, %s46
      %s49 = sphi 0, %s48
      %s63 = sphi 0, %s49
      %s67 = sphi 0, %s67
      %s69 = sphi 0, %s67
      %s70 = sphi 0, %s69
      %s84 = sphi 0, %s70
      %s88 = sphi 0, %s88
      %s90 = sphi 0, %s88
      %s91 = sphi 0, %s90
      %s105 = sphi 0, %s91
      %s109 = sphi 0, %s109
      %s111 = sphi 0, %s109
      %s112 = sphi 0, %s111
      %s126 = sphi 0, %s112
      %s130 = sphi 0, %s130
      %s132 = sphi 0, %s130
      %s133 = sphi 0, %s132
      %s147 = sphi 0, %s133
      %s151 = sphi 0, %s151
      %s153 = sphi 0, %s151
      %s154 = sphi 0, %s153
      %s168 = sphi 0, %s154
      %s172 = sphi 0, %s172
      %s174 = sphi 0, %s172
      %s175 = sphi 0, %s174
      %s189 = sphi 0, %s175
      %s195 = sphi 0, %s197
      %s198 = sphi 0, %s195
      %s199 = sphi 0, %s198
      %s215 = sphi 0, %s199
    $region4: #{tpu_custom_call.1} parent=1 // loop_header_branch
      %20 = sbr.rel (%p18) target = $region8
    $region5: #{tpu_custom_call.1} parent=1 // loop_body
      %s22 = ssub.s32 %s17, 1
      %s23 = ssub.s32 %s17, 2
      %s24 = sadd.s32 %s17, 1
      %s26 = sadd.s32 %s25, 1
      %p29 = scmp.eq.s32.totalorder %s17, 1
      %p30 = scmp.ne.s32.totalorder %s25, %s27
      %p31 = scmp.eq.s32.totalorder %s17, 0
      %p32 = por %p30, %p31
      %p33 = scmp.ne.s32.totalorder %s25, %s27
      %p34 = scmp.eq.s32.totalorder %s22, 1
      %p35 = por %p33, %p34
      %p36 = scmp.ne.s32.totalorder %s27, %s28
      %p37 = scmp.eq.s32.totalorder %s22, 0
      %p38 = por %p36, %p37
      %p39 = scmp.ne.s32.totalorder %s27, %s28
      %p40 = scmp.eq.s32.totalorder %s23, 1
      %p41 = por %p39, %p40
      %p43 = scmp.ne.s32.totalorder %s28, %s42
      %p44 = scmp.eq.s32.totalorder %s23, 0
      %p45 = por %p43, %p44
      %s47 = sadd.s32 %s46, 1
      %p50 = scmp.eq.s32.totalorder %s17, 1
      %p51 = scmp.ne.s32.totalorder %s46, %s48
      %p52 = scmp.eq.s32.totalorder %s17, 0
      %p53 = por %p51, %p52
      %p54 = scmp.ne.s32.totalorder %s46, %s48
      %p55 = scmp.eq.s32.totalorder %s22, 1
      %p56 = por %p54, %p55
      %p57 = scmp.ne.s32.totalorder %s48, %s49
      %p58 = scmp.eq.s32.totalorder %s22, 0
      %p59 = por %p57, %p58
      %p60 = scmp.ne.s32.totalorder %s48, %s49
      %p61 = scmp.eq.s32.totalorder %s23, 1
      %p62 = por %p60, %p61
      %p64 = scmp.ne.s32.totalorder %s49, %s63
      %p65 = scmp.eq.s32.totalorder %s23, 0
      %p66 = por %p64, %p65
      %s68 = sadd.s32 %s67, 1
      %p71 = scmp.eq.s32.totalorder %s17, 1
      %p72 = scmp.ne.s32.totalorder %s67, %s69
      %p73 = scmp.eq.s32.totalorder %s17, 0
      %p74 = por %p72, %p73
      %p75 = scmp.ne.s32.totalorder %s67, %s69
      %p76 = scmp.eq.s32.totalorder %s22, 1
      %p77 = por %p75, %p76
      %p78 = scmp.ne.s32.totalorder %s69, %s70
      %p79 = scmp.eq.s32.totalorder %s22, 0
      %p80 = por %p78, %p79
      %p81 = scmp.ne.s32.totalorder %s69, %s70
      %p82 = scmp.eq.s32.totalorder %s23, 1
      %p83 = por %p81, %p82
      %p85 = scmp.ne.s32.totalorder %s70, %s84
      %p86 = scmp.eq.s32.totalorder %s23, 0
      %p87 = por %p85, %p86
      %s89 = sadd.s32 %s88, 1
      %p92 = scmp.eq.s32.totalorder %s17, 1
      %p93 = scmp.ne.s32.totalorder %s88, %s90
      %p94 = scmp.eq.s32.totalorder %s17, 0
      %p95 = por %p93, %p94
      %p96 = scmp.ne.s32.totalorder %s88, %s90
      %p97 = scmp.eq.s32.totalorder %s22, 1
      %p98 = por %p96, %p97
      %p99 = scmp.ne.s32.totalorder %s90, %s91
      %p100 = scmp.eq.s32.totalorder %s22, 0
      %p101 = por %p99, %p100
      %p102 = scmp.ne.s32.totalorder %s90, %s91
      %p103 = scmp.eq.s32.totalorder %s23, 1
      %p104 = por %p102, %p103
      %p106 = scmp.ne.s32.totalorder %s91, %s105
      %p107 = scmp.eq.s32.totalorder %s23, 0
      %p108 = por %p106, %p107
      %s110 = sadd.s32 %s109, 1
      %p113 = scmp.eq.s32.totalorder %s17, 1
      %p114 = scmp.ne.s32.totalorder %s109, %s111
      %p115 = scmp.eq.s32.totalorder %s17, 0
      %p116 = por %p114, %p115
      %p117 = scmp.ne.s32.totalorder %s109, %s111
      %p118 = scmp.eq.s32.totalorder %s22, 1
      %p119 = por %p117, %p118
      %p120 = scmp.ne.s32.totalorder %s111, %s112
      %p121 = scmp.eq.s32.totalorder %s22, 0
      %p122 = por %p120, %p121
      %p123 = scmp.ne.s32.totalorder %s111, %s112
      %p124 = scmp.eq.s32.totalorder %s23, 1
      %p125 = por %p123, %p124
      %p127 = scmp.ne.s32.totalorder %s112, %s126
      %p128 = scmp.eq.s32.totalorder %s23, 0
      %p129 = por %p127, %p128
      %s131 = sadd.s32 %s130, 1
      %p134 = scmp.eq.s32.totalorder %s17, 1
      %p135 = scmp.ne.s32.totalorder %s130, %s132
      %p136 = scmp.eq.s32.totalorder %s17, 0
      %p137 = por %p135, %p136
      %p138 = scmp.ne.s32.totalorder %s130, %s132
      %p139 = scmp.eq.s32.totalorder %s22, 1
      %p140 = por %p138, %p139
      %p141 = scmp.ne.s32.totalorder %s132, %s133
      %p142 = scmp.eq.s32.totalorder %s22, 0
      %p143 = por %p141, %p142
      %p144 = scmp.ne.s32.totalorder %s132, %s133
      %p145 = scmp.eq.s32.totalorder %s23, 1
      %p146 = por %p144, %p145
      %p148 = scmp.ne.s32.totalorder %s133, %s147
      %p149 = scmp.eq.s32.totalorder %s23, 0
      %p150 = por %p148, %p149
      %s152 = sadd.s32 %s151, 1
      %p155 = scmp.eq.s32.totalorder %s17, 1
      %p156 = scmp.ne.s32.totalorder %s151, %s153
      %p157 = scmp.eq.s32.totalorder %s17, 0
      %p158 = por %p156, %p157
      %p159 = scmp.ne.s32.totalorder %s151, %s153
      %p160 = scmp.eq.s32.totalorder %s22, 1
      %p161 = por %p159, %p160
      %p162 = scmp.ne.s32.totalorder %s153, %s154
      %p163 = scmp.eq.s32.totalorder %s22, 0
      %p164 = por %p162, %p163
      %p165 = scmp.ne.s32.totalorder %s153, %s154
      %p166 = scmp.eq.s32.totalorder %s23, 1
      %p167 = por %p165, %p166
      %p169 = scmp.ne.s32.totalorder %s154, %s168
      %p170 = scmp.eq.s32.totalorder %s23, 0
      %p171 = por %p169, %p170
      %s173 = sadd.s32 %s172, 1
      %p176 = scmp.eq.s32.totalorder %s17, 1
      %p177 = scmp.ne.s32.totalorder %s172, %s174
      %p178 = scmp.eq.s32.totalorder %s17, 0
      %p179 = por %p177, %p178
      %p180 = scmp.ne.s32.totalorder %s172, %s174
      %p181 = scmp.eq.s32.totalorder %s22, 1
      %p182 = por %p180, %p181
      %p183 = scmp.ne.s32.totalorder %s174, %s175
      %p184 = scmp.eq.s32.totalorder %s22, 0
      %p185 = por %p183, %p184
      %p186 = scmp.ne.s32.totalorder %s174, %s175
      %p187 = scmp.eq.s32.totalorder %s23, 1
      %p188 = por %p186, %p187
      %p190 = scmp.ne.s32.totalorder %s175, %s189
      %p191 = scmp.eq.s32.totalorder %s23, 0
      %p192 = por %p190, %p191
      %s193 = ssub.s32 %s17, %s24
      %p194 = scmp.eq.s32.totalorder %s193, 0
      %s196 = sadd.s32 %s195, 1
      %s197 = scalar_select %p194, %s195, %s196
      %p200 = pneg %p194
      %p201 = scmp.eq.s32.totalorder %s17, 1
      %p202 = por %p200, %p201
      %p203 = scmp.ne.s32.totalorder %s195, %s198
      %p204 = scmp.eq.s32.totalorder %s17, 0
      %p205 = por %p203, %p204
      %p206 = scmp.ne.s32.totalorder %s195, %s198
      %p207 = scmp.eq.s32.totalorder %s22, 1
      %p208 = por %p206, %p207
      %p209 = scmp.ne.s32.totalorder %s198, %s199
      %p210 = scmp.eq.s32.totalorder %s22, 0
      %p211 = por %p209, %p210
      %p212 = scmp.ne.s32.totalorder %s198, %s199
      %p213 = scmp.eq.s32.totalorder %s23, 1
      %p214 = por %p212, %p213
      %p216 = scmp.ne.s32.totalorder %s199, %s215
      %p217 = scmp.eq.s32.totalorder %s23, 0
      %p218 = por %p216, %p217
      %p219 = scmp.le.s32.totalorder 1, %s17
      %p220 = scmp.lt.s32.totalorder %s17, 3
      %p221 = pnand %p219, %p220
      %p222 = pneg %p221
      // Predicated region
      $region9: #{tpu_custom_call.1} parent=5 // pred_check
        _
      $region10: #{tpu_custom_call.1} parent=5 // pred_check_branch
        %224 = sbr.rel (%p221) target = $region12
      $region11: #{tpu_custom_call.1} parent=5 // pred_region
        %s225 = ssub.s32 %s17, 1
        // Predicated region
        $region13: #{tpu_custom_call.1} parent=11 // pred_check
          %p226 = pneg %p38
        $region14: #{tpu_custom_call.1} parent=11 // pred_check_branch
          %228 = sbr.rel (%p226) target = $region16
        $region15: #{tpu_custom_call.1} parent=11 // pred_region
          _
        $region16: #{tpu_custom_call.1} parent=11 // pred_fallthru
          _
        // Predicated region
        $region17: #{tpu_custom_call.1} parent=11 // pred_check
          %p229 = pneg %p59
        $region18: #{tpu_custom_call.1} parent=11 // pred_check_branch
          %231 = sbr.rel (%p229) target = $region20
        $region19: #{tpu_custom_call.1} parent=11 // pred_region
          _
        $region20: #{tpu_custom_call.1} parent=11 // pred_fallthru
          _
        // Predicated region
        $region21: #{tpu_custom_call.1} parent=11 // pred_check
          %p232 = pneg %p80
        $region22: #{tpu_custom_call.1} parent=11 // pred_check_branch
          %234 = sbr.rel (%p232) target = $region24
        $region23: #{tpu_custom_call.1} parent=11 // pred_region
          _
        $region24: #{tpu_custom_call.1} parent=11 // pred_fallthru
          _
        // Predicated region
        $region25: #{tpu_custom_call.1} parent=11 // pred_check
          %p235 = pneg %p101
        $region26: #{tpu_custom_call.1} parent=11 // pred_check_branch
          %237 = sbr.rel (%p235) target = $region28
        $region27: #{tpu_custom_call.1} parent=11 // pred_region
          _
        $region28: #{tpu_custom_call.1} parent=11 // pred_fallthru
          _
        // Predicated region
        $region29: #{tpu_custom_call.1} parent=11 // pred_check
          %p238 = pneg %p122
        $region30: #{tpu_custom_call.1} parent=11 // pred_check_branch
          %240 = sbr.rel (%p238) target = $region32
        $region31: #{tpu_custom_call.1} parent=11 // pred_region
          _
        $region32: #{tpu_custom_call.1} parent=11 // pred_fallthru
          _
        // Predicated region
        $region33: #{tpu_custom_call.1} parent=11 // pred_check
          %p241 = pneg %p143
        $region34: #{tpu_custom_call.1} parent=11 // pred_check_branch
          %243 = sbr.rel (%p241) target = $region36
        $region35: #{tpu_custom_call.1} parent=11 // pred_region
          _
        $region36: #{tpu_custom_call.1} parent=11 // pred_fallthru
          _
        // Predicated region
        $region37: #{tpu_custom_call.1} parent=11 // pred_check
          %p244 = pneg %p164
        $region38: #{tpu_custom_call.1} parent=11 // pred_check_branch
          %246 = sbr.rel (%p244) target = $region40
        $region39: #{tpu_custom_call.1} parent=11 // pred_region
          _
        $region40: #{tpu_custom_call.1} parent=11 // pred_fallthru
          _
        // Predicated region
        $region41: #{tpu_custom_call.1} parent=11 // pred_check
          %p247 = pneg %p185
        $region42: #{tpu_custom_call.1} parent=11 // pred_check_branch
          %249 = sbr.rel (%p247) target = $region44
        $region43: #{tpu_custom_call.1} parent=11 // pred_region
          _
        $region44: #{tpu_custom_call.1} parent=11 // pred_fallthru
          _
      $region12: #{tpu_custom_call.1} parent=5 // pred_fallthru
        _
      %p250 = scmp.lt.s32.totalorder %s17, 2
      // Predicated region
      $region45: #{tpu_custom_call.1} parent=5 // pred_check
        %p251 = pneg %p250
      $region46: #{tpu_custom_call.1} parent=5 // pred_check_branch
        %253 = sbr.rel (%p251) target = $region48
      $region47: #{tpu_custom_call.1} parent=5 // pred_region
        _
      $region48: #{tpu_custom_call.1} parent=5 // pred_fallthru
        _
      %p254 = scmp.le.s32.totalorder 1, %s17
      %p255 = scmp.lt.s32.totalorder %s17, 3
      %p256 = pnand %p254, %p255
      %p257 = pneg %p256
      // Predicated region
      $region49: #{tpu_custom_call.1} parent=5 // pred_check
        _
      $region50: #{tpu_custom_call.1} parent=5 // pred_check_branch
        %259 = sbr.rel (%p256) target = $region52
      $region51: #{tpu_custom_call.1} parent=5 // pred_region
        %s260 = ssub.s32 %s17, 1
        %p261 = pneg %p38
        %p262 = pneg %p35
        %p263 = pneg %p59
        %p264 = pneg %p56
        %p265 = pneg %p80
        %p266 = pneg %p77
        %p267 = pneg %p101
        %p268 = pneg %p98
        %p269 = pneg %p122
        %p270 = pneg %p119
        %p271 = pneg %p143
        %p272 = pneg %p140
        %p273 = pneg %p164
        %p274 = pneg %p161
        %p275 = pneg %p185
        %p276 = pneg %p182
        %p277 = pneg %p211
        %p278 = pneg %p208
        %s279 = sand.u32 %s198, 1
        %s280 = scalar_lea.sflag [#allocation3], %s279
        %s281 = sand.u32 %s198, 1
        %s282 = smul.addr %s281, 32
        %s283 = scalar_lea.vmem [#allocation2], %s282
        %v285 = vld [vmem:[%s1] sm:$0xf]
        %v286 = vld [vmem:[%s1 + $0x4] sm:$0xf]
        %v287 = vld [vmem:[%s1 + $0x8] sm:$0xf]
        %v288 = vld [vmem:[%s1 + $0xc] sm:$0xf]
        %v289 = vld [vmem:[%s0] sm:$0xf]
        %v290 = vpack.c.bf16 %v289, %v289
        %v295 = vunpack.c.l.b16 %v285
        %v296 = vunpack.c.l.b16 %v286
        %v297 = vunpack.c.l.b16 %v287
        %v298 = vunpack.c.l.b16 %v288
        %v299 = vpack.c.b16 %v296, %v295
        %v300 = vpack.c.b16 %v298, %v297
        %vm301 = vcmask 31744
        %v303 = vsel %vm301, %v299, 0
        %v306 = vsel %vm301, %v300, 0
        %vm308 = vcmask 1041408
        %v310 = vsel %vm308, %v290, 0
        %312 = vmatprep.subr.bf16.mxu0 0
        %313 = vmatpush1.bf16.msra.mxu0 0
        %314 = vmatprep.subr.bf16.mxu0 0
        %315 = vmatpush1.bf16.msra.mxu0 0
        %316 = vmatprep.subr.bf16.mxu0 0
        %317 = vmatpush1.bf16.msra.mxu0 0
        %318 = vmatprep.subr.bf16.mxu0 0
        %319 = vmatpush1.bf16.msra.mxu0 0
        %320 = vmatprep.subr.bf16.mxu0 0
        %321 = vmatpush1.bf16.msra.mxu0 0
        %322 = vmatprep.subr.bf16.mxu0 0
        %323 = vmatpush1.bf16.msra.mxu0 0
        %324 = vmatprep.subr.bf16.mxu0 0
        %325 = vmatpush1.bf16.msra.mxu0 0
        %326 = vmatprep.subr.bf16.mxu0 0
        %327 = vmatpush1.bf16.msra.mxu0 %v310
        %328 = vmatprep.subr.bf16.mxu0 0
        %329 = vmatpush2.bf16.msra.mxu0 0
        %330 = vmatprep.subr.bf16.mxu0 0
        %331 = vmatpush2.bf16.msra.mxu0 0
        %332 = vmatprep.subr.bf16.mxu0 0
        %333 = vmatpush2.bf16.msra.mxu0 0
        %334 = vmatprep.subr.bf16.mxu0 0
        %335 = vmatpush2.bf16.msra.mxu0 0
        %336 = vmatprep.subr.bf16.mxu0 0
        %337 = vmatpush2.bf16.msra.mxu0 0
        %338 = vmatprep.subr.bf16.mxu0 0
        %339 = vmatpush2.bf16.msra.mxu0 0
        %340 = vmatprep.subr.bf16.mxu0 0
        %341 = vmatpush2.bf16.msra.mxu0 0
        %342 = vmatprep.subr.bf16.mxu0 0
        %343 = vmatpush2.bf16.msra.mxu0 0
        %344 = vmatprep.mubr.bf16.mxu0 0
        %345 = vmatmul.mubr.bf16.gmra.mxu0 %v303
        %v346 = vpop.f32.mrf.mxu0
        %v347 = vadd.f32 0.0, %v346
        %v348 = vpop.f32.mrf.mxu0
        %v349 = vpop.f32.mrf.mxu0
        %v350 = vadd.f32 0.0, %v349
        %v351 = vpop.f32.mrf.mxu0
        %352 = vmatprep.mubr.bf16.mxu0 0
        %353 = vmatmul.mubr.bf16.gmra.mxu0 %v306
        %v354 = vpop.f32.mrf.mxu0
        %v355 = vadd.f32 0.0, %v354
        %v356 = vpop.f32.mrf.mxu0
        %v357 = vpop.f32.mrf.mxu0
        %v358 = vadd.f32 0.0, %v357
        %v359 = vpop.f32.mrf.mxu0
        %360 = vdwg.mxu0
        %vm361 = vcmask 523264
        %v362 = vsel %vm361, %v347, 0.0
        %363 = vadd.xlane.f32.xlu0 %v362
        %v364 = vpop.xlane.xlu0 %363
        %v365 = vsel %vm361, %v350, 0.0
        %366 = vadd.xlane.f32.xlu0 %v365
        %v367 = vpop.xlane.xlu0 %366
        %v368 = vsel %vm361, %v355, 0.0
        %369 = vadd.xlane.f32.xlu0 %v368
        %v370 = vpop.xlane.xlu0 %369
        %v371 = vsel %vm361, %v358, 0.0
        %372 = vadd.xlane.f32.xlu0 %v371
        %v373 = vpop.xlane.xlu0 %372
        %v374 = vadd.f32 %v364, 0.0
        %v375 = vadd.f32 %v367, 0.0
        %v376 = vadd.f32 %v370, 0.0
        %v377 = vadd.f32 %v373, 0.0
        %v378 = vmul.f32 %v347, %v347
        %v379 = vmul.f32 %v350, %v350
        %v380 = vmul.f32 %v355, %v355
        %v381 = vmul.f32 %v358, %v358
        %v382 = vsel %vm361, %v378, 0.0
        %383 = vadd.xlane.f32.xlu0 %v382
        %v384 = vpop.xlane.xlu0 %383
        %v385 = vsel %vm361, %v379, 0.0
        %386 = vadd.xlane.f32.xlu0 %v385
        %v387 = vpop.xlane.xlu0 %386
        %v388 = vsel %vm361, %v380, 0.0
        %389 = vadd.xlane.f32.xlu0 %v388
        %v390 = vpop.xlane.xlu0 %389
        %v391 = vsel %vm361, %v381, 0.0
        %392 = vadd.xlane.f32.xlu0 %v391
        %v393 = vpop.xlane.xlu0 %392
        %v394 = vadd.f32 %v384, 0.0
        %v395 = vadd.f32 %v387, 0.0
        %v396 = vadd.f32 %v390, 0.0
        %v397 = vadd.f32 %v393, 0.0
        %s398 = scalar_lea.vmem %s0, 4
        %v399 = vld [vmem:[%s398] sm:$0xf]
        %v400 = vpack.c.bf16 %v399, %v399
        %v402 = vsel %vm308, %v400, 0
        %404 = vmatprep.subr.bf16.mxu0 0
        %405 = vmatpush1.bf16.msra.mxu0 0
        %406 = vmatprep.subr.bf16.mxu0 0
        %407 = vmatpush1.bf16.msra.mxu0 0
        %408 = vmatprep.subr.bf16.mxu0 0
        %409 = vmatpush1.bf16.msra.mxu0 0
        %410 = vmatprep.subr.bf16.mxu0 0
        %411 = vmatpush1.bf16.msra.mxu0 0
        %412 = vmatprep.subr.bf16.mxu0 0
        %413 = vmatpush1.bf16.msra.mxu0 0
        %414 = vmatprep.subr.bf16.mxu0 0
        %415 = vmatpush1.bf16.msra.mxu0 0
        %416 = vmatprep.subr.bf16.mxu0 0
        %417 = vmatpush1.bf16.msra.mxu0 0
        %418 = vmatprep.subr.bf16.mxu0 0
        %419 = vmatpush1.bf16.msra.mxu0 %v402
        %420 = vmatprep.subr.bf16.mxu0 0
        %421 = vmatpush2.bf16.msra.mxu0 0
        %422 = vmatprep.subr.bf16.mxu0 0
        %423 = vmatpush2.bf16.msra.mxu0 0
        %424 = vmatprep.subr.bf16.mxu0 0
        %425 = vmatpush2.bf16.msra.mxu0 0
        %426 = vmatprep.subr.bf16.mxu0 0
        %427 = vmatpush2.bf16.msra.mxu0 0
        %428 = vmatprep.subr.bf16.mxu0 0
        %429 = vmatpush2.bf16.msra.mxu0 0
        %430 = vmatprep.subr.bf16.mxu0 0
        %431 = vmatpush2.bf16.msra.mxu0 0
        %432 = vmatprep.subr.bf16.mxu0 0
        %433 = vmatpush2.bf16.msra.mxu0 0
        %434 = vmatprep.subr.bf16.mxu0 0
        %435 = vmatpush2.bf16.msra.mxu0 0
        %436 = vmatprep.mubr.bf16.mxu0 0
        %437 = vmatmul.mubr.bf16.gmra.mxu0 %v303
        %v438 = vpop.f32.mrf.mxu0
        %v439 = vadd.f32 0.0, %v438
        %v440 = vpop.f32.mrf.mxu0
        %v441 = vpop.f32.mrf.mxu0
        %v442 = vadd.f32 0.0, %v441
        %v443 = vpop.f32.mrf.mxu0
        %444 = vmatprep.mubr.bf16.mxu0 0
        %445 = vmatmul.mubr.bf16.gmra.mxu0 %v306
        %v446 = vpop.f32.mrf.mxu0
        %v447 = vadd.f32 0.0, %v446
        %v448 = vpop.f32.mrf.mxu0
        %v449 = vpop.f32.mrf.mxu0
        %v450 = vadd.f32 0.0, %v449
        %v451 = vpop.f32.mrf.mxu0
        %452 = vdwg.mxu0
        %v453 = vsel %vm361, %v439, 0.0
        %454 = vadd.xlane.f32.xlu0 %v453
        %v455 = vpop.xlane.xlu0 %454
        %v456 = vsel %vm361, %v442, 0.0
        %457 = vadd.xlane.f32.xlu0 %v456
        %v458 = vpop.xlane.xlu0 %457
        %v459 = vsel %vm361, %v447, 0.0
        %460 = vadd.xlane.f32.xlu0 %v459
        %v461 = vpop.xlane.xlu0 %460
        %v462 = vsel %vm361, %v450, 0.0
        %463 = vadd.xlane.f32.xlu0 %v462
        %v464 = vpop.xlane.xlu0 %463
        %v465 = vadd.f32 %v374, %v455
        %v466 = vadd.f32 %v375, %v458
        %v467 = vadd.f32 %v376, %v461
        %v468 = vadd.f32 %v377, %v464
        %v469 = vmul.f32 %v439, %v439
        %v470 = vmul.f32 %v442, %v442
        %v471 = vmul.f32 %v447, %v447
        %v472 = vmul.f32 %v450, %v450
        %v473 = vsel %vm361, %v469, 0.0
        %474 = vadd.xlane.f32.xlu0 %v473
        %v475 = vpop.xlane.xlu0 %474
        %v476 = vsel %vm361, %v470, 0.0
        %477 = vadd.xlane.f32.xlu0 %v476
        %v478 = vpop.xlane.xlu0 %477
        %v479 = vsel %vm361, %v471, 0.0
        %480 = vadd.xlane.f32.xlu0 %v479
        %v481 = vpop.xlane.xlu0 %480
        %v482 = vsel %vm361, %v472, 0.0
        %483 = vadd.xlane.f32.xlu0 %v482
        %v484 = vpop.xlane.xlu0 %483
        %v485 = vadd.f32 %v394, %v475
        %v486 = vadd.f32 %v395, %v478
        %v487 = vadd.f32 %v396, %v481
        %v488 = vadd.f32 %v397, %v484
        %v489 = vrcp.pop 128.0
        %v490 = vmul.f32 %v465, %v489
        %v491 = vmul.f32 %v466, %v489
        %v492 = vmul.f32 %v467, %v489
        %v493 = vmul.f32 %v468, %v489
        %v494 = vmul.f32 %v485, %v489
        %v495 = vmul.f32 %v486, %v489
        %v496 = vmul.f32 %v487, %v489
        %v497 = vmul.f32 %v488, %v489
        %v498 = vmul.f32 %v490, %v490
        %v499 = vmul.f32 %v491, %v491
        %v500 = vmul.f32 %v492, %v492
        %v501 = vmul.f32 %v493, %v493
        %v502 = vsub.f32 %v494, %v498
        %v503 = vsub.f32 %v495, %v499
        %v504 = vsub.f32 %v496, %v500
        %v505 = vsub.f32 %v497, %v501
        %v506 = vmax.f32 %v502, 0.0
        %v507 = vmax.f32 %v503, 0.0
        %v508 = vmax.f32 %v504, 0.0
        %v509 = vmax.f32 %v505, 0.0
        %v510 = vadd.f32 %v506, 1e-05
        %v511 = vadd.f32 %v507, 1e-05
        %v512 = vadd.f32 %v508, 1e-05
        %v513 = vadd.f32 %v509, 1e-05
        %v514 = vrsqrt.pop %v510
        %v515 = vrsqrt.pop %v511
        %v516 = vrsqrt.pop %v512
        %v517 = vrsqrt.pop %v513
        %s518 = smul.u32 %s22, 4
        %s519 = scalar_lea.vmem %s0, %s518
        %v520 = vld [vmem:[%s519] sm:$0xf]
        %v521 = vpack.c.bf16 %v520, %v520
        %v523 = vsel %vm308, %v521, 0
        %525 = vmatprep.subr.bf16.mxu0 0
        %526 = vmatpush1.bf16.msra.mxu0 0
        %527 = vmatprep.subr.bf16.mxu0 0
        %528 = vmatpush1.bf16.msra.mxu0 0
        %529 = vmatprep.subr.bf16.mxu0 0
        %530 = vmatpush1.bf16.msra.mxu0 0
        %531 = vmatprep.subr.bf16.mxu0 0
        %532 = vmatpush1.bf16.msra.mxu0 0
        %533 = vmatprep.subr.bf16.mxu0 0
        %534 = vmatpush1.bf16.msra.mxu0 0
        %535 = vmatprep.subr.bf16.mxu0 0
        %536 = vmatpush1.bf16.msra.mxu0 0
        %537 = vmatprep.subr.bf16.mxu0 0
        %538 = vmatpush1.bf16.msra.mxu0 0
        %539 = vmatprep.subr.bf16.mxu0 0
        %540 = vmatpush1.bf16.msra.mxu0 %v523
        %541 = vmatprep.subr.bf16.mxu0 0
        %542 = vmatpush2.bf16.msra.mxu0 0
        %543 = vmatprep.subr.bf16.mxu0 0
        %544 = vmatpush2.bf16.msra.mxu0 0
        %545 = vmatprep.subr.bf16.mxu0 0
        %546 = vmatpush2.bf16.msra.mxu0 0
        %547 = vmatprep.subr.bf16.mxu0 0
        %548 = vmatpush2.bf16.msra.mxu0 0
        %549 = vmatprep.subr.bf16.mxu0 0
        %550 = vmatpush2.bf16.msra.mxu0 0
        %551 = vmatprep.subr.bf16.mxu0 0
        %552 = vmatpush2.bf16.msra.mxu0 0
        %553 = vmatprep.subr.bf16.mxu0 0
        %554 = vmatpush2.bf16.msra.mxu0 0
        %555 = vmatprep.subr.bf16.mxu0 0
        %556 = vmatpush2.bf16.msra.mxu0 0
        %557 = vmatprep.mubr.bf16.mxu0 0
        %558 = vmatmul.mubr.bf16.gmra.mxu0 %v303
        %v559 = vpop.f32.mrf.mxu0
        %v560 = vadd.f32 0.0, %v559
        %v561 = vpop.f32.mrf.mxu0
        %v562 = vpop.f32.mrf.mxu0
        %v563 = vadd.f32 0.0, %v562
        %v564 = vpop.f32.mrf.mxu0
        %565 = vmatprep.mubr.bf16.mxu0 0
        %566 = vmatmul.mubr.bf16.gmra.mxu0 %v306
        %v567 = vpop.f32.mrf.mxu0
        %v568 = vadd.f32 0.0, %v567
        %v569 = vpop.f32.mrf.mxu0
        %v570 = vpop.f32.mrf.mxu0
        %v571 = vadd.f32 0.0, %v570
        %v572 = vpop.f32.mrf.mxu0
        %573 = vdwg.mxu0
        %v574 = vsub.f32 %v560, %v490
        %v575 = vsub.f32 %v563, %v491
        %v576 = vsub.f32 %v568, %v492
        %v577 = vsub.f32 %v571, %v493
        %v578 = vmul.f32 %v574, %v514
        %v579 = vmul.f32 %v575, %v515
        %v580 = vmul.f32 %v576, %v516
        %v581 = vmul.f32 %v577, %v517
        %v582 = vld [vmem:[%s2] sm:$0xff]
        %v583 = vld [vmem:[%s2 + $0x8] sm:$0xff]
        %v584 = vld [vmem:[%s2 + $0x10] sm:$0xff]
        %v585 = vld [vmem:[%s2 + $0x18] sm:$0xff]
        %587 = vset.pattern.permute.xlu0 0
        %588 = vperm.xlu0 %587, %v582
        %v589 = vpop.permute.xlu0 %588
        %592 = vset.pattern.permute.xlu0 0
        %593 = vperm.xlu0 %592, %v583
        %v594 = vpop.permute.xlu0 %593
        %597 = vset.pattern.permute.xlu0 0
        %598 = vperm.xlu0 %597, %v584
        %v599 = vpop.permute.xlu0 %598
        %602 = vset.pattern.permute.xlu0 0
        %603 = vperm.xlu0 %602, %v585
        %v604 = vpop.permute.xlu0 %603
        %v606 = vmul.f32 %v578, %v589
        %v607 = vmul.f32 %v579, %v594
        %v608 = vmul.f32 %v580, %v599
        %v609 = vmul.f32 %v581, %v604
        %v610 = vld [vmem:[%s3] sm:$0xff]
        %v611 = vld [vmem:[%s3 + $0x8] sm:$0xff]
        %v612 = vld [vmem:[%s3 + $0x10] sm:$0xff]
        %v613 = vld [vmem:[%s3 + $0x18] sm:$0xff]
        %615 = vset.pattern.permute.xlu0 0
        %616 = vperm.xlu0 %615, %v610
        %v617 = vpop.permute.xlu0 %616
        %620 = vset.pattern.permute.xlu0 0
        %621 = vperm.xlu0 %620, %v611
        %v622 = vpop.permute.xlu0 %621
        %625 = vset.pattern.permute.xlu0 0
        %626 = vperm.xlu0 %625, %v612
        %v627 = vpop.permute.xlu0 %626
        %630 = vset.pattern.permute.xlu0 0
        %631 = vperm.xlu0 %630, %v613
        %v632 = vpop.permute.xlu0 %631
        %v634 = vadd.f32 %v606, %v617
        %v635 = vadd.f32 %v607, %v622
        %v636 = vadd.f32 %v608, %v627
        %v637 = vadd.f32 %v609, %v632
        %v638 = vxor.u32 %v634, 2147483648
        %v639 = vxor.u32 %v635, 2147483648
        %v640 = vxor.u32 %v636, 2147483648
        %v641 = vxor.u32 %v637, 2147483648
        %v642 = vmul.f32 %v638, 1.442695
        %v643 = vpow.pop %v642
        %v644 = vmul.f32 %v639, 1.442695
        %v645 = vpow.pop %v644
        %v646 = vmul.f32 %v640, 1.442695
        %v647 = vpow.pop %v646
        %v648 = vmul.f32 %v641, 1.442695
        %v649 = vpow.pop %v648
        %v650 = vadd.f32 %v643, 1.0
        %v651 = vadd.f32 %v645, 1.0
        %v652 = vadd.f32 %v647, 1.0
        %v653 = vadd.f32 %v649, 1.0
        %v654 = vrcp.pop %v650
        %v655 = vmul.f32 1.0, %v654
        %v656 = vrcp.pop %v651
        %v657 = vmul.f32 1.0, %v656
        %v658 = vrcp.pop %v652
        %v659 = vmul.f32 1.0, %v658
        %v660 = vrcp.pop %v653
        %v661 = vmul.f32 1.0, %v660
        %v662 = vmul.f32 %v634, %v655
        %v663 = vmul.f32 %v635, %v657
        %v664 = vmul.f32 %v636, %v659
        %v665 = vmul.f32 %v637, %v661
        %v666 = vld [vmem:[%s4] sm:$0xf]
        %v667 = vld [vmem:[%s4 + $0x4] sm:$0xf]
        %v668 = vld [vmem:[%s4 + $0x8] sm:$0xf]
        %v669 = vld [vmem:[%s4 + $0xc] sm:$0xf]
        %v670 = vpack.c.bf16 %v663, %v662
        %v671 = vpack.c.bf16 %v665, %v664
        %v676 = vunpack.c.l.b16 %v666
        %v677 = vunpack.c.l.b16 %v667
        %v678 = vunpack.c.l.b16 %v668
        %v679 = vunpack.c.l.b16 %v669
        %v680 = vpack.c.b16 %v677, %v676
        %v681 = vpack.c.b16 %v679, %v678
        %vm682 = vcmask 261120
        %v684 = vsel %vm682, %v680, 0
        %v687 = vsel %vm682, %v681, 0
        %689 = vmatprep.subr.bf16.mxu0 0
        %690 = vmatpush1.bf16.msra.mxu0 0
        %691 = vmatprep.subr.bf16.mxu0 0
        %692 = vmatpush1.bf16.msra.mxu0 0
        %693 = vmatprep.subr.bf16.mxu0 0
        %694 = vmatpush1.bf16.msra.mxu0 0
        %695 = vmatprep.subr.bf16.mxu0 0
        %696 = vmatpush1.bf16.msra.mxu0 0
        %697 = vmatprep.subr.bf16.mxu0 0
        %698 = vmatpush1.bf16.msra.mxu0 0
        %699 = vmatprep.subr.bf16.mxu0 0
        %700 = vmatpush1.bf16.msra.mxu0 0
        %701 = vmatprep.subr.bf16.mxu0 0
        %702 = vmatpush1.bf16.msra.mxu0 %v671
        %703 = vmatprep.subr.bf16.mxu0 0
        %704 = vmatpush1.bf16.msra.mxu0 %v670
        %705 = vmatprep.subr.bf16.mxu0 0
        %706 = vmatpush2.bf16.msra.mxu0 0
        %707 = vmatprep.subr.bf16.mxu0 0
        %708 = vmatpush2.bf16.msra.mxu0 0
        %709 = vmatprep.subr.bf16.mxu0 0
        %710 = vmatpush2.bf16.msra.mxu0 0
        %711 = vmatprep.subr.bf16.mxu0 0
        %712 = vmatpush2.bf16.msra.mxu0 0
        %713 = vmatprep.subr.bf16.mxu0 0
        %714 = vmatpush2.bf16.msra.mxu0 0
        %715 = vmatprep.subr.bf16.mxu0 0
        %716 = vmatpush2.bf16.msra.mxu0 0
        %717 = vmatprep.subr.bf16.mxu0 0
        %718 = vmatpush2.bf16.msra.mxu0 0
        %719 = vmatprep.subr.bf16.mxu0 0
        %720 = vmatpush2.bf16.msra.mxu0 0
        %721 = vmatprep.mubr.bf16.mxu0 0
        %722 = vmatmul.mubr.bf16.gmra.mxu0 %v684
        %v723 = vpop.f32.mrf.mxu0
        %v724 = vadd.f32 0.0, %v723
        %v725 = vpop.f32.mrf.mxu0
        %v726 = vpop.f32.mrf.mxu0
        %v727 = vadd.f32 0.0, %v726
        %v728 = vpop.f32.mrf.mxu0
        %729 = vmatprep.mubr.bf16.mxu0 0
        %730 = vmatmul.mubr.bf16.gmra.mxu0 %v687
        %v731 = vpop.f32.mrf.mxu0
        %v732 = vadd.f32 0.0, %v731
        %v733 = vpop.f32.mrf.mxu0
        %v734 = vpop.f32.mrf.mxu0
        %v735 = vadd.f32 0.0, %v734
        %v736 = vpop.f32.mrf.mxu0
        %737 = vdwg.mxu0
        %v738 = vadd.f32 %v662, %v724
        %v739 = vadd.f32 %v663, %v727
        %v740 = vadd.f32 %v664, %v732
        %v741 = vadd.f32 %v665, %v735
        %v742 = vld [vmem:[%s5] sm:$0xff]
        %v743 = vld [vmem:[%s5 + $0x8] sm:$0xff]
        %v744 = vld [vmem:[%s5 + $0x10] sm:$0xff]
        %v745 = vld [vmem:[%s5 + $0x18] sm:$0xff]
        %747 = vset.pattern.permute.xlu0 0
        %748 = vperm.xlu0 %747, %v742
        %v749 = vpop.permute.xlu0 %748
        %752 = vset.pattern.permute.xlu0 0
        %753 = vperm.xlu0 %752, %v743
        %v754 = vpop.permute.xlu0 %753
        %757 = vset.pattern.permute.xlu0 0
        %758 = vperm.xlu0 %757, %v744
        %v759 = vpop.permute.xlu0 %758
        %762 = vset.pattern.permute.xlu0 0
        %763 = vperm.xlu0 %762, %v745
        %v764 = vpop.permute.xlu0 %763
        %v766 = vadd.f32 %v738, %v749
        %v767 = vadd.f32 %v739, %v754
        %v768 = vadd.f32 %v740, %v759
        %v769 = vadd.f32 %v741, %v764
        %v770 = vld [vmem:[%s6] sm:$0xf]
        %v771 = vld [vmem:[%s6 + $0x4] sm:$0xf]
        %v772 = vld [vmem:[%s6 + $0x8] sm:$0xf]
        %v773 = vld [vmem:[%s6 + $0xc] sm:$0xf]
        %s774 = scalar_lea.vmem %s6, 16
        %v775 = vld [vmem:[%s774] sm:$0xf]
        %v776 = vld [vmem:[%s774 + $0x4] sm:$0xf]
        %v777 = vld [vmem:[%s774 + $0x8] sm:$0xf]
        %v778 = vld [vmem:[%s774 + $0xc] sm:$0xf]
        %s779 = scalar_lea.vmem %s6, 32
        %v780 = vld [vmem:[%s779] sm:$0xf]
        %v781 = vld [vmem:[%s779 + $0x4] sm:$0xf]
        %v782 = vld [vmem:[%s779 + $0x8] sm:$0xf]
        %v783 = vld [vmem:[%s779 + $0xc] sm:$0xf]
        %s784 = scalar_lea.vmem %s6, 48
        %v785 = vld [vmem:[%s784] sm:$0xf]
        %v786 = vld [vmem:[%s784 + $0x4] sm:$0xf]
        %v787 = vld [vmem:[%s784 + $0x8] sm:$0xf]
        %v788 = vld [vmem:[%s784 + $0xc] sm:$0xf]
        %s789 = scalar_lea.vmem %s6, 64
        %v790 = vld [vmem:[%s789] sm:$0xf]
        %v791 = vld [vmem:[%s789 + $0x4] sm:$0xf]
        %v792 = vld [vmem:[%s789 + $0x8] sm:$0xf]
        %v793 = vld [vmem:[%s789 + $0xc] sm:$0xf]
        %v794 = vld [vmem:[%s7] sm:$0xff]
        %v795 = vld [vmem:[%s7 + $0x8] sm:$0xff]
        %v796 = vld [vmem:[%s7 + $0x10] sm:$0xff]
        %v797 = vld [vmem:[%s7 + $0x18] sm:$0xff]
        %s798 = scalar_lea.vmem %s7, 32
        %v799 = vld [vmem:[%s798] sm:$0xff]
        %v800 = vld [vmem:[%s798 + $0x8] sm:$0xff]
        %v801 = vld [vmem:[%s798 + $0x10] sm:$0xff]
        %v802 = vld [vmem:[%s798 + $0x18] sm:$0xff]
        %s803 = scalar_lea.vmem %s7, 64
        %v804 = vld [vmem:[%s803] sm:$0xff]
        %v805 = vld [vmem:[%s803 + $0x8] sm:$0xff]
        %v806 = vld [vmem:[%s803 + $0x10] sm:$0xff]
        %v807 = vld [vmem:[%s803 + $0x18] sm:$0xff]
        %s808 = scalar_lea.vmem %s7, 96
        %v809 = vld [vmem:[%s808] sm:$0xff]
        %v810 = vld [vmem:[%s808 + $0x8] sm:$0xff]
        %v811 = vld [vmem:[%s808 + $0x10] sm:$0xff]
        %v812 = vld [vmem:[%s808 + $0x18] sm:$0xff]
        %v813 = vpack.c.bf16 %v767, %v766
        %v814 = vpack.c.bf16 %v769, %v768
        %816 = vset.pattern.permute.xlu0 0
        %817 = vperm.xlu0 %816, %v794
        %v818 = vpop.permute.xlu0 %817
        %821 = vset.pattern.permute.xlu0 0
        %822 = vperm.xlu0 %821, %v795
        %v823 = vpop.permute.xlu0 %822
        %826 = vset.pattern.permute.xlu0 0
        %827 = vperm.xlu0 %826, %v796
        %v828 = vpop.permute.xlu0 %827
        %831 = vset.pattern.permute.xlu0 0
        %832 = vperm.xlu0 %831, %v797
        %v833 = vpop.permute.xlu0 %832
        %v839 = vunpack.c.l.b16 %v770
        %v840 = vunpack.c.l.b16 %v771
        %v841 = vunpack.c.l.b16 %v772
        %v842 = vunpack.c.l.b16 %v773
        %v843 = vpack.c.b16 %v840, %v839
        %v844 = vpack.c.b16 %v842, %v841
        %v846 = vsel %vm682, %v843, 0
        %v849 = vsel %vm682, %v844, 0
        %851 = vmatprep.subr.bf16.mxu0 0
        %852 = vmatpush1.bf16.msra.mxu0 0
        %853 = vmatprep.subr.bf16.mxu0 0
        %854 = vmatpush1.bf16.msra.mxu0 0
        %855 = vmatprep.subr.bf16.mxu0 0
        %856 = vmatpush1.bf16.msra.mxu0 0
        %857 = vmatprep.subr.bf16.mxu0 0
        %858 = vmatpush1.bf16.msra.mxu0 0
        %859 = vmatprep.subr.bf16.mxu0 0
        %860 = vmatpush1.bf16.msra.mxu0 0
        %861 = vmatprep.subr.bf16.mxu0 0
        %862 = vmatpush1.bf16.msra.mxu0 0
        %863 = vmatprep.subr.bf16.mxu0 0
        %864 = vmatpush1.bf16.msra.mxu0 %v814
        %865 = vmatprep.subr.bf16.mxu0 0
        %866 = vmatpush1.bf16.msra.mxu0 %v813
        %867 = vmatprep.subr.bf16.mxu0 0
        %868 = vmatpush2.bf16.msra.mxu0 0
        %869 = vmatprep.subr.bf16.mxu0 0
        %870 = vmatpush2.bf16.msra.mxu0 0
        %871 = vmatprep.subr.bf16.mxu0 0
        %872 = vmatpush2.bf16.msra.mxu0 0
        %873 = vmatprep.subr.bf16.mxu0 0
        %874 = vmatpush2.bf16.msra.mxu0 0
        %875 = vmatprep.subr.bf16.mxu0 0
        %876 = vmatpush2.bf16.msra.mxu0 0
        %877 = vmatprep.subr.bf16.mxu0 0
        %878 = vmatpush2.bf16.msra.mxu0 0
        %879 = vmatprep.subr.bf16.mxu0 0
        %880 = vmatpush2.bf16.msra.mxu0 0
        %881 = vmatprep.subr.bf16.mxu0 0
        %882 = vmatpush2.bf16.msra.mxu0 0
        %883 = vmatprep.mubr.bf16.mxu0 0
        %884 = vmatmul.mubr.bf16.gmra.mxu0 %v846
        %v885 = vpop.f32.mrf.mxu0
        %v886 = vadd.f32 %v818, %v885
        %v887 = vpop.f32.mrf.mxu0
        %v888 = vpop.f32.mrf.mxu0
        %v889 = vadd.f32 %v823, %v888
        %v890 = vpop.f32.mrf.mxu0
        %891 = vmatprep.mubr.bf16.mxu0 0
        %892 = vmatmul.mubr.bf16.gmra.mxu0 %v849
        %v893 = vpop.f32.mrf.mxu0
        %v894 = vadd.f32 %v828, %v893
        %v895 = vpop.f32.mrf.mxu0
        %v896 = vpop.f32.mrf.mxu0
        %v897 = vadd.f32 %v833, %v896
        %v898 = vpop.f32.mrf.mxu0
        %899 = vdwg.mxu0
        %901 = vset.pattern.permute.xlu0 0
        %902 = vperm.xlu0 %901, %v799
        %v903 = vpop.permute.xlu0 %902
        %906 = vset.pattern.permute.xlu0 0
        %907 = vperm.xlu0 %906, %v800
        %v908 = vpop.permute.xlu0 %907
        %911 = vset.pattern.permute.xlu0 0
        %912 = vperm.xlu0 %911, %v801
        %v913 = vpop.permute.xlu0 %912
        %916 = vset.pattern.permute.xlu0 0
        %917 = vperm.xlu0 %916, %v802
        %v918 = vpop.permute.xlu0 %917
        %v924 = vunpack.c.l.b16 %v775
        %v925 = vunpack.c.l.b16 %v776
        %v926 = vunpack.c.l.b16 %v777
        %v927 = vunpack.c.l.b16 %v778
        %v928 = vpack.c.b16 %v925, %v924
        %v929 = vpack.c.b16 %v927, %v926
        %v931 = vsel %vm682, %v928, 0
        %v934 = vsel %vm682, %v929, 0
        %936 = vmatprep.subr.bf16.mxu0 0
        %937 = vmatpush1.bf16.msra.mxu0 0
        %938 = vmatprep.subr.bf16.mxu0 0
        %939 = vmatpush1.bf16.msra.mxu0 0
        %940 = vmatprep.subr.bf16.mxu0 0
        %941 = vmatpush1.bf16.msra.mxu0 0
        %942 = vmatprep.subr.bf16.mxu0 0
        %943 = vmatpush1.bf16.msra.mxu0 0
        %944 = vmatprep.subr.bf16.mxu0 0
        %945 = vmatpush1.bf16.msra.mxu0 0
        %946 = vmatprep.subr.bf16.mxu0 0
        %947 = vmatpush1.bf16.msra.mxu0 0
        %948 = vmatprep.subr.bf16.mxu0 0
        %949 = vmatpush1.bf16.msra.mxu0 %v814
        %950 = vmatprep.subr.bf16.mxu0 0
        %951 = vmatpush1.bf16.msra.mxu0 %v813
        %952 = vmatprep.subr.bf16.mxu0 0
        %953 = vmatpush2.bf16.msra.mxu0 0
        %954 = vmatprep.subr.bf16.mxu0 0
        %955 = vmatpush2.bf16.msra.mxu0 0
        %956 = vmatprep.subr.bf16.mxu0 0
        %957 = vmatpush2.bf16.msra.mxu0 0
        %958 = vmatprep.subr.bf16.mxu0 0
        %959 = vmatpush2.bf16.msra.mxu0 0
        %960 = vmatprep.subr.bf16.mxu0 0
        %961 = vmatpush2.bf16.msra.mxu0 0
        %962 = vmatprep.subr.bf16.mxu0 0
        %963 = vmatpush2.bf16.msra.mxu0 0
        %964 = vmatprep.subr.bf16.mxu0 0
        %965 = vmatpush2.bf16.msra.mxu0 0
        %966 = vmatprep.subr.bf16.mxu0 0
        %967 = vmatpush2.bf16.msra.mxu0 0
        %968 = vmatprep.mubr.bf16.mxu0 0
        %969 = vmatmul.mubr.bf16.gmra.mxu0 %v931
        %v970 = vpop.f32.mrf.mxu0
        %v971 = vadd.f32 %v903, %v970
        %v972 = vpop.f32.mrf.mxu0
        %v973 = vpop.f32.mrf.mxu0
        %v974 = vadd.f32 %v908, %v973
        %v975 = vpop.f32.mrf.mxu0
        %976 = vmatprep.mubr.bf16.mxu0 0
        %977 = vmatmul.mubr.bf16.gmra.mxu0 %v934
        %v978 = vpop.f32.mrf.mxu0
        %v979 = vadd.f32 %v913, %v978
        %v980 = vpop.f32.mrf.mxu0
        %v981 = vpop.f32.mrf.mxu0
        %v982 = vadd.f32 %v918, %v981
        %v983 = vpop.f32.mrf.mxu0
        %984 = vdwg.mxu0
        %986 = vset.pattern.permute.xlu0 0
        %987 = vperm.xlu0 %986, %v804
        %v988 = vpop.permute.xlu0 %987
        %991 = vset.pattern.permute.xlu0 0
        %992 = vperm.xlu0 %991, %v805
        %v993 = vpop.permute.xlu0 %992
        %996 = vset.pattern.permute.xlu0 0
        %997 = vperm.xlu0 %996, %v806
        %v998 = vpop.permute.xlu0 %997
        %1001 = vset.pattern.permute.xlu0 0
        %1002 = vperm.xlu0 %1001, %v807
        %v1003 = vpop.permute.xlu0 %1002
        %v1009 = vunpack.c.l.b16 %v780
        %v1010 = vunpack.c.l.b16 %v781
        %v1011 = vunpack.c.l.b16 %v782
        %v1012 = vunpack.c.l.b16 %v783
        %v1013 = vpack.c.b16 %v1010, %v1009
        %v1014 = vpack.c.b16 %v1012, %v1011
        %v1016 = vsel %vm682, %v1013, 0
        %v1019 = vsel %vm682, %v1014, 0
        %1021 = vmatprep.subr.bf16.mxu0 0
        %1022 = vmatpush1.bf16.msra.mxu0 0
        %1023 = vmatprep.subr.bf16.mxu0 0
        %1024 = vmatpush1.bf16.msra.mxu0 0
        %1025 = vmatprep.subr.bf16.mxu0 0
        %1026 = vmatpush1.bf16.msra.mxu0 0
        %1027 = vmatprep.subr.bf16.mxu0 0
        %1028 = vmatpush1.bf16.msra.mxu0 0
        %1029 = vmatprep.subr.bf16.mxu0 0
        %1030 = vmatpush1.bf16.msra.mxu0 0
        %1031 = vmatprep.subr.bf16.mxu0 0
        %1032 = vmatpush1.bf16.msra.mxu0 0
        %1033 = vmatprep.subr.bf16.mxu0 0
        %1034 = vmatpush1.bf16.msra.mxu0 %v814
        %1035 = vmatprep.subr.bf16.mxu0 0
        %1036 = vmatpush1.bf16.msra.mxu0 %v813
        %1037 = vmatprep.subr.bf16.mxu0 0
        %1038 = vmatpush2.bf16.msra.mxu0 0
        %1039 = vmatprep.subr.bf16.mxu0 0
        %1040 = vmatpush2.bf16.msra.mxu0 0
        %1041 = vmatprep.subr.bf16.mxu0 0
        %1042 = vmatpush2.bf16.msra.mxu0 0
        %1043 = vmatprep.subr.bf16.mxu0 0
        %1044 = vmatpush2.bf16.msra.mxu0 0
        %1045 = vmatprep.subr.bf16.mxu0 0
        %1046 = vmatpush2.bf16.msra.mxu0 0
        %1047 = vmatprep.subr.bf16.mxu0 0
        %1048 = vmatpush2.bf16.msra.mxu0 0
        %1049 = vmatprep.subr.bf16.mxu0 0
        %1050 = vmatpush2.bf16.msra.mxu0 0
        %1051 = vmatprep.subr.bf16.mxu0 0
        %1052 = vmatpush2.bf16.msra.mxu0 0
        %1053 = vmatprep.mubr.bf16.mxu0 0
        %1054 = vmatmul.mubr.bf16.gmra.mxu0 %v1016
        %v1055 = vpop.f32.mrf.mxu0
        %v1056 = vadd.f32 %v988, %v1055
        %v1057 = vpop.f32.mrf.mxu0
        %v1058 = vpop.f32.mrf.mxu0
        %v1059 = vadd.f32 %v993, %v1058
        %v1060 = vpop.f32.mrf.mxu0
        %1061 = vmatprep.mubr.bf16.mxu0 0
        %1062 = vmatmul.mubr.bf16.gmra.mxu0 %v1019
        %v1063 = vpop.f32.mrf.mxu0
        %v1064 = vadd.f32 %v998, %v1063
        %v1065 = vpop.f32.mrf.mxu0
        %v1066 = vpop.f32.mrf.mxu0
        %v1067 = vadd.f32 %v1003, %v1066
        %v1068 = vpop.f32.mrf.mxu0
        %1069 = vdwg.mxu0
        %1070 = vxpose.xlu0.b32.start [1/16] %v971, 128
        %1071 = vxpose.xlu0.b32.cont [2/16] %v974, 128
        %1072 = vxpose.xlu0.b32.cont [3/16] %v979, 128
        %1073 = vxpose.xlu0.b32.cont [4/16] %v982, 128
        %1074 = vxpose.xlu0.b32.cont [5/16] 0.0, 128
        %1075 = vxpose.xlu0.b32.cont [6/16] 0.0, 128
        %1076 = vxpose.xlu0.b32.cont [7/16] 0.0, 128
        %1077 = vxpose.xlu0.b32.cont [8/16] 0.0, 128
        %1078 = vxpose.xlu0.b32.cont [9/16] 0.0, 128
        %1079 = vxpose.xlu0.b32.cont [10/16] 0.0, 128
        %1080 = vxpose.xlu0.b32.cont [11/16] 0.0, 128
        %1081 = vxpose.xlu0.b32.cont [12/16] 0.0, 128
        %1082 = vxpose.xlu0.b32.cont [13/16] 0.0, 128
        %1083 = vxpose.xlu0.b32.cont [14/16] 0.0, 128
        %1084 = vxpose.xlu0.b32.cont [15/16] 0.0, 128
        %1085 = vxpose.xlu0.b32.end [16/16] 0.0, 128
        %v1086 = vpop.trf.xlu0
        %v1087 = vpop.trf.xlu0
        %v1088 = vpop.trf.xlu0
        %v1089 = vpop.trf.xlu0
        %v1090 = vpop.trf.xlu0
        %v1091 = vpop.trf.xlu0
        %v1092 = vpop.trf.xlu0
        %v1093 = vpop.trf.xlu0
        %v1094 = vpop.trf.xlu0
        %v1095 = vpop.trf.xlu0
        %v1096 = vpop.trf.xlu0
        %v1097 = vpop.trf.xlu0
        %v1098 = vpop.trf.xlu0
        %v1099 = vpop.trf.xlu0
        %v1100 = vpop.trf.xlu0
        %v1101 = vpop.trf.xlu0
        %v1102 = vpack.c.bf16 %v1087, %v1086
        %v1103 = vpack.c.bf16 %v1089, %v1088
        %v1104 = vpack.c.bf16 %v1091, %v1090
        %v1105 = vpack.c.bf16 %v1093, %v1092
        %v1106 = vpack.c.bf16 %v886, %v886
        %v1107 = vpack.c.bf16 %v1056, %v1056
        %vm1108 = vcmask 64512
        %v1110 = vsel %vm1108, %v1102, 0
        %v1113 = vsel %vm1108, %v1103, 0
        %v1116 = vsel %vm1108, %v1104, 0
        %v1119 = vsel %vm1108, %v1105, 0
        %vm1121 = vcmask 1043456
        %v1123 = vsel %vm1121, %v1106, 0
        %1125 = vmatprep.subr.bf16.mxu0 0
        %1126 = vmatpush1.bf16.msra.mxu0 0
        %1127 = vmatprep.subr.bf16.mxu0 0
        %1128 = vmatpush1.bf16.msra.mxu0 0
        %1129 = vmatprep.subr.bf16.mxu0 0
        %1130 = vmatpush1.bf16.msra.mxu0 0
        %1131 = vmatprep.subr.bf16.mxu0 0
        %1132 = vmatpush1.bf16.msra.mxu0 0
        %1133 = vmatprep.subr.bf16.mxu0 0
        %1134 = vmatpush1.bf16.msra.mxu0 0
        %1135 = vmatprep.subr.bf16.mxu0 0
        %1136 = vmatpush1.bf16.msra.mxu0 0
        %1137 = vmatprep.subr.bf16.mxu0 0
        %1138 = vmatpush1.bf16.msra.mxu0 0
        %1139 = vmatprep.subr.bf16.mxu0 0
        %1140 = vmatpush1.bf16.msra.mxu0 %v1123
        %1141 = vmatprep.subr.bf16.mxu0 0
        %1142 = vmatpush2.bf16.msra.mxu0 0
        %1143 = vmatprep.subr.bf16.mxu0 0
        %1144 = vmatpush2.bf16.msra.mxu0 0
        %1145 = vmatprep.subr.bf16.mxu0 0
        %1146 = vmatpush2.bf16.msra.mxu0 0
        %1147 = vmatprep.subr.bf16.mxu0 0
        %1148 = vmatpush2.bf16.msra.mxu0 0
        %1149 = vmatprep.subr.bf16.mxu0 0
        %1150 = vmatpush2.bf16.msra.mxu0 0
        %1151 = vmatprep.subr.bf16.mxu0 0
        %1152 = vmatpush2.bf16.msra.mxu0 0
        %1153 = vmatprep.subr.bf16.mxu0 0
        %1154 = vmatpush2.bf16.msra.mxu0 0
        %1155 = vmatprep.subr.bf16.mxu0 0
        %1156 = vmatpush2.bf16.msra.mxu0 0
        %1157 = vmatprep.mubr.bf16.mxu0 0
        %1158 = vmatmul.mubr.bf16.gmra.mxu0 %v1110
        %v1159 = vpop.f32.mrf.mxu0
        %v1160 = vadd.f32 0.0, %v1159
        %v1161 = vpop.f32.mrf.mxu0
        %v1162 = vpop.f32.mrf.mxu0
        %v1163 = vadd.f32 0.0, %v1162
        %v1164 = vpop.f32.mrf.mxu0
        %1165 = vmatprep.mubr.bf16.mxu0 0
        %1166 = vmatmul.mubr.bf16.gmra.mxu0 %v1113
        %v1167 = vpop.f32.mrf.mxu0
        %v1168 = vadd.f32 0.0, %v1167
        %v1169 = vpop.f32.mrf.mxu0
        %v1170 = vpop.f32.mrf.mxu0
        %v1171 = vadd.f32 0.0, %v1170
        %v1172 = vpop.f32.mrf.mxu0
        %1173 = vmatprep.mubr.bf16.mxu0 0
        %1174 = vmatmul.mubr.bf16.gmra.mxu0 %v1116
        %v1175 = vpop.f32.mrf.mxu0
        %v1176 = vadd.f32 0.0, %v1175
        %v1177 = vpop.f32.mrf.mxu0
        %v1178 = vpop.f32.mrf.mxu0
        %v1179 = vadd.f32 0.0, %v1178
        %v1180 = vpop.f32.mrf.mxu0
        %1181 = vmatprep.mubr.bf16.mxu0 0
        %1182 = vmatmul.mubr.bf16.gmra.mxu0 %v1119
        %v1183 = vpop.f32.mrf.mxu0
        %v1184 = vadd.f32 0.0, %v1183
        %v1185 = vpop.f32.mrf.mxu0
        %v1186 = vpop.f32.mrf.mxu0
        %v1187 = vadd.f32 0.0, %v1186
        %v1188 = vpop.f32.mrf.mxu0
        %1189 = vdwg.mxu0
        %v1190 = vsel %vm361, %v1160, -inf
        %v1191 = vsel %vm361, %v1163, -inf
        %v1192 = vsel %vm361, %v1168, -inf
        %v1193 = vsel %vm361, %v1171, -inf
        %v1194 = vsel %vm361, %v1176, -inf
        %v1195 = vmax.f32 %v1190, %v1194
        %v1196 = vsel %vm361, %v1179, -inf
        %v1197 = vmax.f32 %v1191, %v1196
        %v1198 = vsel %vm361, %v1184, -inf
        %v1199 = vmax.f32 %v1192, %v1198
        %v1200 = vsel %vm361, %v1187, -inf
        %v1201 = vmax.f32 %v1193, %v1200
        %v1202 = vmax.f32 %v1195, %v1197
        %v1203 = vmax.f32 %v1199, %v1201
        %v1204 = vmax.f32 %v1202, %v1203
        %v1205 = vrot.slane %v1204, 4
        %v1206 = vmax.f32 %v1204, %v1205
        %v1207 = vrot.slane %v1206, 2
        %v1208 = vmax.f32 %v1206, %v1207
        %v1209 = vrot.slane %v1208, 1
        %v1210 = vmax.f32 %v1208, %v1209
        %v1211 = vsub.f32 %v1160, %v1210
        %v1212 = vsub.f32 %v1163, %v1210
        %v1213 = vsub.f32 %v1168, %v1210
        %v1214 = vsub.f32 %v1171, %v1210
        %v1215 = vsub.f32 %v1176, %v1210
        %v1216 = vsub.f32 %v1179, %v1210
        %v1217 = vsub.f32 %v1184, %v1210
        %v1218 = vsub.f32 %v1187, %v1210
        %v1219 = vmul.f32 %v1211, 1.442695
        %v1220 = vpow.pop %v1219
        %v1221 = vmul.f32 %v1212, 1.442695
        %v1222 = vpow.pop %v1221
        %v1223 = vmul.f32 %v1213, 1.442695
        %v1224 = vpow.pop %v1223
        %v1225 = vmul.f32 %v1214, 1.442695
        %v1226 = vpow.pop %v1225
        %v1227 = vmul.f32 %v1215, 1.442695
        %v1228 = vpow.pop %v1227
        %v1229 = vmul.f32 %v1216, 1.442695
        %v1230 = vpow.pop %v1229
        %v1231 = vmul.f32 %v1217, 1.442695
        %v1232 = vpow.pop %v1231
        %v1233 = vmul.f32 %v1218, 1.442695
        %v1234 = vpow.pop %v1233
        %v1235 = vsel %vm361, %v1220, 0.0
        %v1236 = vsel %vm361, %v1222, 0.0
        %v1237 = vadd.f32 %v1235, %v1236
        %v1238 = vsel %vm361, %v1224, 0.0
        %v1239 = vadd.f32 %v1237, %v1238
        %v1240 = vsel %vm361, %v1226, 0.0
        %v1241 = vadd.f32 %v1239, %v1240
        %v1242 = vsel %vm361, %v1228, 0.0
        %v1243 = vadd.f32 %v1241, %v1242
        %v1244 = vsel %vm361, %v1230, 0.0
        %v1245 = vadd.f32 %v1243, %v1244
        %v1246 = vsel %vm361, %v1232, 0.0
        %v1247 = vadd.f32 %v1245, %v1246
        %v1248 = vsel %vm361, %v1234, 0.0
        %v1249 = vadd.f32 %v1247, %v1248
        %v1250 = vrot.slane %v1249, 4
        %v1251 = vadd.f32 %v1249, %v1250
        %v1252 = vrot.slane %v1251, 2
        %v1253 = vadd.f32 %v1251, %v1252
        %v1254 = vrot.slane %v1253, 1
        %v1255 = vadd.f32 %v1253, %v1254
        %v1256 = vrcp.pop %v1255
        %v1257 = vmul.f32 %v1220, %v1256
        %v1258 = vmul.f32 %v1222, %v1256
        %v1259 = vmul.f32 %v1224, %v1256
        %v1260 = vmul.f32 %v1226, %v1256
        %v1261 = vmul.f32 %v1228, %v1256
        %v1262 = vmul.f32 %v1230, %v1256
        %v1263 = vmul.f32 %v1232, %v1256
        %v1264 = vmul.f32 %v1234, %v1256
        %v1265 = vpack.c.bf16 %v1258, %v1257
        %v1266 = vpack.c.bf16 %v1260, %v1259
        %v1267 = vpack.c.bf16 %v1262, %v1261
        %v1268 = vpack.c.bf16 %v1264, %v1263
        %v1270 = vsel %vm361, %v1107, 0
        %1272 = vmatprep.subr.bf16.mxu0 0
        %1273 = vmatpush1.bf16.msra.mxu0 0
        %1274 = vmatprep.subr.bf16.mxu0 0
        %1275 = vmatpush1.bf16.msra.mxu0 0
        %1276 = vmatprep.subr.bf16.mxu0 0
        %1277 = vmatpush1.bf16.msra.mxu0 0
        %1278 = vmatprep.subr.bf16.mxu0 0
        %1279 = vmatpush1.bf16.msra.mxu0 0
        %1280 = vmatprep.subr.bf16.mxu0 0
        %1281 = vmatpush1.bf16.msra.mxu0 %v1268
        %1282 = vmatprep.subr.bf16.mxu0 0
        %1283 = vmatpush1.bf16.msra.mxu0 %v1267
        %1284 = vmatprep.subr.bf16.mxu0 0
        %1285 = vmatpush1.bf16.msra.mxu0 %v1266
        %1286 = vmatprep.subr.bf16.mxu0 0
        %1287 = vmatpush1.bf16.msra.mxu0 %v1265
        %1288 = vmatprep.subr.bf16.mxu0 0
        %1289 = vmatpush2.bf16.msra.mxu0 0
        %1290 = vmatprep.subr.bf16.mxu0 0
        %1291 = vmatpush2.bf16.msra.mxu0 0
        %1292 = vmatprep.subr.bf16.mxu0 0
        %1293 = vmatpush2.bf16.msra.mxu0 0
        %1294 = vmatprep.subr.bf16.mxu0 0
        %1295 = vmatpush2.bf16.msra.mxu0 0
        %1296 = vmatprep.subr.bf16.mxu0 0
        %1297 = vmatpush2.bf16.msra.mxu0 0
        %1298 = vmatprep.subr.bf16.mxu0 0
        %1299 = vmatpush2.bf16.msra.mxu0 0
        %1300 = vmatprep.subr.bf16.mxu0 0
        %1301 = vmatpush2.bf16.msra.mxu0 0
        %1302 = vmatprep.subr.bf16.mxu0 0
        %1303 = vmatpush2.bf16.msra.mxu0 0
        %1304 = vmatprep.mubr.bf16.mxu0 0
        %1305 = vmatmul.mubr.bf16.gmra.mxu0 %v1270
        %v1306 = vpop.f32.mrf.mxu0
        %v1307 = vadd.f32 0.0, %v1306
        %v1308 = vpop.f32.mrf.mxu0
        %v1309 = vpop.f32.mrf.mxu0
        %v1310 = vpop.f32.mrf.mxu0
        %1311 = vdwg.mxu0
        %v1312 = vpack.c.bf16 %v889, %v889
        %v1313 = vpack.c.bf16 %v1059, %v1059
        %1318 = vrot.lane.b32.xlu0 %v1102, 120
        %v1319 = vpop.permute.xlu0 %1318
        %1320 = vrot.lane.b32.xlu0 %v1103, 120
        %v1321 = vpop.permute.xlu0 %1320
        %1322 = vrot.lane.b32.xlu0 %v1104, 120
        %v1323 = vpop.permute.xlu0 %1322
        %1324 = vrot.lane.b32.xlu0 %v1105, 120
        %v1325 = vpop.permute.xlu0 %1324
        %v1327 = vsel %vm1108, %v1319, 0
        %v1330 = vsel %vm1108, %v1321, 0
        %v1333 = vsel %vm1108, %v1323, 0
        %v1336 = vsel %vm1108, %v1325, 0
        %v1339 = vsel %vm1121, %v1312, 0
        %1341 = vmatprep.subr.bf16.mxu0 0
        %1342 = vmatpush1.bf16.msra.mxu0 0
        %1343 = vmatprep.subr.bf16.mxu0 0
        %1344 = vmatpush1.bf16.msra.mxu0 0
        %1345 = vmatprep.subr.bf16.mxu0 0
        %1346 = vmatpush1.bf16.msra.mxu0 0
        %1347 = vmatprep.subr.bf16.mxu0 0
        %1348 = vmatpush1.bf16.msra.mxu0 0
        %1349 = vmatprep.subr.bf16.mxu0 0
        %1350 = vmatpush1.bf16.msra.mxu0 0
        %1351 = vmatprep.subr.bf16.mxu0 0
        %1352 = vmatpush1.bf16.msra.mxu0 0
        %1353 = vmatprep.subr.bf16.mxu0 0
        %1354 = vmatpush1.bf16.msra.mxu0 0
        %1355 = vmatprep.subr.bf16.mxu0 0
        %1356 = vmatpush1.bf16.msra.mxu0 %v1339
        %1357 = vmatprep.subr.bf16.mxu0 0
        %1358 = vmatpush2.bf16.msra.mxu0 0
        %1359 = vmatprep.subr.bf16.mxu0 0
        %1360 = vmatpush2.bf16.msra.mxu0 0
        %1361 = vmatprep.subr.bf16.mxu0 0
        %1362 = vmatpush2.bf16.msra.mxu0 0
        %1363 = vmatprep.subr.bf16.mxu0 0
        %1364 = vmatpush2.bf16.msra.mxu0 0
        %1365 = vmatprep.subr.bf16.mxu0 0
        %1366 = vmatpush2.bf16.msra.mxu0 0
        %1367 = vmatprep.subr.bf16.mxu0 0
        %1368 = vmatpush2.bf16.msra.mxu0 0
        %1369 = vmatprep.subr.bf16.mxu0 0
        %1370 = vmatpush2.bf16.msra.mxu0 0
        %1371 = vmatprep.subr.bf16.mxu0 0
        %1372 = vmatpush2.bf16.msra.mxu0 0
        %1373 = vmatprep.mubr.bf16.mxu0 0
        %1374 = vmatmul.mubr.bf16.gmra.mxu0 %v1327
        %v1375 = vpop.f32.mrf.mxu0
        %v1376 = vadd.f32 0.0, %v1375
        %v1377 = vpop.f32.mrf.mxu0
        %v1378 = vpop.f32.mrf.mxu0
        %v1379 = vadd.f32 0.0, %v1378
        %v1380 = vpop.f32.mrf.mxu0
        %1381 = vmatprep.mubr.bf16.mxu0 0
        %1382 = vmatmul.mubr.bf16.gmra.mxu0 %v1330
        %v1383 = vpop.f32.mrf.mxu0
        %v1384 = vadd.f32 0.0, %v1383
        %v1385 = vpop.f32.mrf.mxu0
        %v1386 = vpop.f32.mrf.mxu0
        %v1387 = vadd.f32 0.0, %v1386
        %v1388 = vpop.f32.mrf.mxu0
        %1389 = vmatprep.mubr.bf16.mxu0 0
        %1390 = vmatmul.mubr.bf16.gmra.mxu0 %v1333
        %v1391 = vpop.f32.mrf.mxu0
        %v1392 = vadd.f32 0.0, %v1391
        %v1393 = vpop.f32.mrf.mxu0
        %v1394 = vpop.f32.mrf.mxu0
        %v1395 = vadd.f32 0.0, %v1394
        %v1396 = vpop.f32.mrf.mxu0
        %1397 = vmatprep.mubr.bf16.mxu0 0
        %1398 = vmatmul.mubr.bf16.gmra.mxu0 %v1336
        %v1399 = vpop.f32.mrf.mxu0
        %v1400 = vadd.f32 0.0, %v1399
        %v1401 = vpop.f32.mrf.mxu0
        %v1402 = vpop.f32.mrf.mxu0
        %v1403 = vadd.f32 0.0, %v1402
        %v1404 = vpop.f32.mrf.mxu0
        %1405 = vdwg.mxu0
        %v1406 = vsel %vm361, %v1376, -inf
        %v1407 = vsel %vm361, %v1379, -inf
        %v1408 = vsel %vm361, %v1384, -inf
        %v1409 = vsel %vm361, %v1387, -inf
        %v1410 = vsel %vm361, %v1392, -inf
        %v1411 = vmax.f32 %v1406, %v1410
        %v1412 = vsel %vm361, %v1395, -inf
        %v1413 = vmax.f32 %v1407, %v1412
        %v1414 = vsel %vm361, %v1400, -inf
        %v1415 = vmax.f32 %v1408, %v1414
        %v1416 = vsel %vm361, %v1403, -inf
        %v1417 = vmax.f32 %v1409, %v1416
        %v1418 = vmax.f32 %v1411, %v1413
        %v1419 = vmax.f32 %v1415, %v1417
        %v1420 = vmax.f32 %v1418, %v1419
        %v1421 = vrot.slane %v1420, 4
        %v1422 = vmax.f32 %v1420, %v1421
        %v1423 = vrot.slane %v1422, 2
        %v1424 = vmax.f32 %v1422, %v1423
        %v1425 = vrot.slane %v1424, 1
        %v1426 = vmax.f32 %v1424, %v1425
        %v1427 = vsub.f32 %v1376, %v1426
        %v1428 = vsub.f32 %v1379, %v1426
        %v1429 = vsub.f32 %v1384, %v1426
        %v1430 = vsub.f32 %v1387, %v1426
        %v1431 = vsub.f32 %v1392, %v1426
        %v1432 = vsub.f32 %v1395, %v1426
        %v1433 = vsub.f32 %v1400, %v1426
        %v1434 = vsub.f32 %v1403, %v1426
        %v1435 = vmul.f32 %v1427, 1.442695
        %v1436 = vpow.pop %v1435
        %v1437 = vmul.f32 %v1428, 1.442695
        %v1438 = vpow.pop %v1437
        %v1439 = vmul.f32 %v1429, 1.442695
        %v1440 = vpow.pop %v1439
        %v1441 = vmul.f32 %v1430, 1.442695
        %v1442 = vpow.pop %v1441
        %v1443 = vmul.f32 %v1431, 1.442695
        %v1444 = vpow.pop %v1443
        %v1445 = vmul.f32 %v1432, 1.442695
        %v1446 = vpow.pop %v1445
        %v1447 = vmul.f32 %v1433, 1.442695
        %v1448 = vpow.pop %v1447
        %v1449 = vmul.f32 %v1434, 1.442695
        %v1450 = vpow.pop %v1449
        %v1451 = vsel %vm361, %v1436, 0.0
        %v1452 = vsel %vm361, %v1438, 0.0
        %v1453 = vadd.f32 %v1451, %v1452
        %v1454 = vsel %vm361, %v1440, 0.0
        %v1455 = vadd.f32 %v1453, %v1454
        %v1456 = vsel %vm361, %v1442, 0.0
        %v1457 = vadd.f32 %v1455, %v1456
        %v1458 = vsel %vm361, %v1444, 0.0
        %v1459 = vadd.f32 %v1457, %v1458
        %v1460 = vsel %vm361, %v1446, 0.0
        %v1461 = vadd.f32 %v1459, %v1460
        %v1462 = vsel %vm361, %v1448, 0.0
        %v1463 = vadd.f32 %v1461, %v1462
        %v1464 = vsel %vm361, %v1450, 0.0
        %v1465 = vadd.f32 %v1463, %v1464
        %v1466 = vrot.slane %v1465, 4
        %v1467 = vadd.f32 %v1465, %v1466
        %v1468 = vrot.slane %v1467, 2
        %v1469 = vadd.f32 %v1467, %v1468
        %v1470 = vrot.slane %v1469, 1
        %v1471 = vadd.f32 %v1469, %v1470
        %v1472 = vrcp.pop %v1471
        %v1473 = vmul.f32 %v1436, %v1472
        %v1474 = vmul.f32 %v1438, %v1472
        %v1475 = vmul.f32 %v1440, %v1472
        %v1476 = vmul.f32 %v1442, %v1472
        %v1477 = vmul.f32 %v1444, %v1472
        %v1478 = vmul.f32 %v1446, %v1472
        %v1479 = vmul.f32 %v1448, %v1472
        %v1480 = vmul.f32 %v1450, %v1472
        %v1481 = vpack.c.bf16 %v1474, %v1473
        %v1482 = vpack.c.bf16 %v1476, %v1475
        %v1483 = vpack.c.bf16 %v1478, %v1477
        %v1484 = vpack.c.bf16 %v1480, %v1479
        %v1486 = vsel %vm361, %v1313, 0
        %1488 = vmatprep.subr.bf16.mxu0 0
        %1489 = vmatpush1.bf16.msra.mxu0 0
        %1490 = vmatprep.subr.bf16.mxu0 0
        %1491 = vmatpush1.bf16.msra.mxu0 0
        %1492 = vmatprep.subr.bf16.mxu0 0
        %1493 = vmatpush1.bf16.msra.mxu0 0
        %1494 = vmatprep.subr.bf16.mxu0 0
        %1495 = vmatpush1.bf16.msra.mxu0 0
        %1496 = vmatprep.subr.bf16.mxu0 0
        %1497 = vmatpush1.bf16.msra.mxu0 %v1484
        %1498 = vmatprep.subr.bf16.mxu0 0
        %1499 = vmatpush1.bf16.msra.mxu0 %v1483
        %1500 = vmatprep.subr.bf16.mxu0 0
        %1501 = vmatpush1.bf16.msra.mxu0 %v1482
        %1502 = vmatprep.subr.bf16.mxu0 0
        %1503 = vmatpush1.bf16.msra.mxu0 %v1481
        %1504 = vmatprep.subr.bf16.mxu0 0
        %1505 = vmatpush2.bf16.msra.mxu0 0
        %1506 = vmatprep.subr.bf16.mxu0 0
        %1507 = vmatpush2.bf16.msra.mxu0 0
        %1508 = vmatprep.subr.bf16.mxu0 0
        %1509 = vmatpush2.bf16.msra.mxu0 0
        %1510 = vmatprep.subr.bf16.mxu0 0
        %1511 = vmatpush2.bf16.msra.mxu0 0
        %1512 = vmatprep.subr.bf16.mxu0 0
        %1513 = vmatpush2.bf16.msra.mxu0 0
        %1514 = vmatprep.subr.bf16.mxu0 0
        %1515 = vmatpush2.bf16.msra.mxu0 0
        %1516 = vmatprep.subr.bf16.mxu0 0
        %1517 = vmatpush2.bf16.msra.mxu0 0
        %1518 = vmatprep.subr.bf16.mxu0 0
        %1519 = vmatpush2.bf16.msra.mxu0 0
        %1520 = vmatprep.mubr.bf16.mxu0 0
        %1521 = vmatmul.mubr.bf16.gmra.mxu0 %v1486
        %v1522 = vpop.f32.mrf.mxu0
        %v1523 = vadd.f32 0.0, %v1522
        %v1524 = vpop.f32.mrf.mxu0
        %v1525 = vpop.f32.mrf.mxu0
        %v1526 = vpop.f32.mrf.mxu0
        %1527 = vdwg.mxu0
        %v1528 = vpack.c.bf16 %v894, %v894
        %v1529 = vpack.c.bf16 %v1064, %v1064
        %1530 = vrot.lane.b32.xlu0 %v1102, 112
        %v1531 = vpop.permute.xlu0 %1530
        %1532 = vrot.lane.b32.xlu0 %v1103, 112
        %v1533 = vpop.permute.xlu0 %1532
        %1534 = vrot.lane.b32.xlu0 %v1104, 112
        %v1535 = vpop.permute.xlu0 %1534
        %1536 = vrot.lane.b32.xlu0 %v1105, 112
        %v1537 = vpop.permute.xlu0 %1536
        %v1539 = vsel %vm1108, %v1531, 0
        %v1542 = vsel %vm1108, %v1533, 0
        %v1545 = vsel %vm1108, %v1535, 0
        %v1548 = vsel %vm1108, %v1537, 0
        %v1551 = vsel %vm1121, %v1528, 0
        %1553 = vmatprep.subr.bf16.mxu0 0
        %1554 = vmatpush1.bf16.msra.mxu0 0
        %1555 = vmatprep.subr.bf16.mxu0 0
        %1556 = vmatpush1.bf16.msra.mxu0 0
        %1557 = vmatprep.subr.bf16.mxu0 0
        %1558 = vmatpush1.bf16.msra.mxu0 0
        %1559 = vmatprep.subr.bf16.mxu0 0
        %1560 = vmatpush1.bf16.msra.mxu0 0
        %1561 = vmatprep.subr.bf16.mxu0 0
        %1562 = vmatpush1.bf16.msra.mxu0 0
        %1563 = vmatprep.subr.bf16.mxu0 0
        %1564 = vmatpush1.bf16.msra.mxu0 0
        %1565 = vmatprep.subr.bf16.mxu0 0
        %1566 = vmatpush1.bf16.msra.mxu0 0
        %1567 = vmatprep.subr.bf16.mxu0 0
        %1568 = vmatpush1.bf16.msra.mxu0 %v1551
        %1569 = vmatprep.subr.bf16.mxu0 0
        %1570 = vmatpush2.bf16.msra.mxu0 0
        %1571 = vmatprep.subr.bf16.mxu0 0
        %1572 = vmatpush2.bf16.msra.mxu0 0
        %1573 = vmatprep.subr.bf16.mxu0 0
        %1574 = vmatpush2.bf16.msra.mxu0 0
        %1575 = vmatprep.subr.bf16.mxu0 0
        %1576 = vmatpush2.bf16.msra.mxu0 0
        %1577 = vmatprep.subr.bf16.mxu0 0
        %1578 = vmatpush2.bf16.msra.mxu0 0
        %1579 = vmatprep.subr.bf16.mxu0 0
        %1580 = vmatpush2.bf16.msra.mxu0 0
        %1581 = vmatprep.subr.bf16.mxu0 0
        %1582 = vmatpush2.bf16.msra.mxu0 0
        %1583 = vmatprep.subr.bf16.mxu0 0
        %1584 = vmatpush2.bf16.msra.mxu0 0
        %1585 = vmatprep.mubr.bf16.mxu0 0
        %1586 = vmatmul.mubr.bf16.gmra.mxu0 %v1539
        %v1587 = vpop.f32.mrf.mxu0
        %v1588 = vadd.f32 0.0, %v1587
        %v1589 = vpop.f32.mrf.mxu0
        %v1590 = vpop.f32.mrf.mxu0
        %v1591 = vadd.f32 0.0, %v1590
        %v1592 = vpop.f32.mrf.mxu0
        %1593 = vmatprep.mubr.bf16.mxu0 0
        %1594 = vmatmul.mubr.bf16.gmra.mxu0 %v1542
        %v1595 = vpop.f32.mrf.mxu0
        %v1596 = vadd.f32 0.0, %v1595
        %v1597 = vpop.f32.mrf.mxu0
        %v1598 = vpop.f32.mrf.mxu0
        %v1599 = vadd.f32 0.0, %v1598
        %v1600 = vpop.f32.mrf.mxu0
        %1601 = vmatprep.mubr.bf16.mxu0 0
        %1602 = vmatmul.mubr.bf16.gmra.mxu0 %v1545
        %v1603 = vpop.f32.mrf.mxu0
        %v1604 = vadd.f32 0.0, %v1603
        %v1605 = vpop.f32.mrf.mxu0
        %v1606 = vpop.f32.mrf.mxu0
        %v1607 = vadd.f32 0.0, %v1606
        %v1608 = vpop.f32.mrf.mxu0
        %1609 = vmatprep.mubr.bf16.mxu0 0
        %1610 = vmatmul.mubr.bf16.gmra.mxu0 %v1548
        %v1611 = vpop.f32.mrf.mxu0
        %v1612 = vadd.f32 0.0, %v1611
        %v1613 = vpop.f32.mrf.mxu0
        %v1614 = vpop.f32.mrf.mxu0
        %v1615 = vadd.f32 0.0, %v1614
        %v1616 = vpop.f32.mrf.mxu0
        %1617 = vdwg.mxu0
        %v1618 = vsel %vm361, %v1588, -inf
        %v1619 = vsel %vm361, %v1591, -inf
        %v1620 = vsel %vm361, %v1596, -inf
        %v1621 = vsel %vm361, %v1599, -inf
        %v1622 = vsel %vm361, %v1604, -inf
        %v1623 = vmax.f32 %v1618, %v1622
        %v1624 = vsel %vm361, %v1607, -inf
        %v1625 = vmax.f32 %v1619, %v1624
        %v1626 = vsel %vm361, %v1612, -inf
        %v1627 = vmax.f32 %v1620, %v1626
        %v1628 = vsel %vm361, %v1615, -inf
        %v1629 = vmax.f32 %v1621, %v1628
        %v1630 = vmax.f32 %v1623, %v1625
        %v1631 = vmax.f32 %v1627, %v1629
        %v1632 = vmax.f32 %v1630, %v1631
        %v1633 = vrot.slane %v1632, 4
        %v1634 = vmax.f32 %v1632, %v1633
        %v1635 = vrot.slane %v1634, 2
        %v1636 = vmax.f32 %v1634, %v1635
        %v1637 = vrot.slane %v1636, 1
        %v1638 = vmax.f32 %v1636, %v1637
        %v1639 = vsub.f32 %v1588, %v1638
        %v1640 = vsub.f32 %v1591, %v1638
        %v1641 = vsub.f32 %v1596, %v1638
        %v1642 = vsub.f32 %v1599, %v1638
        %v1643 = vsub.f32 %v1604, %v1638
        %v1644 = vsub.f32 %v1607, %v1638
        %v1645 = vsub.f32 %v1612, %v1638
        %v1646 = vsub.f32 %v1615, %v1638
        %v1647 = vmul.f32 %v1639, 1.442695
        %v1648 = vpow.pop %v1647
        %v1649 = vmul.f32 %v1640, 1.442695
        %v1650 = vpow.pop %v1649
        %v1651 = vmul.f32 %v1641, 1.442695
        %v1652 = vpow.pop %v1651
        %v1653 = vmul.f32 %v1642, 1.442695
        %v1654 = vpow.pop %v1653
        %v1655 = vmul.f32 %v1643, 1.442695
        %v1656 = vpow.pop %v1655
        %v1657 = vmul.f32 %v1644, 1.442695
        %v1658 = vpow.pop %v1657
        %v1659 = vmul.f32 %v1645, 1.442695
        %v1660 = vpow.pop %v1659
        %v1661 = vmul.f32 %v1646, 1.442695
        %v1662 = vpow.pop %v1661
        %v1663 = vsel %vm361, %v1648, 0.0
        %v1664 = vsel %vm361, %v1650, 0.0
        %v1665 = vadd.f32 %v1663, %v1664
        %v1666 = vsel %vm361, %v1652, 0.0
        %v1667 = vadd.f32 %v1665, %v1666
        %v1668 = vsel %vm361, %v1654, 0.0
        %v1669 = vadd.f32 %v1667, %v1668
        %v1670 = vsel %vm361, %v1656, 0.0
        %v1671 = vadd.f32 %v1669, %v1670
        %v1672 = vsel %vm361, %v1658, 0.0
        %v1673 = vadd.f32 %v1671, %v1672
        %v1674 = vsel %vm361, %v1660, 0.0
        %v1675 = vadd.f32 %v1673, %v1674
        %v1676 = vsel %vm361, %v1662, 0.0
        %v1677 = vadd.f32 %v1675, %v1676
        %v1678 = vrot.slane %v1677, 4
        %v1679 = vadd.f32 %v1677, %v1678
        %v1680 = vrot.slane %v1679, 2
        %v1681 = vadd.f32 %v1679, %v1680
        %v1682 = vrot.slane %v1681, 1
        %v1683 = vadd.f32 %v1681, %v1682
        %v1684 = vrcp.pop %v1683
        %v1685 = vmul.f32 %v1648, %v1684
        %v1686 = vmul.f32 %v1650, %v1684
        %v1687 = vmul.f32 %v1652, %v1684
        %v1688 = vmul.f32 %v1654, %v1684
        %v1689 = vmul.f32 %v1656, %v1684
        %v1690 = vmul.f32 %v1658, %v1684
        %v1691 = vmul.f32 %v1660, %v1684
        %v1692 = vmul.f32 %v1662, %v1684
        %v1693 = vpack.c.bf16 %v1686, %v1685
        %v1694 = vpack.c.bf16 %v1688, %v1687
        %v1695 = vpack.c.bf16 %v1690, %v1689
        %v1696 = vpack.c.bf16 %v1692, %v1691
        %v1698 = vsel %vm361, %v1529, 0
        %1700 = vmatprep.subr.bf16.mxu0 0
        %1701 = vmatpush1.bf16.msra.mxu0 0
        %1702 = vmatprep.subr.bf16.mxu0 0
        %1703 = vmatpush1.bf16.msra.mxu0 0
        %1704 = vmatprep.subr.bf16.mxu0 0
        %1705 = vmatpush1.bf16.msra.mxu0 0
        %1706 = vmatprep.subr.bf16.mxu0 0
        %1707 = vmatpush1.bf16.msra.mxu0 0
        %1708 = vmatprep.subr.bf16.mxu0 0
        %1709 = vmatpush1.bf16.msra.mxu0 %v1696
        %1710 = vmatprep.subr.bf16.mxu0 0
        %1711 = vmatpush1.bf16.msra.mxu0 %v1695
        %1712 = vmatprep.subr.bf16.mxu0 0
        %1713 = vmatpush1.bf16.msra.mxu0 %v1694
        %1714 = vmatprep.subr.bf16.mxu0 0
        %1715 = vmatpush1.bf16.msra.mxu0 %v1693
        %1716 = vmatprep.subr.bf16.mxu0 0
        %1717 = vmatpush2.bf16.msra.mxu0 0
        %1718 = vmatprep.subr.bf16.mxu0 0
        %1719 = vmatpush2.bf16.msra.mxu0 0
        %1720 = vmatprep.subr.bf16.mxu0 0
        %1721 = vmatpush2.bf16.msra.mxu0 0
        %1722 = vmatprep.subr.bf16.mxu0 0
        %1723 = vmatpush2.bf16.msra.mxu0 0
        %1724 = vmatprep.subr.bf16.mxu0 0
        %1725 = vmatpush2.bf16.msra.mxu0 0
        %1726 = vmatprep.subr.bf16.mxu0 0
        %1727 = vmatpush2.bf16.msra.mxu0 0
        %1728 = vmatprep.subr.bf16.mxu0 0
        %1729 = vmatpush2.bf16.msra.mxu0 0
        %1730 = vmatprep.subr.bf16.mxu0 0
        %1731 = vmatpush2.bf16.msra.mxu0 0
        %1732 = vmatprep.mubr.bf16.mxu0 0
        %1733 = vmatmul.mubr.bf16.gmra.mxu0 %v1698
        %v1734 = vpop.f32.mrf.mxu0
        %v1735 = vadd.f32 0.0, %v1734
        %v1736 = vpop.f32.mrf.mxu0
        %v1737 = vpop.f32.mrf.mxu0
        %v1738 = vpop.f32.mrf.mxu0
        %1739 = vdwg.mxu0
        %v1740 = vpack.c.bf16 %v897, %v897
        %v1741 = vpack.c.bf16 %v1067, %v1067
        %1742 = vrot.lane.b32.xlu0 %v1102, 104
        %v1743 = vpop.permute.xlu0 %1742
        %1744 = vrot.lane.b32.xlu0 %v1103, 104
        %v1745 = vpop.permute.xlu0 %1744
        %1746 = vrot.lane.b32.xlu0 %v1104, 104
        %v1747 = vpop.permute.xlu0 %1746
        %1748 = vrot.lane.b32.xlu0 %v1105, 104
        %v1749 = vpop.permute.xlu0 %1748
        %v1751 = vsel %vm1108, %v1743, 0
        %v1754 = vsel %vm1108, %v1745, 0
        %v1757 = vsel %vm1108, %v1747, 0
        %v1760 = vsel %vm1108, %v1749, 0
        %v1763 = vsel %vm1121, %v1740, 0
        %1765 = vmatprep.subr.bf16.mxu0 0
        %1766 = vmatpush1.bf16.msra.mxu0 0
        %1767 = vmatprep.subr.bf16.mxu0 0
        %1768 = vmatpush1.bf16.msra.mxu0 0
        %1769 = vmatprep.subr.bf16.mxu0 0
        %1770 = vmatpush1.bf16.msra.mxu0 0
        %1771 = vmatprep.subr.bf16.mxu0 0
        %1772 = vmatpush1.bf16.msra.mxu0 0
        %1773 = vmatprep.subr.bf16.mxu0 0
        %1774 = vmatpush1.bf16.msra.mxu0 0
        %1775 = vmatprep.subr.bf16.mxu0 0
        %1776 = vmatpush1.bf16.msra.mxu0 0
        %1777 = vmatprep.subr.bf16.mxu0 0
        %1778 = vmatpush1.bf16.msra.mxu0 0
        %1779 = vmatprep.subr.bf16.mxu0 0
        %1780 = vmatpush1.bf16.msra.mxu0 %v1763
        %1781 = vmatprep.subr.bf16.mxu0 0
        %1782 = vmatpush2.bf16.msra.mxu0 0
        %1783 = vmatprep.subr.bf16.mxu0 0
        %1784 = vmatpush2.bf16.msra.mxu0 0
        %1785 = vmatprep.subr.bf16.mxu0 0
        %1786 = vmatpush2.bf16.msra.mxu0 0
        %1787 = vmatprep.subr.bf16.mxu0 0
        %1788 = vmatpush2.bf16.msra.mxu0 0
        %1789 = vmatprep.subr.bf16.mxu0 0
        %1790 = vmatpush2.bf16.msra.mxu0 0
        %1791 = vmatprep.subr.bf16.mxu0 0
        %1792 = vmatpush2.bf16.msra.mxu0 0
        %1793 = vmatprep.subr.bf16.mxu0 0
        %1794 = vmatpush2.bf16.msra.mxu0 0
        %1795 = vmatprep.subr.bf16.mxu0 0
        %1796 = vmatpush2.bf16.msra.mxu0 0
        %1797 = vmatprep.mubr.bf16.mxu0 0
        %1798 = vmatmul.mubr.bf16.gmra.mxu0 %v1751
        %v1799 = vpop.f32.mrf.mxu0
        %v1800 = vadd.f32 0.0, %v1799
        %v1801 = vpop.f32.mrf.mxu0
        %v1802 = vpop.f32.mrf.mxu0
        %v1803 = vadd.f32 0.0, %v1802
        %v1804 = vpop.f32.mrf.mxu0
        %1805 = vmatprep.mubr.bf16.mxu0 0
        %1806 = vmatmul.mubr.bf16.gmra.mxu0 %v1754
        %v1807 = vpop.f32.mrf.mxu0
        %v1808 = vadd.f32 0.0, %v1807
        %v1809 = vpop.f32.mrf.mxu0
        %v1810 = vpop.f32.mrf.mxu0
        %v1811 = vadd.f32 0.0, %v1810
        %v1812 = vpop.f32.mrf.mxu0
        %1813 = vmatprep.mubr.bf16.mxu0 0
        %1814 = vmatmul.mubr.bf16.gmra.mxu0 %v1757
        %v1815 = vpop.f32.mrf.mxu0
        %v1816 = vadd.f32 0.0, %v1815
        %v1817 = vpop.f32.mrf.mxu0
        %v1818 = vpop.f32.mrf.mxu0
        %v1819 = vadd.f32 0.0, %v1818
        %v1820 = vpop.f32.mrf.mxu0
        %1821 = vmatprep.mubr.bf16.mxu0 0
        %1822 = vmatmul.mubr.bf16.gmra.mxu0 %v1760
        %v1823 = vpop.f32.mrf.mxu0
        %v1824 = vadd.f32 0.0, %v1823
        %v1825 = vpop.f32.mrf.mxu0
        %v1826 = vpop.f32.mrf.mxu0
        %v1827 = vadd.f32 0.0, %v1826
        %v1828 = vpop.f32.mrf.mxu0
        %1829 = vdwg.mxu0
        %v1830 = vsel %vm361, %v1800, -inf
        %v1831 = vsel %vm361, %v1803, -inf
        %v1832 = vsel %vm361, %v1808, -inf
        %v1833 = vsel %vm361, %v1811, -inf
        %v1834 = vsel %vm361, %v1816, -inf
        %v1835 = vmax.f32 %v1830, %v1834
        %v1836 = vsel %vm361, %v1819, -inf
        %v1837 = vmax.f32 %v1831, %v1836
        %v1838 = vsel %vm361, %v1824, -inf
        %v1839 = vmax.f32 %v1832, %v1838
        %v1840 = vsel %vm361, %v1827, -inf
        %v1841 = vmax.f32 %v1833, %v1840
        %v1842 = vmax.f32 %v1835, %v1837
        %v1843 = vmax.f32 %v1839, %v1841
        %v1844 = vmax.f32 %v1842, %v1843
        %v1845 = vrot.slane %v1844, 4
        %v1846 = vmax.f32 %v1844, %v1845
        %v1847 = vrot.slane %v1846, 2
        %v1848 = vmax.f32 %v1846, %v1847
        %v1849 = vrot.slane %v1848, 1
        %v1850 = vmax.f32 %v1848, %v1849
        %v1851 = vsub.f32 %v1800, %v1850
        %v1852 = vsub.f32 %v1803, %v1850
        %v1853 = vsub.f32 %v1808, %v1850
        %v1854 = vsub.f32 %v1811, %v1850
        %v1855 = vsub.f32 %v1816, %v1850
        %v1856 = vsub.f32 %v1819, %v1850
        %v1857 = vsub.f32 %v1824, %v1850
        %v1858 = vsub.f32 %v1827, %v1850
        %v1859 = vmul.f32 %v1851, 1.442695
        %v1860 = vpow.pop %v1859
        %v1861 = vmul.f32 %v1852, 1.442695
        %v1862 = vpow.pop %v1861
        %v1863 = vmul.f32 %v1853, 1.442695
        %v1864 = vpow.pop %v1863
        %v1865 = vmul.f32 %v1854, 1.442695
        %v1866 = vpow.pop %v1865
        %v1867 = vmul.f32 %v1855, 1.442695
        %v1868 = vpow.pop %v1867
        %v1869 = vmul.f32 %v1856, 1.442695
        %v1870 = vpow.pop %v1869
        %v1871 = vmul.f32 %v1857, 1.442695
        %v1872 = vpow.pop %v1871
        %v1873 = vmul.f32 %v1858, 1.442695
        %v1874 = vpow.pop %v1873
        %v1875 = vsel %vm361, %v1860, 0.0
        %v1876 = vsel %vm361, %v1862, 0.0
        %v1877 = vadd.f32 %v1875, %v1876
        %v1878 = vsel %vm361, %v1864, 0.0
        %v1879 = vadd.f32 %v1877, %v1878
        %v1880 = vsel %vm361, %v1866, 0.0
        %v1881 = vadd.f32 %v1879, %v1880
        %v1882 = vsel %vm361, %v1868, 0.0
        %v1883 = vadd.f32 %v1881, %v1882
        %v1884 = vsel %vm361, %v1870, 0.0
        %v1885 = vadd.f32 %v1883, %v1884
        %v1886 = vsel %vm361, %v1872, 0.0
        %v1887 = vadd.f32 %v1885, %v1886
        %v1888 = vsel %vm361, %v1874, 0.0
        %v1889 = vadd.f32 %v1887, %v1888
        %v1890 = vrot.slane %v1889, 4
        %v1891 = vadd.f32 %v1889, %v1890
        %v1892 = vrot.slane %v1891, 2
        %v1893 = vadd.f32 %v1891, %v1892
        %v1894 = vrot.slane %v1893, 1
        %v1895 = vadd.f32 %v1893, %v1894
        %v1896 = vrcp.pop %v1895
        %v1897 = vmul.f32 %v1860, %v1896
        %v1898 = vmul.f32 %v1862, %v1896
        %v1899 = vmul.f32 %v1864, %v1896
        %v1900 = vmul.f32 %v1866, %v1896
        %v1901 = vmul.f32 %v1868, %v1896
        %v1902 = vmul.f32 %v1870, %v1896
        %v1903 = vmul.f32 %v1872, %v1896
        %v1904 = vmul.f32 %v1874, %v1896
        %v1905 = vpack.c.bf16 %v1898, %v1897
        %v1906 = vpack.c.bf16 %v1900, %v1899
        %v1907 = vpack.c.bf16 %v1902, %v1901
        %v1908 = vpack.c.bf16 %v1904, %v1903
        %v1910 = vsel %vm361, %v1741, 0
        %1912 = vmatprep.subr.bf16.mxu0 0
        %1913 = vmatpush1.bf16.msra.mxu0 0
        %1914 = vmatprep.subr.bf16.mxu0 0
        %1915 = vmatpush1.bf16.msra.mxu0 0
        %1916 = vmatprep.subr.bf16.mxu0 0
        %1917 = vmatpush1.bf16.msra.mxu0 0
        %1918 = vmatprep.subr.bf16.mxu0 0
        %1919 = vmatpush1.bf16.msra.mxu0 0
        %1920 = vmatprep.subr.bf16.mxu0 0
        %1921 = vmatpush1.bf16.msra.mxu0 %v1908
        %1922 = vmatprep.subr.bf16.mxu0 0
        %1923 = vmatpush1.bf16.msra.mxu0 %v1907
        %1924 = vmatprep.subr.bf16.mxu0 0
        %1925 = vmatpush1.bf16.msra.mxu0 %v1906
        %1926 = vmatprep.subr.bf16.mxu0 0
        %1927 = vmatpush1.bf16.msra.mxu0 %v1905
        %1928 = vmatprep.subr.bf16.mxu0 0
        %1929 = vmatpush2.bf16.msra.mxu0 0
        %1930 = vmatprep.subr.bf16.mxu0 0
        %1931 = vmatpush2.bf16.msra.mxu0 0
        %1932 = vmatprep.subr.bf16.mxu0 0
        %1933 = vmatpush2.bf16.msra.mxu0 0
        %1934 = vmatprep.subr.bf16.mxu0 0
        %1935 = vmatpush2.bf16.msra.mxu0 0
        %1936 = vmatprep.subr.bf16.mxu0 0
        %1937 = vmatpush2.bf16.msra.mxu0 0
        %1938 = vmatprep.subr.bf16.mxu0 0
        %1939 = vmatpush2.bf16.msra.mxu0 0
        %1940 = vmatprep.subr.bf16.mxu0 0
        %1941 = vmatpush2.bf16.msra.mxu0 0
        %1942 = vmatprep.subr.bf16.mxu0 0
        %1943 = vmatpush2.bf16.msra.mxu0 0
        %1944 = vmatprep.mubr.bf16.mxu0 0
        %1945 = vmatmul.mubr.bf16.gmra.mxu0 %v1910
        %v1946 = vpop.f32.mrf.mxu0
        %v1947 = vadd.f32 0.0, %v1946
        %v1948 = vpop.f32.mrf.mxu0
        %v1949 = vpop.f32.mrf.mxu0
        %v1950 = vpop.f32.mrf.mxu0
        %1951 = vdwg.mxu0
        %v1952 = vpack.c.bf16 %v1523, %v1307
        %v1953 = vpack.c.bf16 %v1947, %v1735
        %1955 = vset.pattern.permute.xlu0 0
        %1956 = vperm.xlu0 %1955, %v809
        %v1957 = vpop.permute.xlu0 %1956
        %1960 = vset.pattern.permute.xlu0 0
        %1961 = vperm.xlu0 %1960, %v810
        %v1962 = vpop.permute.xlu0 %1961
        %1965 = vset.pattern.permute.xlu0 0
        %1966 = vperm.xlu0 %1965, %v811
        %v1967 = vpop.permute.xlu0 %1966
        %1970 = vset.pattern.permute.xlu0 0
        %1971 = vperm.xlu0 %1970, %v812
        %v1972 = vpop.permute.xlu0 %1971
        %v1978 = vunpack.c.l.b16 %v785
        %v1979 = vunpack.c.l.b16 %v786
        %v1980 = vunpack.c.l.b16 %v787
        %v1981 = vunpack.c.l.b16 %v788
        %v1982 = vpack.c.b16 %v1979, %v1978
        %v1983 = vpack.c.b16 %v1981, %v1980
        %v1985 = vsel %vm682, %v1982, 0
        %v1988 = vsel %vm682, %v1983, 0
        %1990 = vmatprep.subr.bf16.mxu0 0
        %1991 = vmatpush1.bf16.msra.mxu0 0
        %1992 = vmatprep.subr.bf16.mxu0 0
        %1993 = vmatpush1.bf16.msra.mxu0 0
        %1994 = vmatprep.subr.bf16.mxu0 0
        %1995 = vmatpush1.bf16.msra.mxu0 0
        %1996 = vmatprep.subr.bf16.mxu0 0
        %1997 = vmatpush1.bf16.msra.mxu0 0
        %1998 = vmatprep.subr.bf16.mxu0 0
        %1999 = vmatpush1.bf16.msra.mxu0 0
        %2000 = vmatprep.subr.bf16.mxu0 0
        %2001 = vmatpush1.bf16.msra.mxu0 0
        %2002 = vmatprep.subr.bf16.mxu0 0
        %2003 = vmatpush1.bf16.msra.mxu0 %v1953
        %2004 = vmatprep.subr.bf16.mxu0 0
        %2005 = vmatpush1.bf16.msra.mxu0 %v1952
        %2006 = vmatprep.subr.bf16.mxu0 0
        %2007 = vmatpush2.bf16.msra.mxu0 0
        %2008 = vmatprep.subr.bf16.mxu0 0
        %2009 = vmatpush2.bf16.msra.mxu0 0
        %2010 = vmatprep.subr.bf16.mxu0 0
        %2011 = vmatpush2.bf16.msra.mxu0 0
        %2012 = vmatprep.subr.bf16.mxu0 0
        %2013 = vmatpush2.bf16.msra.mxu0 0
        %2014 = vmatprep.subr.bf16.mxu0 0
        %2015 = vmatpush2.bf16.msra.mxu0 0
        %2016 = vmatprep.subr.bf16.mxu0 0
        %2017 = vmatpush2.bf16.msra.mxu0 0
        %2018 = vmatprep.subr.bf16.mxu0 0
        %2019 = vmatpush2.bf16.msra.mxu0 0
        %2020 = vmatprep.subr.bf16.mxu0 0
        %2021 = vmatpush2.bf16.msra.mxu0 0
        %2022 = vmatprep.mubr.bf16.mxu0 0
        %2023 = vmatmul.mubr.bf16.gmra.mxu0 %v1985
        %v2024 = vpop.f32.mrf.mxu0
        %v2025 = vadd.f32 %v1957, %v2024
        %v2026 = vpop.f32.mrf.mxu0
        %v2027 = vpop.f32.mrf.mxu0
        %v2028 = vadd.f32 %v1962, %v2027
        %v2029 = vpop.f32.mrf.mxu0
        %2030 = vmatprep.mubr.bf16.mxu0 0
        %2031 = vmatmul.mubr.bf16.gmra.mxu0 %v1988
        %v2032 = vpop.f32.mrf.mxu0
        %v2033 = vadd.f32 %v1967, %v2032
        %v2034 = vpop.f32.mrf.mxu0
        %v2035 = vpop.f32.mrf.mxu0
        %v2036 = vadd.f32 %v1972, %v2035
        %v2037 = vpop.f32.mrf.mxu0
        %2038 = vdwg.mxu0
        %v2039 = vadd.f32 %v2025, %v766
        %v2040 = vadd.f32 %v2028, %v767
        %v2041 = vadd.f32 %v2033, %v768
        %v2042 = vadd.f32 %v2036, %v769
        %v2043 = vpack.c.bf16 %v2040, %v2039
        %v2044 = vpack.c.bf16 %v2042, %v2041
        %v2049 = vunpack.c.l.b16 %v790
        %v2050 = vunpack.c.l.b16 %v791
        %v2051 = vunpack.c.l.b16 %v792
        %v2052 = vunpack.c.l.b16 %v793
        %v2053 = vpack.c.b16 %v2050, %v2049
        %v2054 = vpack.c.b16 %v2052, %v2051
        %v2056 = vsel %vm682, %v2053, 0
        %v2059 = vsel %vm682, %v2054, 0
        %2061 = vmatprep.subr.bf16.mxu0 0
        %2062 = vmatpush1.bf16.msra.mxu0 0
        %2063 = vmatprep.subr.bf16.mxu0 0
        %2064 = vmatpush1.bf16.msra.mxu0 0
        %2065 = vmatprep.subr.bf16.mxu0 0
        %2066 = vmatpush1.bf16.msra.mxu0 0
        %2067 = vmatprep.subr.bf16.mxu0 0
        %2068 = vmatpush1.bf16.msra.mxu0 0
        %2069 = vmatprep.subr.bf16.mxu0 0
        %2070 = vmatpush1.bf16.msra.mxu0 0
        %2071 = vmatprep.subr.bf16.mxu0 0
        %2072 = vmatpush1.bf16.msra.mxu0 0
        %2073 = vmatprep.subr.bf16.mxu0 0
        %2074 = vmatpush1.bf16.msra.mxu0 %v2044
        %2075 = vmatprep.subr.bf16.mxu0 0
        %2076 = vmatpush1.bf16.msra.mxu0 %v2043
        %2077 = vmatprep.subr.bf16.mxu0 0
        %2078 = vmatpush2.bf16.msra.mxu0 0
        %2079 = vmatprep.subr.bf16.mxu0 0
        %2080 = vmatpush2.bf16.msra.mxu0 0
        %2081 = vmatprep.subr.bf16.mxu0 0
        %2082 = vmatpush2.bf16.msra.mxu0 0
        %2083 = vmatprep.subr.bf16.mxu0 0
        %2084 = vmatpush2.bf16.msra.mxu0 0
        %2085 = vmatprep.subr.bf16.mxu0 0
        %2086 = vmatpush2.bf16.msra.mxu0 0
        %2087 = vmatprep.subr.bf16.mxu0 0
        %2088 = vmatpush2.bf16.msra.mxu0 0
        %2089 = vmatprep.subr.bf16.mxu0 0
        %2090 = vmatpush2.bf16.msra.mxu0 0
        %2091 = vmatprep.subr.bf16.mxu0 0
        %2092 = vmatpush2.bf16.msra.mxu0 0
        %2093 = vmatprep.mubr.bf16.mxu0 0
        %2094 = vmatmul.mubr.bf16.gmra.mxu0 %v2056
        %v2095 = vpop.f32.mrf.mxu0
        %v2096 = vadd.f32 %v2039, %v2095
        %v2097 = vpop.f32.mrf.mxu0
        %v2098 = vpop.f32.mrf.mxu0
        %v2099 = vadd.f32 %v2040, %v2098
        %v2100 = vpop.f32.mrf.mxu0
        %2101 = vmatprep.mubr.bf16.mxu0 0
        %2102 = vmatmul.mubr.bf16.gmra.mxu0 %v2059
        %v2103 = vpop.f32.mrf.mxu0
        %v2104 = vadd.f32 %v2041, %v2103
        %v2105 = vpop.f32.mrf.mxu0
        %v2106 = vpop.f32.mrf.mxu0
        %v2107 = vadd.f32 %v2042, %v2106
        %v2108 = vpop.f32.mrf.mxu0
        %2109 = vdwg.mxu0
        %s2110 = scalar_lea.vmem %s6, 80
        %v2111 = vld [vmem:[%s2110] sm:$0xf]
        %v2112 = vld [vmem:[%s2110 + $0x4] sm:$0xf]
        %v2113 = vld [vmem:[%s2110 + $0x8] sm:$0xf]
        %v2114 = vld [vmem:[%s2110 + $0xc] sm:$0xf]
        %s2115 = scalar_lea.vmem %s6, 96
        %v2116 = vld [vmem:[%s2115] sm:$0xf]
        %v2117 = vld [vmem:[%s2115 + $0x4] sm:$0xf]
        %v2118 = vld [vmem:[%s2115 + $0x8] sm:$0xf]
        %v2119 = vld [vmem:[%s2115 + $0xc] sm:$0xf]
        %s2120 = scalar_lea.vmem %s6, 112
        %v2121 = vld [vmem:[%s2120] sm:$0xf]
        %v2122 = vld [vmem:[%s2120 + $0x4] sm:$0xf]
        %v2123 = vld [vmem:[%s2120 + $0x8] sm:$0xf]
        %v2124 = vld [vmem:[%s2120 + $0xc] sm:$0xf]
        %s2125 = scalar_lea.vmem %s6, 128
        %v2126 = vld [vmem:[%s2125] sm:$0xf]
        %v2127 = vld [vmem:[%s2125 + $0x4] sm:$0xf]
        %v2128 = vld [vmem:[%s2125 + $0x8] sm:$0xf]
        %v2129 = vld [vmem:[%s2125 + $0xc] sm:$0xf]
        %s2130 = scalar_lea.vmem %s6, 144
        %v2131 = vld [vmem:[%s2130] sm:$0xf]
        %v2132 = vld [vmem:[%s2130 + $0x4] sm:$0xf]
        %v2133 = vld [vmem:[%s2130 + $0x8] sm:$0xf]
        %v2134 = vld [vmem:[%s2130 + $0xc] sm:$0xf]
        %s2135 = scalar_lea.vmem %s7, 128
        %v2136 = vld [vmem:[%s2135] sm:$0xff]
        %v2137 = vld [vmem:[%s2135 + $0x8] sm:$0xff]
        %v2138 = vld [vmem:[%s2135 + $0x10] sm:$0xff]
        %v2139 = vld [vmem:[%s2135 + $0x18] sm:$0xff]
        %s2140 = scalar_lea.vmem %s7, 160
        %v2141 = vld [vmem:[%s2140] sm:$0xff]
        %v2142 = vld [vmem:[%s2140 + $0x8] sm:$0xff]
        %v2143 = vld [vmem:[%s2140 + $0x10] sm:$0xff]
        %v2144 = vld [vmem:[%s2140 + $0x18] sm:$0xff]
        %s2145 = scalar_lea.vmem %s7, 192
        %v2146 = vld [vmem:[%s2145] sm:$0xff]
        %v2147 = vld [vmem:[%s2145 + $0x8] sm:$0xff]
        %v2148 = vld [vmem:[%s2145 + $0x10] sm:$0xff]
        %v2149 = vld [vmem:[%s2145 + $0x18] sm:$0xff]
        %s2150 = scalar_lea.vmem %s7, 224
        %v2151 = vld [vmem:[%s2150] sm:$0xff]
        %v2152 = vld [vmem:[%s2150 + $0x8] sm:$0xff]
        %v2153 = vld [vmem:[%s2150 + $0x10] sm:$0xff]
        %v2154 = vld [vmem:[%s2150 + $0x18] sm:$0xff]
        %v2155 = vpack.c.bf16 %v2099, %v2096
        %v2156 = vpack.c.bf16 %v2107, %v2104
        %2158 = vset.pattern.permute.xlu0 0
        %2159 = vperm.xlu0 %2158, %v2136
        %v2160 = vpop.permute.xlu0 %2159
        %2163 = vset.pattern.permute.xlu0 0
        %2164 = vperm.xlu0 %2163, %v2137
        %v2165 = vpop.permute.xlu0 %2164
        %2168 = vset.pattern.permute.xlu0 0
        %2169 = vperm.xlu0 %2168, %v2138
        %v2170 = vpop.permute.xlu0 %2169
        %2173 = vset.pattern.permute.xlu0 0
        %2174 = vperm.xlu0 %2173, %v2139
        %v2175 = vpop.permute.xlu0 %2174
        %v2181 = vunpack.c.l.b16 %v2111
        %v2182 = vunpack.c.l.b16 %v2112
        %v2183 = vunpack.c.l.b16 %v2113
        %v2184 = vunpack.c.l.b16 %v2114
        %v2185 = vpack.c.b16 %v2182, %v2181
        %v2186 = vpack.c.b16 %v2184, %v2183
        %v2188 = vsel %vm682, %v2185, 0
        %v2191 = vsel %vm682, %v2186, 0
        %2193 = vmatprep.subr.bf16.mxu0 0
        %2194 = vmatpush1.bf16.msra.mxu0 0
        %2195 = vmatprep.subr.bf16.mxu0 0
        %2196 = vmatpush1.bf16.msra.mxu0 0
        %2197 = vmatprep.subr.bf16.mxu0 0
        %2198 = vmatpush1.bf16.msra.mxu0 0
        %2199 = vmatprep.subr.bf16.mxu0 0
        %2200 = vmatpush1.bf16.msra.mxu0 0
        %2201 = vmatprep.subr.bf16.mxu0 0
        %2202 = vmatpush1.bf16.msra.mxu0 0
        %2203 = vmatprep.subr.bf16.mxu0 0
        %2204 = vmatpush1.bf16.msra.mxu0 0
        %2205 = vmatprep.subr.bf16.mxu0 0
        %2206 = vmatpush1.bf16.msra.mxu0 %v2156
        %2207 = vmatprep.subr.bf16.mxu0 0
        %2208 = vmatpush1.bf16.msra.mxu0 %v2155
        %2209 = vmatprep.subr.bf16.mxu0 0
        %2210 = vmatpush2.bf16.msra.mxu0 0
        %2211 = vmatprep.subr.bf16.mxu0 0
        %2212 = vmatpush2.bf16.msra.mxu0 0
        %2213 = vmatprep.subr.bf16.mxu0 0
        %2214 = vmatpush2.bf16.msra.mxu0 0
        %2215 = vmatprep.subr.bf16.mxu0 0
        %2216 = vmatpush2.bf16.msra.mxu0 0
        %2217 = vmatprep.subr.bf16.mxu0 0
        %2218 = vmatpush2.bf16.msra.mxu0 0
        %2219 = vmatprep.subr.bf16.mxu0 0
        %2220 = vmatpush2.bf16.msra.mxu0 0
        %2221 = vmatprep.subr.bf16.mxu0 0
        %2222 = vmatpush2.bf16.msra.mxu0 0
        %2223 = vmatprep.subr.bf16.mxu0 0
        %2224 = vmatpush2.bf16.msra.mxu0 0
        %2225 = vmatprep.mubr.bf16.mxu0 0
        %2226 = vmatmul.mubr.bf16.gmra.mxu0 %v2188
        %v2227 = vpop.f32.mrf.mxu0
        %v2228 = vadd.f32 %v2160, %v2227
        %v2229 = vpop.f32.mrf.mxu0
        %v2230 = vpop.f32.mrf.mxu0
        %v2231 = vadd.f32 %v2165, %v2230
        %v2232 = vpop.f32.mrf.mxu0
        %2233 = vmatprep.mubr.bf16.mxu0 0
        %2234 = vmatmul.mubr.bf16.gmra.mxu0 %v2191
        %v2235 = vpop.f32.mrf.mxu0
        %v2236 = vadd.f32 %v2170, %v2235
        %v2237 = vpop.f32.mrf.mxu0
        %v2238 = vpop.f32.mrf.mxu0
        %v2239 = vadd.f32 %v2175, %v2238
        %v2240 = vpop.f32.mrf.mxu0
        %2241 = vdwg.mxu0
        %2243 = vset.pattern.permute.xlu0 0
        %2244 = vperm.xlu0 %2243, %v2141
        %v2245 = vpop.permute.xlu0 %2244
        %2248 = vset.pattern.permute.xlu0 0
        %2249 = vperm.xlu0 %2248, %v2142
        %v2250 = vpop.permute.xlu0 %2249
        %2253 = vset.pattern.permute.xlu0 0
        %2254 = vperm.xlu0 %2253, %v2143
        %v2255 = vpop.permute.xlu0 %2254
        %2258 = vset.pattern.permute.xlu0 0
        %2259 = vperm.xlu0 %2258, %v2144
        %v2260 = vpop.permute.xlu0 %2259
        %v2266 = vunpack.c.l.b16 %v2116
        %v2267 = vunpack.c.l.b16 %v2117
        %v2268 = vunpack.c.l.b16 %v2118
        %v2269 = vunpack.c.l.b16 %v2119
        %v2270 = vpack.c.b16 %v2267, %v2266
        %v2271 = vpack.c.b16 %v2269, %v2268
        %v2273 = vsel %vm682, %v2270, 0
        %v2276 = vsel %vm682, %v2271, 0
        %2278 = vmatprep.subr.bf16.mxu0 0
        %2279 = vmatpush1.bf16.msra.mxu0 0
        %2280 = vmatprep.subr.bf16.mxu0 0
        %2281 = vmatpush1.bf16.msra.mxu0 0
        %2282 = vmatprep.subr.bf16.mxu0 0
        %2283 = vmatpush1.bf16.msra.mxu0 0
        %2284 = vmatprep.subr.bf16.mxu0 0
        %2285 = vmatpush1.bf16.msra.mxu0 0
        %2286 = vmatprep.subr.bf16.mxu0 0
        %2287 = vmatpush1.bf16.msra.mxu0 0
        %2288 = vmatprep.subr.bf16.mxu0 0
        %2289 = vmatpush1.bf16.msra.mxu0 0
        %2290 = vmatprep.subr.bf16.mxu0 0
        %2291 = vmatpush1.bf16.msra.mxu0 %v2156
        %2292 = vmatprep.subr.bf16.mxu0 0
        %2293 = vmatpush1.bf16.msra.mxu0 %v2155
        %2294 = vmatprep.subr.bf16.mxu0 0
        %2295 = vmatpush2.bf16.msra.mxu0 0
        %2296 = vmatprep.subr.bf16.mxu0 0
        %2297 = vmatpush2.bf16.msra.mxu0 0
        %2298 = vmatprep.subr.bf16.mxu0 0
        %2299 = vmatpush2.bf16.msra.mxu0 0
        %2300 = vmatprep.subr.bf16.mxu0 0
        %2301 = vmatpush2.bf16.msra.mxu0 0
        %2302 = vmatprep.subr.bf16.mxu0 0
        %2303 = vmatpush2.bf16.msra.mxu0 0
        %2304 = vmatprep.subr.bf16.mxu0 0
        %2305 = vmatpush2.bf16.msra.mxu0 0
        %2306 = vmatprep.subr.bf16.mxu0 0
        %2307 = vmatpush2.bf16.msra.mxu0 0
        %2308 = vmatprep.subr.bf16.mxu0 0
        %2309 = vmatpush2.bf16.msra.mxu0 0
        %2310 = vmatprep.mubr.bf16.mxu0 0
        %2311 = vmatmul.mubr.bf16.gmra.mxu0 %v2273
        %v2312 = vpop.f32.mrf.mxu0
        %v2313 = vadd.f32 %v2245, %v2312
        %v2314 = vpop.f32.mrf.mxu0
        %v2315 = vpop.f32.mrf.mxu0
        %v2316 = vadd.f32 %v2250, %v2315
        %v2317 = vpop.f32.mrf.mxu0
        %2318 = vmatprep.mubr.bf16.mxu0 0
        %2319 = vmatmul.mubr.bf16.gmra.mxu0 %v2276
        %v2320 = vpop.f32.mrf.mxu0
        %v2321 = vadd.f32 %v2255, %v2320
        %v2322 = vpop.f32.mrf.mxu0
        %v2323 = vpop.f32.mrf.mxu0
        %v2324 = vadd.f32 %v2260, %v2323
        %v2325 = vpop.f32.mrf.mxu0
        %2326 = vdwg.mxu0
        %2328 = vset.pattern.permute.xlu0 0
        %2329 = vperm.xlu0 %2328, %v2146
        %v2330 = vpop.permute.xlu0 %2329
        %2333 = vset.pattern.permute.xlu0 0
        %2334 = vperm.xlu0 %2333, %v2147
        %v2335 = vpop.permute.xlu0 %2334
        %2338 = vset.pattern.permute.xlu0 0
        %2339 = vperm.xlu0 %2338, %v2148
        %v2340 = vpop.permute.xlu0 %2339
        %2343 = vset.pattern.permute.xlu0 0
        %2344 = vperm.xlu0 %2343, %v2149
        %v2345 = vpop.permute.xlu0 %2344
        %v2351 = vunpack.c.l.b16 %v2121
        %v2352 = vunpack.c.l.b16 %v2122
        %v2353 = vunpack.c.l.b16 %v2123
        %v2354 = vunpack.c.l.b16 %v2124
        %v2355 = vpack.c.b16 %v2352, %v2351
        %v2356 = vpack.c.b16 %v2354, %v2353
        %v2358 = vsel %vm682, %v2355, 0
        %v2361 = vsel %vm682, %v2356, 0
        %2363 = vmatprep.subr.bf16.mxu0 0
        %2364 = vmatpush1.bf16.msra.mxu0 0
        %2365 = vmatprep.subr.bf16.mxu0 0
        %2366 = vmatpush1.bf16.msra.mxu0 0
        %2367 = vmatprep.subr.bf16.mxu0 0
        %2368 = vmatpush1.bf16.msra.mxu0 0
        %2369 = vmatprep.subr.bf16.mxu0 0
        %2370 = vmatpush1.bf16.msra.mxu0 0
        %2371 = vmatprep.subr.bf16.mxu0 0
        %2372 = vmatpush1.bf16.msra.mxu0 0
        %2373 = vmatprep.subr.bf16.mxu0 0
        %2374 = vmatpush1.bf16.msra.mxu0 0
        %2375 = vmatprep.subr.bf16.mxu0 0
        %2376 = vmatpush1.bf16.msra.mxu0 %v2156
        %2377 = vmatprep.subr.bf16.mxu0 0
        %2378 = vmatpush1.bf16.msra.mxu0 %v2155
        %2379 = vmatprep.subr.bf16.mxu0 0
        %2380 = vmatpush2.bf16.msra.mxu0 0
        %2381 = vmatprep.subr.bf16.mxu0 0
        %2382 = vmatpush2.bf16.msra.mxu0 0
        %2383 = vmatprep.subr.bf16.mxu0 0
        %2384 = vmatpush2.bf16.msra.mxu0 0
        %2385 = vmatprep.subr.bf16.mxu0 0
        %2386 = vmatpush2.bf16.msra.mxu0 0
        %2387 = vmatprep.subr.bf16.mxu0 0
        %2388 = vmatpush2.bf16.msra.mxu0 0
        %2389 = vmatprep.subr.bf16.mxu0 0
        %2390 = vmatpush2.bf16.msra.mxu0 0
        %2391 = vmatprep.subr.bf16.mxu0 0
        %2392 = vmatpush2.bf16.msra.mxu0 0
        %2393 = vmatprep.subr.bf16.mxu0 0
        %2394 = vmatpush2.bf16.msra.mxu0 0
        %2395 = vmatprep.mubr.bf16.mxu0 0
        %2396 = vmatmul.mubr.bf16.gmra.mxu0 %v2358
        %v2397 = vpop.f32.mrf.mxu0
        %v2398 = vadd.f32 %v2330, %v2397
        %v2399 = vpop.f32.mrf.mxu0
        %v2400 = vpop.f32.mrf.mxu0
        %v2401 = vadd.f32 %v2335, %v2400
        %v2402 = vpop.f32.mrf.mxu0
        %2403 = vmatprep.mubr.bf16.mxu0 0
        %2404 = vmatmul.mubr.bf16.gmra.mxu0 %v2361
        %v2405 = vpop.f32.mrf.mxu0
        %v2406 = vadd.f32 %v2340, %v2405
        %v2407 = vpop.f32.mrf.mxu0
        %v2408 = vpop.f32.mrf.mxu0
        %v2409 = vadd.f32 %v2345, %v2408
        %v2410 = vpop.f32.mrf.mxu0
        %2411 = vdwg.mxu0
        %2412 = vxpose.xlu0.b32.start [1/16] %v2313, 128
        %2413 = vxpose.xlu0.b32.cont [2/16] %v2316, 128
        %2414 = vxpose.xlu0.b32.cont [3/16] %v2321, 128
        %2415 = vxpose.xlu0.b32.cont [4/16] %v2324, 128
        %2416 = vxpose.xlu0.b32.cont [5/16] 0.0, 128
        %2417 = vxpose.xlu0.b32.cont [6/16] 0.0, 128
        %2418 = vxpose.xlu0.b32.cont [7/16] 0.0, 128
        %2419 = vxpose.xlu0.b32.cont [8/16] 0.0, 128
        %2420 = vxpose.xlu0.b32.cont [9/16] 0.0, 128
        %2421 = vxpose.xlu0.b32.cont [10/16] 0.0, 128
        %2422 = vxpose.xlu0.b32.cont [11/16] 0.0, 128
        %2423 = vxpose.xlu0.b32.cont [12/16] 0.0, 128
        %2424 = vxpose.xlu0.b32.cont [13/16] 0.0, 128
        %2425 = vxpose.xlu0.b32.cont [14/16] 0.0, 128
        %2426 = vxpose.xlu0.b32.cont [15/16] 0.0, 128
        %2427 = vxpose.xlu0.b32.end [16/16] 0.0, 128
        %v2428 = vpop.trf.xlu0
        %v2429 = vpop.trf.xlu0
        %v2430 = vpop.trf.xlu0
        %v2431 = vpop.trf.xlu0
        %v2432 = vpop.trf.xlu0
        %v2433 = vpop.trf.xlu0
        %v2434 = vpop.trf.xlu0
        %v2435 = vpop.trf.xlu0
        %v2436 = vpop.trf.xlu0
        %v2437 = vpop.trf.xlu0
        %v2438 = vpop.trf.xlu0
        %v2439 = vpop.trf.xlu0
        %v2440 = vpop.trf.xlu0
        %v2441 = vpop.trf.xlu0
        %v2442 = vpop.trf.xlu0
        %v2443 = vpop.trf.xlu0
        %v2444 = vpack.c.bf16 %v2429, %v2428
        %v2445 = vpack.c.bf16 %v2431, %v2430
        %v2446 = vpack.c.bf16 %v2433, %v2432
        %v2447 = vpack.c.bf16 %v2435, %v2434
        %v2448 = vpack.c.bf16 %v2228, %v2228
        %v2449 = vpack.c.bf16 %v2398, %v2398
        %v2451 = vsel %vm1108, %v2444, 0
        %v2454 = vsel %vm1108, %v2445, 0
        %v2457 = vsel %vm1108, %v2446, 0
        %v2460 = vsel %vm1108, %v2447, 0
        %v2463 = vsel %vm1121, %v2448, 0
        %2465 = vmatprep.subr.bf16.mxu0 0
        %2466 = vmatpush1.bf16.msra.mxu0 0
        %2467 = vmatprep.subr.bf16.mxu0 0
        %2468 = vmatpush1.bf16.msra.mxu0 0
        %2469 = vmatprep.subr.bf16.mxu0 0
        %2470 = vmatpush1.bf16.msra.mxu0 0
        %2471 = vmatprep.subr.bf16.mxu0 0
        %2472 = vmatpush1.bf16.msra.mxu0 0
        %2473 = vmatprep.subr.bf16.mxu0 0
        %2474 = vmatpush1.bf16.msra.mxu0 0
        %2475 = vmatprep.subr.bf16.mxu0 0
        %2476 = vmatpush1.bf16.msra.mxu0 0
        %2477 = vmatprep.subr.bf16.mxu0 0
        %2478 = vmatpush1.bf16.msra.mxu0 0
        %2479 = vmatprep.subr.bf16.mxu0 0
        %2480 = vmatpush1.bf16.msra.mxu0 %v2463
        %2481 = vmatprep.subr.bf16.mxu0 0
        %2482 = vmatpush2.bf16.msra.mxu0 0
        %2483 = vmatprep.subr.bf16.mxu0 0
        %2484 = vmatpush2.bf16.msra.mxu0 0
        %2485 = vmatprep.subr.bf16.mxu0 0
        %2486 = vmatpush2.bf16.msra.mxu0 0
        %2487 = vmatprep.subr.bf16.mxu0 0
        %2488 = vmatpush2.bf16.msra.mxu0 0
        %2489 = vmatprep.subr.bf16.mxu0 0
        %2490 = vmatpush2.bf16.msra.mxu0 0
        %2491 = vmatprep.subr.bf16.mxu0 0
        %2492 = vmatpush2.bf16.msra.mxu0 0
        %2493 = vmatprep.subr.bf16.mxu0 0
        %2494 = vmatpush2.bf16.msra.mxu0 0
        %2495 = vmatprep.subr.bf16.mxu0 0
        %2496 = vmatpush2.bf16.msra.mxu0 0
        %2497 = vmatprep.mubr.bf16.mxu0 0
        %2498 = vmatmul.mubr.bf16.gmra.mxu0 %v2451
        %v2499 = vpop.f32.mrf.mxu0
        %v2500 = vadd.f32 0.0, %v2499
        %v2501 = vpop.f32.mrf.mxu0
        %v2502 = vpop.f32.mrf.mxu0
        %v2503 = vadd.f32 0.0, %v2502
        %v2504 = vpop.f32.mrf.mxu0
        %2505 = vmatprep.mubr.bf16.mxu0 0
        %2506 = vmatmul.mubr.bf16.gmra.mxu0 %v2454
        %v2507 = vpop.f32.mrf.mxu0
        %v2508 = vadd.f32 0.0, %v2507
        %v2509 = vpop.f32.mrf.mxu0
        %v2510 = vpop.f32.mrf.mxu0
        %v2511 = vadd.f32 0.0, %v2510
        %v2512 = vpop.f32.mrf.mxu0
        %2513 = vmatprep.mubr.bf16.mxu0 0
        %2514 = vmatmul.mubr.bf16.gmra.mxu0 %v2457
        %v2515 = vpop.f32.mrf.mxu0
        %v2516 = vadd.f32 0.0, %v2515
        %v2517 = vpop.f32.mrf.mxu0
        %v2518 = vpop.f32.mrf.mxu0
        %v2519 = vadd.f32 0.0, %v2518
        %v2520 = vpop.f32.mrf.mxu0
        %2521 = vmatprep.mubr.bf16.mxu0 0
        %2522 = vmatmul.mubr.bf16.gmra.mxu0 %v2460
        %v2523 = vpop.f32.mrf.mxu0
        %v2524 = vadd.f32 0.0, %v2523
        %v2525 = vpop.f32.mrf.mxu0
        %v2526 = vpop.f32.mrf.mxu0
        %v2527 = vadd.f32 0.0, %v2526
        %v2528 = vpop.f32.mrf.mxu0
        %2529 = vdwg.mxu0
        %v2530 = vsel %vm361, %v2500, -inf
        %v2531 = vsel %vm361, %v2503, -inf
        %v2532 = vsel %vm361, %v2508, -inf
        %v2533 = vsel %vm361, %v2511, -inf
        %v2534 = vsel %vm361, %v2516, -inf
        %v2535 = vmax.f32 %v2530, %v2534
        %v2536 = vsel %vm361, %v2519, -inf
        %v2537 = vmax.f32 %v2531, %v2536
        %v2538 = vsel %vm361, %v2524, -inf
        %v2539 = vmax.f32 %v2532, %v2538
        %v2540 = vsel %vm361, %v2527, -inf
        %v2541 = vmax.f32 %v2533, %v2540
        %v2542 = vmax.f32 %v2535, %v2537
        %v2543 = vmax.f32 %v2539, %v2541
        %v2544 = vmax.f32 %v2542, %v2543
        %v2545 = vrot.slane %v2544, 4
        %v2546 = vmax.f32 %v2544, %v2545
        %v2547 = vrot.slane %v2546, 2
        %v2548 = vmax.f32 %v2546, %v2547
        %v2549 = vrot.slane %v2548, 1
        %v2550 = vmax.f32 %v2548, %v2549
        %v2551 = vsub.f32 %v2500, %v2550
        %v2552 = vsub.f32 %v2503, %v2550
        %v2553 = vsub.f32 %v2508, %v2550
        %v2554 = vsub.f32 %v2511, %v2550
        %v2555 = vsub.f32 %v2516, %v2550
        %v2556 = vsub.f32 %v2519, %v2550
        %v2557 = vsub.f32 %v2524, %v2550
        %v2558 = vsub.f32 %v2527, %v2550
        %v2559 = vmul.f32 %v2551, 1.442695
        %v2560 = vpow.pop %v2559
        %v2561 = vmul.f32 %v2552, 1.442695
        %v2562 = vpow.pop %v2561
        %v2563 = vmul.f32 %v2553, 1.442695
        %v2564 = vpow.pop %v2563
        %v2565 = vmul.f32 %v2554, 1.442695
        %v2566 = vpow.pop %v2565
        %v2567 = vmul.f32 %v2555, 1.442695
        %v2568 = vpow.pop %v2567
        %v2569 = vmul.f32 %v2556, 1.442695
        %v2570 = vpow.pop %v2569
        %v2571 = vmul.f32 %v2557, 1.442695
        %v2572 = vpow.pop %v2571
        %v2573 = vmul.f32 %v2558, 1.442695
        %v2574 = vpow.pop %v2573
        %v2575 = vsel %vm361, %v2560, 0.0
        %v2576 = vsel %vm361, %v2562, 0.0
        %v2577 = vadd.f32 %v2575, %v2576
        %v2578 = vsel %vm361, %v2564, 0.0
        %v2579 = vadd.f32 %v2577, %v2578
        %v2580 = vsel %vm361, %v2566, 0.0
        %v2581 = vadd.f32 %v2579, %v2580
        %v2582 = vsel %vm361, %v2568, 0.0
        %v2583 = vadd.f32 %v2581, %v2582
        %v2584 = vsel %vm361, %v2570, 0.0
        %v2585 = vadd.f32 %v2583, %v2584
        %v2586 = vsel %vm361, %v2572, 0.0
        %v2587 = vadd.f32 %v2585, %v2586
        %v2588 = vsel %vm361, %v2574, 0.0
        %v2589 = vadd.f32 %v2587, %v2588
        %v2590 = vrot.slane %v2589, 4
        %v2591 = vadd.f32 %v2589, %v2590
        %v2592 = vrot.slane %v2591, 2
        %v2593 = vadd.f32 %v2591, %v2592
        %v2594 = vrot.slane %v2593, 1
        %v2595 = vadd.f32 %v2593, %v2594
        %v2596 = vrcp.pop %v2595
        %v2597 = vmul.f32 %v2560, %v2596
        %v2598 = vmul.f32 %v2562, %v2596
        %v2599 = vmul.f32 %v2564, %v2596
        %v2600 = vmul.f32 %v2566, %v2596
        %v2601 = vmul.f32 %v2568, %v2596
        %v2602 = vmul.f32 %v2570, %v2596
        %v2603 = vmul.f32 %v2572, %v2596
        %v2604 = vmul.f32 %v2574, %v2596
        %v2605 = vpack.c.bf16 %v2598, %v2597
        %v2606 = vpack.c.bf16 %v2600, %v2599
        %v2607 = vpack.c.bf16 %v2602, %v2601
        %v2608 = vpack.c.bf16 %v2604, %v2603
        %v2610 = vsel %vm361, %v2449, 0
        %2612 = vmatprep.subr.bf16.mxu0 0
        %2613 = vmatpush1.bf16.msra.mxu0 0
        %2614 = vmatprep.subr.bf16.mxu0 0
        %2615 = vmatpush1.bf16.msra.mxu0 0
        %2616 = vmatprep.subr.bf16.mxu0 0
        %2617 = vmatpush1.bf16.msra.mxu0 0
        %2618 = vmatprep.subr.bf16.mxu0 0
        %2619 = vmatpush1.bf16.msra.mxu0 0
        %2620 = vmatprep.subr.bf16.mxu0 0
        %2621 = vmatpush1.bf16.msra.mxu0 %v2608
        %2622 = vmatprep.subr.bf16.mxu0 0
        %2623 = vmatpush1.bf16.msra.mxu0 %v2607
        %2624 = vmatprep.subr.bf16.mxu0 0
        %2625 = vmatpush1.bf16.msra.mxu0 %v2606
        %2626 = vmatprep.subr.bf16.mxu0 0
        %2627 = vmatpush1.bf16.msra.mxu0 %v2605
        %2628 = vmatprep.subr.bf16.mxu0 0
        %2629 = vmatpush2.bf16.msra.mxu0 0
        %2630 = vmatprep.subr.bf16.mxu0 0
        %2631 = vmatpush2.bf16.msra.mxu0 0
        %2632 = vmatprep.subr.bf16.mxu0 0
        %2633 = vmatpush2.bf16.msra.mxu0 0
        %2634 = vmatprep.subr.bf16.mxu0 0
        %2635 = vmatpush2.bf16.msra.mxu0 0
        %2636 = vmatprep.subr.bf16.mxu0 0
        %2637 = vmatpush2.bf16.msra.mxu0 0
        %2638 = vmatprep.subr.bf16.mxu0 0
        %2639 = vmatpush2.bf16.msra.mxu0 0
        %2640 = vmatprep.subr.bf16.mxu0 0
        %2641 = vmatpush2.bf16.msra.mxu0 0
        %2642 = vmatprep.subr.bf16.mxu0 0
        %2643 = vmatpush2.bf16.msra.mxu0 0
        %2644 = vmatprep.mubr.bf16.mxu0 0
        %2645 = vmatmul.mubr.bf16.gmra.mxu0 %v2610
        %v2646 = vpop.f32.mrf.mxu0
        %v2647 = vadd.f32 0.0, %v2646
        %v2648 = vpop.f32.mrf.mxu0
        %v2649 = vpop.f32.mrf.mxu0
        %v2650 = vpop.f32.mrf.mxu0
        %2651 = vdwg.mxu0
        %v2652 = vpack.c.bf16 %v2231, %v2231
        %v2653 = vpack.c.bf16 %v2401, %v2401
        %2658 = vrot.lane.b32.xlu0 %v2444, 120
        %v2659 = vpop.permute.xlu0 %2658
        %2660 = vrot.lane.b32.xlu0 %v2445, 120
        %v2661 = vpop.permute.xlu0 %2660
        %2662 = vrot.lane.b32.xlu0 %v2446, 120
        %v2663 = vpop.permute.xlu0 %2662
        %2664 = vrot.lane.b32.xlu0 %v2447, 120
        %v2665 = vpop.permute.xlu0 %2664
        %v2667 = vsel %vm1108, %v2659, 0
        %v2670 = vsel %vm1108, %v2661, 0
        %v2673 = vsel %vm1108, %v2663, 0
        %v2676 = vsel %vm1108, %v2665, 0
        %v2679 = vsel %vm1121, %v2652, 0
        %2681 = vmatprep.subr.bf16.mxu0 0
        %2682 = vmatpush1.bf16.msra.mxu0 0
        %2683 = vmatprep.subr.bf16.mxu0 0
        %2684 = vmatpush1.bf16.msra.mxu0 0
        %2685 = vmatprep.subr.bf16.mxu0 0
        %2686 = vmatpush1.bf16.msra.mxu0 0
        %2687 = vmatprep.subr.bf16.mxu0 0
        %2688 = vmatpush1.bf16.msra.mxu0 0
        %2689 = vmatprep.subr.bf16.mxu0 0
        %2690 = vmatpush1.bf16.msra.mxu0 0
        %2691 = vmatprep.subr.bf16.mxu0 0
        %2692 = vmatpush1.bf16.msra.mxu0 0
        %2693 = vmatprep.subr.bf16.mxu0 0
        %2694 = vmatpush1.bf16.msra.mxu0 0
        %2695 = vmatprep.subr.bf16.mxu0 0
        %2696 = vmatpush1.bf16.msra.mxu0 %v2679
        %2697 = vmatprep.subr.bf16.mxu0 0
        %2698 = vmatpush2.bf16.msra.mxu0 0
        %2699 = vmatprep.subr.bf16.mxu0 0
        %2700 = vmatpush2.bf16.msra.mxu0 0
        %2701 = vmatprep.subr.bf16.mxu0 0
        %2702 = vmatpush2.bf16.msra.mxu0 0
        %2703 = vmatprep.subr.bf16.mxu0 0
        %2704 = vmatpush2.bf16.msra.mxu0 0
        %2705 = vmatprep.subr.bf16.mxu0 0
        %2706 = vmatpush2.bf16.msra.mxu0 0
        %2707 = vmatprep.subr.bf16.mxu0 0
        %2708 = vmatpush2.bf16.msra.mxu0 0
        %2709 = vmatprep.subr.bf16.mxu0 0
        %2710 = vmatpush2.bf16.msra.mxu0 0
        %2711 = vmatprep.subr.bf16.mxu0 0
        %2712 = vmatpush2.bf16.msra.mxu0 0
        %2713 = vmatprep.mubr.bf16.mxu0 0
        %2714 = vmatmul.mubr.bf16.gmra.mxu0 %v2667
        %v2715 = vpop.f32.mrf.mxu0
        %v2716 = vadd.f32 0.0, %v2715
        %v2717 = vpop.f32.mrf.mxu0
        %v2718 = vpop.f32.mrf.mxu0
        %v2719 = vadd.f32 0.0, %v2718
        %v2720 = vpop.f32.mrf.mxu0
        %2721 = vmatprep.mubr.bf16.mxu0 0
        %2722 = vmatmul.mubr.bf16.gmra.mxu0 %v2670
        %v2723 = vpop.f32.mrf.mxu0
        %v2724 = vadd.f32 0.0, %v2723
        %v2725 = vpop.f32.mrf.mxu0
        %v2726 = vpop.f32.mrf.mxu0
        %v2727 = vadd.f32 0.0, %v2726
        %v2728 = vpop.f32.mrf.mxu0
        %2729 = vmatprep.mubr.bf16.mxu0 0
        %2730 = vmatmul.mubr.bf16.gmra.mxu0 %v2673
        %v2731 = vpop.f32.mrf.mxu0
        %v2732 = vadd.f32 0.0, %v2731
        %v2733 = vpop.f32.mrf.mxu0
        %v2734 = vpop.f32.mrf.mxu0
        %v2735 = vadd.f32 0.0, %v2734
        %v2736 = vpop.f32.mrf.mxu0
        %2737 = vmatprep.mubr.bf16.mxu0 0
        %2738 = vmatmul.mubr.bf16.gmra.mxu0 %v2676
        %v2739 = vpop.f32.mrf.mxu0
        %v2740 = vadd.f32 0.0, %v2739
        %v2741 = vpop.f32.mrf.mxu0
        %v2742 = vpop.f32.mrf.mxu0
        %v2743 = vadd.f32 0.0, %v2742
        %v2744 = vpop.f32.mrf.mxu0
        %2745 = vdwg.mxu0
        %v2746 = vsel %vm361, %v2716, -inf
        %v2747 = vsel %vm361, %v2719, -inf
        %v2748 = vsel %vm361, %v2724, -inf
        %v2749 = vsel %vm361, %v2727, -inf
        %v2750 = vsel %vm361, %v2732, -inf
        %v2751 = vmax.f32 %v2746, %v2750
        %v2752 = vsel %vm361, %v2735, -inf
        %v2753 = vmax.f32 %v2747, %v2752
        %v2754 = vsel %vm361, %v2740, -inf
        %v2755 = vmax.f32 %v2748, %v2754
        %v2756 = vsel %vm361, %v2743, -inf
        %v2757 = vmax.f32 %v2749, %v2756
        %v2758 = vmax.f32 %v2751, %v2753
        %v2759 = vmax.f32 %v2755, %v2757
        %v2760 = vmax.f32 %v2758, %v2759
        %v2761 = vrot.slane %v2760, 4
        %v2762 = vmax.f32 %v2760, %v2761
        %v2763 = vrot.slane %v2762, 2
        %v2764 = vmax.f32 %v2762, %v2763
        %v2765 = vrot.slane %v2764, 1
        %v2766 = vmax.f32 %v2764, %v2765
        %v2767 = vsub.f32 %v2716, %v2766
        %v2768 = vsub.f32 %v2719, %v2766
        %v2769 = vsub.f32 %v2724, %v2766
        %v2770 = vsub.f32 %v2727, %v2766
        %v2771 = vsub.f32 %v2732, %v2766
        %v2772 = vsub.f32 %v2735, %v2766
        %v2773 = vsub.f32 %v2740, %v2766
        %v2774 = vsub.f32 %v2743, %v2766
        %v2775 = vmul.f32 %v2767, 1.442695
        %v2776 = vpow.pop %v2775
        %v2777 = vmul.f32 %v2768, 1.442695
        %v2778 = vpow.pop %v2777
        %v2779 = vmul.f32 %v2769, 1.442695
        %v2780 = vpow.pop %v2779
        %v2781 = vmul.f32 %v2770, 1.442695
        %v2782 = vpow.pop %v2781
        %v2783 = vmul.f32 %v2771, 1.442695
        %v2784 = vpow.pop %v2783
        %v2785 = vmul.f32 %v2772, 1.442695
        %v2786 = vpow.pop %v2785
        %v2787 = vmul.f32 %v2773, 1.442695
        %v2788 = vpow.pop %v2787
        %v2789 = vmul.f32 %v2774, 1.442695
        %v2790 = vpow.pop %v2789
        %v2791 = vsel %vm361, %v2776, 0.0
        %v2792 = vsel %vm361, %v2778, 0.0
        %v2793 = vadd.f32 %v2791, %v2792
        %v2794 = vsel %vm361, %v2780, 0.0
        %v2795 = vadd.f32 %v2793, %v2794
        %v2796 = vsel %vm361, %v2782, 0.0
        %v2797 = vadd.f32 %v2795, %v2796
        %v2798 = vsel %vm361, %v2784, 0.0
        %v2799 = vadd.f32 %v2797, %v2798
        %v2800 = vsel %vm361, %v2786, 0.0
        %v2801 = vadd.f32 %v2799, %v2800
        %v2802 = vsel %vm361, %v2788, 0.0
        %v2803 = vadd.f32 %v2801, %v2802
        %v2804 = vsel %vm361, %v2790, 0.0
        %v2805 = vadd.f32 %v2803, %v2804
        %v2806 = vrot.slane %v2805, 4
        %v2807 = vadd.f32 %v2805, %v2806
        %v2808 = vrot.slane %v2807, 2
        %v2809 = vadd.f32 %v2807, %v2808
        %v2810 = vrot.slane %v2809, 1
        %v2811 = vadd.f32 %v2809, %v2810
        %v2812 = vrcp.pop %v2811
        %v2813 = vmul.f32 %v2776, %v2812
        %v2814 = vmul.f32 %v2778, %v2812
        %v2815 = vmul.f32 %v2780, %v2812
        %v2816 = vmul.f32 %v2782, %v2812
        %v2817 = vmul.f32 %v2784, %v2812
        %v2818 = vmul.f32 %v2786, %v2812
        %v2819 = vmul.f32 %v2788, %v2812
        %v2820 = vmul.f32 %v2790, %v2812
        %v2821 = vpack.c.bf16 %v2814, %v2813
        %v2822 = vpack.c.bf16 %v2816, %v2815
        %v2823 = vpack.c.bf16 %v2818, %v2817
        %v2824 = vpack.c.bf16 %v2820, %v2819
        %v2826 = vsel %vm361, %v2653, 0
        %2828 = vmatprep.subr.bf16.mxu0 0
        %2829 = vmatpush1.bf16.msra.mxu0 0
        %2830 = vmatprep.subr.bf16.mxu0 0
        %2831 = vmatpush1.bf16.msra.mxu0 0
        %2832 = vmatprep.subr.bf16.mxu0 0
        %2833 = vmatpush1.bf16.msra.mxu0 0
        %2834 = vmatprep.subr.bf16.mxu0 0
        %2835 = vmatpush1.bf16.msra.mxu0 0
        %2836 = vmatprep.subr.bf16.mxu0 0
        %2837 = vmatpush1.bf16.msra.mxu0 %v2824
        %2838 = vmatprep.subr.bf16.mxu0 0
        %2839 = vmatpush1.bf16.msra.mxu0 %v2823
        %2840 = vmatprep.subr.bf16.mxu0 0
        %2841 = vmatpush1.bf16.msra.mxu0 %v2822
        %2842 = vmatprep.subr.bf16.mxu0 0
        %2843 = vmatpush1.bf16.msra.mxu0 %v2821
        %2844 = vmatprep.subr.bf16.mxu0 0
        %2845 = vmatpush2.bf16.msra.mxu0 0
        %2846 = vmatprep.subr.bf16.mxu0 0
        %2847 = vmatpush2.bf16.msra.mxu0 0
        %2848 = vmatprep.subr.bf16.mxu0 0
        %2849 = vmatpush2.bf16.msra.mxu0 0
        %2850 = vmatprep.subr.bf16.mxu0 0
        %2851 = vmatpush2.bf16.msra.mxu0 0
        %2852 = vmatprep.subr.bf16.mxu0 0
        %2853 = vmatpush2.bf16.msra.mxu0 0
        %2854 = vmatprep.subr.bf16.mxu0 0
        %2855 = vmatpush2.bf16.msra.mxu0 0
        %2856 = vmatprep.subr.bf16.mxu0 0
        %2857 = vmatpush2.bf16.msra.mxu0 0
        %2858 = vmatprep.subr.bf16.mxu0 0
        %2859 = vmatpush2.bf16.msra.mxu0 0
        %2860 = vmatprep.mubr.bf16.mxu0 0
        %2861 = vmatmul.mubr.bf16.gmra.mxu0 %v2826
        %v2862 = vpop.f32.mrf.mxu0
        %v2863 = vadd.f32 0.0, %v2862
        %v2864 = vpop.f32.mrf.mxu0
        %v2865 = vpop.f32.mrf.mxu0
        %v2866 = vpop.f32.mrf.mxu0
        %2867 = vdwg.mxu0
        %v2868 = vpack.c.bf16 %v2236, %v2236
        %v2869 = vpack.c.bf16 %v2406, %v2406
        %2870 = vrot.lane.b32.xlu0 %v2444, 112
        %v2871 = vpop.permute.xlu0 %2870
        %2872 = vrot.lane.b32.xlu0 %v2445, 112
        %v2873 = vpop.permute.xlu0 %2872
        %2874 = vrot.lane.b32.xlu0 %v2446, 112
        %v2875 = vpop.permute.xlu0 %2874
        %2876 = vrot.lane.b32.xlu0 %v2447, 112
        %v2877 = vpop.permute.xlu0 %2876
        %v2879 = vsel %vm1108, %v2871, 0
        %v2882 = vsel %vm1108, %v2873, 0
        %v2885 = vsel %vm1108, %v2875, 0
        %v2888 = vsel %vm1108, %v2877, 0
        %v2891 = vsel %vm1121, %v2868, 0
        %2893 = vmatprep.subr.bf16.mxu0 0
        %2894 = vmatpush1.bf16.msra.mxu0 0
        %2895 = vmatprep.subr.bf16.mxu0 0
        %2896 = vmatpush1.bf16.msra.mxu0 0
        %2897 = vmatprep.subr.bf16.mxu0 0
        %2898 = vmatpush1.bf16.msra.mxu0 0
        %2899 = vmatprep.subr.bf16.mxu0 0
        %2900 = vmatpush1.bf16.msra.mxu0 0
        %2901 = vmatprep.subr.bf16.mxu0 0
        %2902 = vmatpush1.bf16.msra.mxu0 0
        %2903 = vmatprep.subr.bf16.mxu0 0
        %2904 = vmatpush1.bf16.msra.mxu0 0
        %2905 = vmatprep.subr.bf16.mxu0 0
        %2906 = vmatpush1.bf16.msra.mxu0 0
        %2907 = vmatprep.subr.bf16.mxu0 0
        %2908 = vmatpush1.bf16.msra.mxu0 %v2891
        %2909 = vmatprep.subr.bf16.mxu0 0
        %2910 = vmatpush2.bf16.msra.mxu0 0
        %2911 = vmatprep.subr.bf16.mxu0 0
        %2912 = vmatpush2.bf16.msra.mxu0 0
        %2913 = vmatprep.subr.bf16.mxu0 0
        %2914 = vmatpush2.bf16.msra.mxu0 0
        %2915 = vmatprep.subr.bf16.mxu0 0
        %2916 = vmatpush2.bf16.msra.mxu0 0
        %2917 = vmatprep.subr.bf16.mxu0 0
        %2918 = vmatpush2.bf16.msra.mxu0 0
        %2919 = vmatprep.subr.bf16.mxu0 0
        %2920 = vmatpush2.bf16.msra.mxu0 0
        %2921 = vmatprep.subr.bf16.mxu0 0
        %2922 = vmatpush2.bf16.msra.mxu0 0
        %2923 = vmatprep.subr.bf16.mxu0 0
        %2924 = vmatpush2.bf16.msra.mxu0 0
        %2925 = vmatprep.mubr.bf16.mxu0 0
        %2926 = vmatmul.mubr.bf16.gmra.mxu0 %v2879
        %v2927 = vpop.f32.mrf.mxu0
        %v2928 = vadd.f32 0.0, %v2927
        %v2929 = vpop.f32.mrf.mxu0
        %v2930 = vpop.f32.mrf.mxu0
        %v2931 = vadd.f32 0.0, %v2930
        %v2932 = vpop.f32.mrf.mxu0
        %2933 = vmatprep.mubr.bf16.mxu0 0
        %2934 = vmatmul.mubr.bf16.gmra.mxu0 %v2882
        %v2935 = vpop.f32.mrf.mxu0
        %v2936 = vadd.f32 0.0, %v2935
        %v2937 = vpop.f32.mrf.mxu0
        %v2938 = vpop.f32.mrf.mxu0
        %v2939 = vadd.f32 0.0, %v2938
        %v2940 = vpop.f32.mrf.mxu0
        %2941 = vmatprep.mubr.bf16.mxu0 0
        %2942 = vmatmul.mubr.bf16.gmra.mxu0 %v2885
        %v2943 = vpop.f32.mrf.mxu0
        %v2944 = vadd.f32 0.0, %v2943
        %v2945 = vpop.f32.mrf.mxu0
        %v2946 = vpop.f32.mrf.mxu0
        %v2947 = vadd.f32 0.0, %v2946
        %v2948 = vpop.f32.mrf.mxu0
        %2949 = vmatprep.mubr.bf16.mxu0 0
        %2950 = vmatmul.mubr.bf16.gmra.mxu0 %v2888
        %v2951 = vpop.f32.mrf.mxu0
        %v2952 = vadd.f32 0.0, %v2951
        %v2953 = vpop.f32.mrf.mxu0
        %v2954 = vpop.f32.mrf.mxu0
        %v2955 = vadd.f32 0.0, %v2954
        %v2956 = vpop.f32.mrf.mxu0
        %2957 = vdwg.mxu0
        %v2958 = vsel %vm361, %v2928, -inf
        %v2959 = vsel %vm361, %v2931, -inf
        %v2960 = vsel %vm361, %v2936, -inf
        %v2961 = vsel %vm361, %v2939, -inf
        %v2962 = vsel %vm361, %v2944, -inf
        %v2963 = vmax.f32 %v2958, %v2962
        %v2964 = vsel %vm361, %v2947, -inf
        %v2965 = vmax.f32 %v2959, %v2964
        %v2966 = vsel %vm361, %v2952, -inf
        %v2967 = vmax.f32 %v2960, %v2966
        %v2968 = vsel %vm361, %v2955, -inf
        %v2969 = vmax.f32 %v2961, %v2968
        %v2970 = vmax.f32 %v2963, %v2965
        %v2971 = vmax.f32 %v2967, %v2969
        %v2972 = vmax.f32 %v2970, %v2971
        %v2973 = vrot.slane %v2972, 4
        %v2974 = vmax.f32 %v2972, %v2973
        %v2975 = vrot.slane %v2974, 2
        %v2976 = vmax.f32 %v2974, %v2975
        %v2977 = vrot.slane %v2976, 1
        %v2978 = vmax.f32 %v2976, %v2977
        %v2979 = vsub.f32 %v2928, %v2978
        %v2980 = vsub.f32 %v2931, %v2978
        %v2981 = vsub.f32 %v2936, %v2978
        %v2982 = vsub.f32 %v2939, %v2978
        %v2983 = vsub.f32 %v2944, %v2978
        %v2984 = vsub.f32 %v2947, %v2978
        %v2985 = vsub.f32 %v2952, %v2978
        %v2986 = vsub.f32 %v2955, %v2978
        %v2987 = vmul.f32 %v2979, 1.442695
        %v2988 = vpow.pop %v2987
        %v2989 = vmul.f32 %v2980, 1.442695
        %v2990 = vpow.pop %v2989
        %v2991 = vmul.f32 %v2981, 1.442695
        %v2992 = vpow.pop %v2991
        %v2993 = vmul.f32 %v2982, 1.442695
        %v2994 = vpow.pop %v2993
        %v2995 = vmul.f32 %v2983, 1.442695
        %v2996 = vpow.pop %v2995
        %v2997 = vmul.f32 %v2984, 1.442695
        %v2998 = vpow.pop %v2997
        %v2999 = vmul.f32 %v2985, 1.442695
        %v3000 = vpow.pop %v2999
        %v3001 = vmul.f32 %v2986, 1.442695
        %v3002 = vpow.pop %v3001
        %v3003 = vsel %vm361, %v2988, 0.0
        %v3004 = vsel %vm361, %v2990, 0.0
        %v3005 = vadd.f32 %v3003, %v3004
        %v3006 = vsel %vm361, %v2992, 0.0
        %v3007 = vadd.f32 %v3005, %v3006
        %v3008 = vsel %vm361, %v2994, 0.0
        %v3009 = vadd.f32 %v3007, %v3008
        %v3010 = vsel %vm361, %v2996, 0.0
        %v3011 = vadd.f32 %v3009, %v3010
        %v3012 = vsel %vm361, %v2998, 0.0
        %v3013 = vadd.f32 %v3011, %v3012
        %v3014 = vsel %vm361, %v3000, 0.0
        %v3015 = vadd.f32 %v3013, %v3014
        %v3016 = vsel %vm361, %v3002, 0.0
        %v3017 = vadd.f32 %v3015, %v3016
        %v3018 = vrot.slane %v3017, 4
        %v3019 = vadd.f32 %v3017, %v3018
        %v3020 = vrot.slane %v3019, 2
        %v3021 = vadd.f32 %v3019, %v3020
        %v3022 = vrot.slane %v3021, 1
        %v3023 = vadd.f32 %v3021, %v3022
        %v3024 = vrcp.pop %v3023
        %v3025 = vmul.f32 %v2988, %v3024
        %v3026 = vmul.f32 %v2990, %v3024
        %v3027 = vmul.f32 %v2992, %v3024
        %v3028 = vmul.f32 %v2994, %v3024
        %v3029 = vmul.f32 %v2996, %v3024
        %v3030 = vmul.f32 %v2998, %v3024
        %v3031 = vmul.f32 %v3000, %v3024
        %v3032 = vmul.f32 %v3002, %v3024
        %v3033 = vpack.c.bf16 %v3026, %v3025
        %v3034 = vpack.c.bf16 %v3028, %v3027
        %v3035 = vpack.c.bf16 %v3030, %v3029
        %v3036 = vpack.c.bf16 %v3032, %v3031
        %v3038 = vsel %vm361, %v2869, 0
        %3040 = vmatprep.subr.bf16.mxu0 0
        %3041 = vmatpush1.bf16.msra.mxu0 0
        %3042 = vmatprep.subr.bf16.mxu0 0
        %3043 = vmatpush1.bf16.msra.mxu0 0
        %3044 = vmatprep.subr.bf16.mxu0 0
        %3045 = vmatpush1.bf16.msra.mxu0 0
        %3046 = vmatprep.subr.bf16.mxu0 0
        %3047 = vmatpush1.bf16.msra.mxu0 0
        %3048 = vmatprep.subr.bf16.mxu0 0
        %3049 = vmatpush1.bf16.msra.mxu0 %v3036
        %3050 = vmatprep.subr.bf16.mxu0 0
        %3051 = vmatpush1.bf16.msra.mxu0 %v3035
        %3052 = vmatprep.subr.bf16.mxu0 0
        %3053 = vmatpush1.bf16.msra.mxu0 %v3034
        %3054 = vmatprep.subr.bf16.mxu0 0
        %3055 = vmatpush1.bf16.msra.mxu0 %v3033
        %3056 = vmatprep.subr.bf16.mxu0 0
        %3057 = vmatpush2.bf16.msra.mxu0 0
        %3058 = vmatprep.subr.bf16.mxu0 0
        %3059 = vmatpush2.bf16.msra.mxu0 0
        %3060 = vmatprep.subr.bf16.mxu0 0
        %3061 = vmatpush2.bf16.msra.mxu0 0
        %3062 = vmatprep.subr.bf16.mxu0 0
        %3063 = vmatpush2.bf16.msra.mxu0 0
        %3064 = vmatprep.subr.bf16.mxu0 0
        %3065 = vmatpush2.bf16.msra.mxu0 0
        %3066 = vmatprep.subr.bf16.mxu0 0
        %3067 = vmatpush2.bf16.msra.mxu0 0
        %3068 = vmatprep.subr.bf16.mxu0 0
        %3069 = vmatpush2.bf16.msra.mxu0 0
        %3070 = vmatprep.subr.bf16.mxu0 0
        %3071 = vmatpush2.bf16.msra.mxu0 0
        %3072 = vmatprep.mubr.bf16.mxu0 0
        %3073 = vmatmul.mubr.bf16.gmra.mxu0 %v3038
        %v3074 = vpop.f32.mrf.mxu0
        %v3075 = vadd.f32 0.0, %v3074
        %v3076 = vpop.f32.mrf.mxu0
        %v3077 = vpop.f32.mrf.mxu0
        %v3078 = vpop.f32.mrf.mxu0
        %3079 = vdwg.mxu0
        %v3080 = vpack.c.bf16 %v2239, %v2239
        %v3081 = vpack.c.bf16 %v2409, %v2409
        %3082 = vrot.lane.b32.xlu0 %v2444, 104
        %v3083 = vpop.permute.xlu0 %3082
        %3084 = vrot.lane.b32.xlu0 %v2445, 104
        %v3085 = vpop.permute.xlu0 %3084
        %3086 = vrot.lane.b32.xlu0 %v2446, 104
        %v3087 = vpop.permute.xlu0 %3086
        %3088 = vrot.lane.b32.xlu0 %v2447, 104
        %v3089 = vpop.permute.xlu0 %3088
        %v3091 = vsel %vm1108, %v3083, 0
        %v3094 = vsel %vm1108, %v3085, 0
        %v3097 = vsel %vm1108, %v3087, 0
        %v3100 = vsel %vm1108, %v3089, 0
        %v3103 = vsel %vm1121, %v3080, 0
        %3105 = vmatprep.subr.bf16.mxu0 0
        %3106 = vmatpush1.bf16.msra.mxu0 0
        %3107 = vmatprep.subr.bf16.mxu0 0
        %3108 = vmatpush1.bf16.msra.mxu0 0
        %3109 = vmatprep.subr.bf16.mxu0 0
        %3110 = vmatpush1.bf16.msra.mxu0 0
        %3111 = vmatprep.subr.bf16.mxu0 0
        %3112 = vmatpush1.bf16.msra.mxu0 0
        %3113 = vmatprep.subr.bf16.mxu0 0
        %3114 = vmatpush1.bf16.msra.mxu0 0
        %3115 = vmatprep.subr.bf16.mxu0 0
        %3116 = vmatpush1.bf16.msra.mxu0 0
        %3117 = vmatprep.subr.bf16.mxu0 0
        %3118 = vmatpush1.bf16.msra.mxu0 0
        %3119 = vmatprep.subr.bf16.mxu0 0
        %3120 = vmatpush1.bf16.msra.mxu0 %v3103
        %3121 = vmatprep.subr.bf16.mxu0 0
        %3122 = vmatpush2.bf16.msra.mxu0 0
        %3123 = vmatprep.subr.bf16.mxu0 0
        %3124 = vmatpush2.bf16.msra.mxu0 0
        %3125 = vmatprep.subr.bf16.mxu0 0
        %3126 = vmatpush2.bf16.msra.mxu0 0
        %3127 = vmatprep.subr.bf16.mxu0 0
        %3128 = vmatpush2.bf16.msra.mxu0 0
        %3129 = vmatprep.subr.bf16.mxu0 0
        %3130 = vmatpush2.bf16.msra.mxu0 0
        %3131 = vmatprep.subr.bf16.mxu0 0
        %3132 = vmatpush2.bf16.msra.mxu0 0
        %3133 = vmatprep.subr.bf16.mxu0 0
        %3134 = vmatpush2.bf16.msra.mxu0 0
        %3135 = vmatprep.subr.bf16.mxu0 0
        %3136 = vmatpush2.bf16.msra.mxu0 0
        %3137 = vmatprep.mubr.bf16.mxu0 0
        %3138 = vmatmul.mubr.bf16.gmra.mxu0 %v3091
        %v3139 = vpop.f32.mrf.mxu0
        %v3140 = vadd.f32 0.0, %v3139
        %v3141 = vpop.f32.mrf.mxu0
        %v3142 = vpop.f32.mrf.mxu0
        %v3143 = vadd.f32 0.0, %v3142
        %v3144 = vpop.f32.mrf.mxu0
        %3145 = vmatprep.mubr.bf16.mxu0 0
        %3146 = vmatmul.mubr.bf16.gmra.mxu0 %v3094
        %v3147 = vpop.f32.mrf.mxu0
        %v3148 = vadd.f32 0.0, %v3147
        %v3149 = vpop.f32.mrf.mxu0
        %v3150 = vpop.f32.mrf.mxu0
        %v3151 = vadd.f32 0.0, %v3150
        %v3152 = vpop.f32.mrf.mxu0
        %3153 = vmatprep.mubr.bf16.mxu0 0
        %3154 = vmatmul.mubr.bf16.gmra.mxu0 %v3097
        %v3155 = vpop.f32.mrf.mxu0
        %v3156 = vadd.f32 0.0, %v3155
        %v3157 = vpop.f32.mrf.mxu0
        %v3158 = vpop.f32.mrf.mxu0
        %v3159 = vadd.f32 0.0, %v3158
        %v3160 = vpop.f32.mrf.mxu0
        %3161 = vmatprep.mubr.bf16.mxu0 0
        %3162 = vmatmul.mubr.bf16.gmra.mxu0 %v3100
        %v3163 = vpop.f32.mrf.mxu0
        %v3164 = vadd.f32 0.0, %v3163
        %v3165 = vpop.f32.mrf.mxu0
        %v3166 = vpop.f32.mrf.mxu0
        %v3167 = vadd.f32 0.0, %v3166
        %v3168 = vpop.f32.mrf.mxu0
        %3169 = vdwg.mxu0
        %v3170 = vsel %vm361, %v3140, -inf
        %v3171 = vsel %vm361, %v3143, -inf
        %v3172 = vsel %vm361, %v3148, -inf
        %v3173 = vsel %vm361, %v3151, -inf
        %v3174 = vsel %vm361, %v3156, -inf
        %v3175 = vmax.f32 %v3170, %v3174
        %v3176 = vsel %vm361, %v3159, -inf
        %v3177 = vmax.f32 %v3171, %v3176
        %v3178 = vsel %vm361, %v3164, -inf
        %v3179 = vmax.f32 %v3172, %v3178
        %v3180 = vsel %vm361, %v3167, -inf
        %v3181 = vmax.f32 %v3173, %v3180
        %v3182 = vmax.f32 %v3175, %v3177
        %v3183 = vmax.f32 %v3179, %v3181
        %v3184 = vmax.f32 %v3182, %v3183
        %v3185 = vrot.slane %v3184, 4
        %v3186 = vmax.f32 %v3184, %v3185
        %v3187 = vrot.slane %v3186, 2
        %v3188 = vmax.f32 %v3186, %v3187
        %v3189 = vrot.slane %v3188, 1
        %v3190 = vmax.f32 %v3188, %v3189
        %v3191 = vsub.f32 %v3140, %v3190
        %v3192 = vsub.f32 %v3143, %v3190
        %v3193 = vsub.f32 %v3148, %v3190
        %v3194 = vsub.f32 %v3151, %v3190
        %v3195 = vsub.f32 %v3156, %v3190
        %v3196 = vsub.f32 %v3159, %v3190
        %v3197 = vsub.f32 %v3164, %v3190
        %v3198 = vsub.f32 %v3167, %v3190
        %v3199 = vmul.f32 %v3191, 1.442695
        %v3200 = vpow.pop %v3199
        %v3201 = vmul.f32 %v3192, 1.442695
        %v3202 = vpow.pop %v3201
        %v3203 = vmul.f32 %v3193, 1.442695
        %v3204 = vpow.pop %v3203
        %v3205 = vmul.f32 %v3194, 1.442695
        %v3206 = vpow.pop %v3205
        %v3207 = vmul.f32 %v3195, 1.442695
        %v3208 = vpow.pop %v3207
        %v3209 = vmul.f32 %v3196, 1.442695
        %v3210 = vpow.pop %v3209
        %v3211 = vmul.f32 %v3197, 1.442695
        %v3212 = vpow.pop %v3211
        %v3213 = vmul.f32 %v3198, 1.442695
        %v3214 = vpow.pop %v3213
        %v3215 = vsel %vm361, %v3200, 0.0
        %v3216 = vsel %vm361, %v3202, 0.0
        %v3217 = vadd.f32 %v3215, %v3216
        %v3218 = vsel %vm361, %v3204, 0.0
        %v3219 = vadd.f32 %v3217, %v3218
        %v3220 = vsel %vm361, %v3206, 0.0
        %v3221 = vadd.f32 %v3219, %v3220
        %v3222 = vsel %vm361, %v3208, 0.0
        %v3223 = vadd.f32 %v3221, %v3222
        %v3224 = vsel %vm361, %v3210, 0.0
        %v3225 = vadd.f32 %v3223, %v3224
        %v3226 = vsel %vm361, %v3212, 0.0
        %v3227 = vadd.f32 %v3225, %v3226
        %v3228 = vsel %vm361, %v3214, 0.0
        %v3229 = vadd.f32 %v3227, %v3228
        %v3230 = vrot.slane %v3229, 4
        %v3231 = vadd.f32 %v3229, %v3230
        %v3232 = vrot.slane %v3231, 2
        %v3233 = vadd.f32 %v3231, %v3232
        %v3234 = vrot.slane %v3233, 1
        %v3235 = vadd.f32 %v3233, %v3234
        %v3236 = vrcp.pop %v3235
        %v3237 = vmul.f32 %v3200, %v3236
        %v3238 = vmul.f32 %v3202, %v3236
        %v3239 = vmul.f32 %v3204, %v3236
        %v3240 = vmul.f32 %v3206, %v3236
        %v3241 = vmul.f32 %v3208, %v3236
        %v3242 = vmul.f32 %v3210, %v3236
        %v3243 = vmul.f32 %v3212, %v3236
        %v3244 = vmul.f32 %v3214, %v3236
        %v3245 = vpack.c.bf16 %v3238, %v3237
        %v3246 = vpack.c.bf16 %v3240, %v3239
        %v3247 = vpack.c.bf16 %v3242, %v3241
        %v3248 = vpack.c.bf16 %v3244, %v3243
        %v3250 = vsel %vm361, %v3081, 0
        %3252 = vmatprep.subr.bf16.mxu0 0
        %3253 = vmatpush1.bf16.msra.mxu0 0
        %3254 = vmatprep.subr.bf16.mxu0 0
        %3255 = vmatpush1.bf16.msra.mxu0 0
        %3256 = vmatprep.subr.bf16.mxu0 0
        %3257 = vmatpush1.bf16.msra.mxu0 0
        %3258 = vmatprep.subr.bf16.mxu0 0
        %3259 = vmatpush1.bf16.msra.mxu0 0
        %3260 = vmatprep.subr.bf16.mxu0 0
        %3261 = vmatpush1.bf16.msra.mxu0 %v3248
        %3262 = vmatprep.subr.bf16.mxu0 0
        %3263 = vmatpush1.bf16.msra.mxu0 %v3247
        %3264 = vmatprep.subr.bf16.mxu0 0
        %3265 = vmatpush1.bf16.msra.mxu0 %v3246
        %3266 = vmatprep.subr.bf16.mxu0 0
        %3267 = vmatpush1.bf16.msra.mxu0 %v3245
        %3268 = vmatprep.subr.bf16.mxu0 0
        %3269 = vmatpush2.bf16.msra.mxu0 0
        %3270 = vmatprep.subr.bf16.mxu0 0
        %3271 = vmatpush2.bf16.msra.mxu0 0
        %3272 = vmatprep.subr.bf16.mxu0 0
        %3273 = vmatpush2.bf16.msra.mxu0 0
        %3274 = vmatprep.subr.bf16.mxu0 0
        %3275 = vmatpush2.bf16.msra.mxu0 0
        %3276 = vmatprep.subr.bf16.mxu0 0
        %3277 = vmatpush2.bf16.msra.mxu0 0
        %3278 = vmatprep.subr.bf16.mxu0 0
        %3279 = vmatpush2.bf16.msra.mxu0 0
        %3280 = vmatprep.subr.bf16.mxu0 0
        %3281 = vmatpush2.bf16.msra.mxu0 0
        %3282 = vmatprep.subr.bf16.mxu0 0
        %3283 = vmatpush2.bf16.msra.mxu0 0
        %3284 = vmatprep.mubr.bf16.mxu0 0
        %3285 = vmatmul.mubr.bf16.gmra.mxu0 %v3250
        %v3286 = vpop.f32.mrf.mxu0
        %v3287 = vadd.f32 0.0, %v3286
        %v3288 = vpop.f32.mrf.mxu0
        %v3289 = vpop.f32.mrf.mxu0
        %v3290 = vpop.f32.mrf.mxu0
        %3291 = vdwg.mxu0
        %v3292 = vpack.c.bf16 %v2863, %v2647
        %v3293 = vpack.c.bf16 %v3287, %v3075
        %3295 = vset.pattern.permute.xlu0 0
        %3296 = vperm.xlu0 %3295, %v2151
        %v3297 = vpop.permute.xlu0 %3296
        %3300 = vset.pattern.permute.xlu0 0
        %3301 = vperm.xlu0 %3300, %v2152
        %v3302 = vpop.permute.xlu0 %3301
        %3305 = vset.pattern.permute.xlu0 0
        %3306 = vperm.xlu0 %3305, %v2153
        %v3307 = vpop.permute.xlu0 %3306
        %3310 = vset.pattern.permute.xlu0 0
        %3311 = vperm.xlu0 %3310, %v2154
        %v3312 = vpop.permute.xlu0 %3311
        %v3318 = vunpack.c.l.b16 %v2126
        %v3319 = vunpack.c.l.b16 %v2127
        %v3320 = vunpack.c.l.b16 %v2128
        %v3321 = vunpack.c.l.b16 %v2129
        %v3322 = vpack.c.b16 %v3319, %v3318
        %v3323 = vpack.c.b16 %v3321, %v3320
        %v3325 = vsel %vm682, %v3322, 0
        %v3328 = vsel %vm682, %v3323, 0
        %3330 = vmatprep.subr.bf16.mxu0 0
        %3331 = vmatpush1.bf16.msra.mxu0 0
        %3332 = vmatprep.subr.bf16.mxu0 0
        %3333 = vmatpush1.bf16.msra.mxu0 0
        %3334 = vmatprep.subr.bf16.mxu0 0
        %3335 = vmatpush1.bf16.msra.mxu0 0
        %3336 = vmatprep.subr.bf16.mxu0 0
        %3337 = vmatpush1.bf16.msra.mxu0 0
        %3338 = vmatprep.subr.bf16.mxu0 0
        %3339 = vmatpush1.bf16.msra.mxu0 0
        %3340 = vmatprep.subr.bf16.mxu0 0
        %3341 = vmatpush1.bf16.msra.mxu0 0
        %3342 = vmatprep.subr.bf16.mxu0 0
        %3343 = vmatpush1.bf16.msra.mxu0 %v3293
        %3344 = vmatprep.subr.bf16.mxu0 0
        %3345 = vmatpush1.bf16.msra.mxu0 %v3292
        %3346 = vmatprep.subr.bf16.mxu0 0
        %3347 = vmatpush2.bf16.msra.mxu0 0
        %3348 = vmatprep.subr.bf16.mxu0 0
        %3349 = vmatpush2.bf16.msra.mxu0 0
        %3350 = vmatprep.subr.bf16.mxu0 0
        %3351 = vmatpush2.bf16.msra.mxu0 0
        %3352 = vmatprep.subr.bf16.mxu0 0
        %3353 = vmatpush2.bf16.msra.mxu0 0
        %3354 = vmatprep.subr.bf16.mxu0 0
        %3355 = vmatpush2.bf16.msra.mxu0 0
        %3356 = vmatprep.subr.bf16.mxu0 0
        %3357 = vmatpush2.bf16.msra.mxu0 0
        %3358 = vmatprep.subr.bf16.mxu0 0
        %3359 = vmatpush2.bf16.msra.mxu0 0
        %3360 = vmatprep.subr.bf16.mxu0 0
        %3361 = vmatpush2.bf16.msra.mxu0 0
        %3362 = vmatprep.mubr.bf16.mxu0 0
        %3363 = vmatmul.mubr.bf16.gmra.mxu0 %v3325
        %v3364 = vpop.f32.mrf.mxu0
        %v3365 = vadd.f32 %v3297, %v3364
        %v3366 = vpop.f32.mrf.mxu0
        %v3367 = vpop.f32.mrf.mxu0
        %v3368 = vadd.f32 %v3302, %v3367
        %v3369 = vpop.f32.mrf.mxu0
        %3370 = vmatprep.mubr.bf16.mxu0 0
        %3371 = vmatmul.mubr.bf16.gmra.mxu0 %v3328
        %v3372 = vpop.f32.mrf.mxu0
        %v3373 = vadd.f32 %v3307, %v3372
        %v3374 = vpop.f32.mrf.mxu0
        %v3375 = vpop.f32.mrf.mxu0
        %v3376 = vadd.f32 %v3312, %v3375
        %v3377 = vpop.f32.mrf.mxu0
        %3378 = vdwg.mxu0
        %v3379 = vadd.f32 %v3365, %v2096
        %v3380 = vadd.f32 %v3368, %v2099
        %v3381 = vadd.f32 %v3373, %v2104
        %v3382 = vadd.f32 %v3376, %v2107
        %v3383 = vpack.c.bf16 %v3380, %v3379
        %v3384 = vpack.c.bf16 %v3382, %v3381
        %v3389 = vunpack.c.l.b16 %v2131
        %v3390 = vunpack.c.l.b16 %v2132
        %v3391 = vunpack.c.l.b16 %v2133
        %v3392 = vunpack.c.l.b16 %v2134
        %v3393 = vpack.c.b16 %v3390, %v3389
        %v3394 = vpack.c.b16 %v3392, %v3391
        %v3396 = vsel %vm682, %v3393, 0
        %v3399 = vsel %vm682, %v3394, 0
        %3401 = vmatprep.subr.bf16.mxu0 0
        %3402 = vmatpush1.bf16.msra.mxu0 0
        %3403 = vmatprep.subr.bf16.mxu0 0
        %3404 = vmatpush1.bf16.msra.mxu0 0
        %3405 = vmatprep.subr.bf16.mxu0 0
        %3406 = vmatpush1.bf16.msra.mxu0 0
        %3407 = vmatprep.subr.bf16.mxu0 0
        %3408 = vmatpush1.bf16.msra.mxu0 0
        %3409 = vmatprep.subr.bf16.mxu0 0
        %3410 = vmatpush1.bf16.msra.mxu0 0
        %3411 = vmatprep.subr.bf16.mxu0 0
        %3412 = vmatpush1.bf16.msra.mxu0 0
        %3413 = vmatprep.subr.bf16.mxu0 0
        %3414 = vmatpush1.bf16.msra.mxu0 %v3384
        %3415 = vmatprep.subr.bf16.mxu0 0
        %3416 = vmatpush1.bf16.msra.mxu0 %v3383
        %3417 = vmatprep.subr.bf16.mxu0 0
        %3418 = vmatpush2.bf16.msra.mxu0 0
        %3419 = vmatprep.subr.bf16.mxu0 0
        %3420 = vmatpush2.bf16.msra.mxu0 0
        %3421 = vmatprep.subr.bf16.mxu0 0
        %3422 = vmatpush2.bf16.msra.mxu0 0
        %3423 = vmatprep.subr.bf16.mxu0 0
        %3424 = vmatpush2.bf16.msra.mxu0 0
        %3425 = vmatprep.subr.bf16.mxu0 0
        %3426 = vmatpush2.bf16.msra.mxu0 0
        %3427 = vmatprep.subr.bf16.mxu0 0
        %3428 = vmatpush2.bf16.msra.mxu0 0
        %3429 = vmatprep.subr.bf16.mxu0 0
        %3430 = vmatpush2.bf16.msra.mxu0 0
        %3431 = vmatprep.subr.bf16.mxu0 0
        %3432 = vmatpush2.bf16.msra.mxu0 0
        %3433 = vmatprep.mubr.bf16.mxu0 0
        %3434 = vmatmul.mubr.bf16.gmra.mxu0 %v3396
        %v3435 = vpop.f32.mrf.mxu0
        %v3436 = vadd.f32 %v3379, %v3435
        %v3437 = vpop.f32.mrf.mxu0
        %v3438 = vpop.f32.mrf.mxu0
        %v3439 = vadd.f32 %v3380, %v3438
        %v3440 = vpop.f32.mrf.mxu0
        %3441 = vmatprep.mubr.bf16.mxu0 0
        %3442 = vmatmul.mubr.bf16.gmra.mxu0 %v3399
        %v3443 = vpop.f32.mrf.mxu0
        %v3444 = vadd.f32 %v3381, %v3443
        %v3445 = vpop.f32.mrf.mxu0
        %v3446 = vpop.f32.mrf.mxu0
        %v3447 = vadd.f32 %v3382, %v3446
        %v3448 = vpop.f32.mrf.mxu0
        %3449 = vdwg.mxu0
        %3450 = vst.msk [vmem:[%s283] sm:$0xff] %vm361, %v3436
        %3451 = vst.msk [vmem:[%s283 + $0x8] sm:$0xff] %vm361, %v3439
        %3452 = vst.msk [vmem:[%s283 + $0x10] sm:$0xff] %vm361, %v3444
        %3453 = vst.msk [vmem:[%s283 + $0x18] sm:$0xff] %vm361, %v3447
        %s3454 = sand.u32 %s198, 1
        %s3455 = scalar_lea.sflag [#allocation3], %s3454
        %s3456 = sand.u32 %s198, 1
        %s3457 = smul.addr %s3456, 32
        %s3458 = scalar_lea.vmem [#allocation2], %s3457
        // Predicated region
        $region53: #{tpu_custom_call.1} parent=51 // pred_check
          %p3459 = pneg %p208
        $region54: #{tpu_custom_call.1} parent=51 // pred_check_branch
          %3461 = sbr.rel (%p3459) target = $region56
        $region55: #{tpu_custom_call.1} parent=51 // pred_region
          %s3463 = ssub.s32 512, 512
          %3464 = vsyncadd %s3455, %s3463
          %s3465 = smul.addr %s22, 4
          %s3466 = smul.addr %s3465, 128
          %s3467 = scalar_lea.hbm %s8, %s3466
          %s3468 = sshll.u32 %s3458, 4
          %s3469 = int_to_ptr.vmem [resolvable:$true] %s3468
          %3474 = dma.vmem_to_hbm [thread:$0]  %s3469, 512, %s3467, %s3455, 128, 128, 8
        $region56: #{tpu_custom_call.1} parent=51 // pred_fallthru
          _
      $region52: #{tpu_custom_call.1} parent=5 // pred_fallthru
        _
      %p3475 = scmp.le.s32.totalorder 2, %s17
      // Predicated region
      $region57: #{tpu_custom_call.1} parent=5 // pred_check
        %p3476 = pneg %p3475
      $region58: #{tpu_custom_call.1} parent=5 // pred_check_branch
        %3478 = sbr.rel (%p3476) target = $region60
      $region59: #{tpu_custom_call.1} parent=5 // pred_region
        %s3479 = ssub.s32 %s17, 2
        // Predicated region
        $region61: #{tpu_custom_call.1} parent=59 // pred_check
          %p3480 = pneg %p214
        $region62: #{tpu_custom_call.1} parent=59 // pred_check_branch
          %3482 = sbr.rel (%p3480) target = $region64
        $region63: #{tpu_custom_call.1} parent=59 // pred_region
          %s3483 = sand.u32 %s199, 1
          %s3484 = scalar_lea.sflag [#allocation3], %s3483
          %s3485 = sand.u32 %s199, 1
          %s3486 = smul.addr %s3485, 32
          %s3487 = scalar_lea.vmem [#allocation2], %s3486
          %3488 = dma.done %s3484, 512
        $region64: #{tpu_custom_call.1} parent=59 // pred_fallthru
          _
      $region60: #{tpu_custom_call.1} parent=5 // pred_fallthru
        _
    $region6: #{tpu_custom_call.1} parent=1 // loop_footer
      %s21 = sadd.s32 1, %s17
    $region7: #{tpu_custom_call.1} parent=1 // loop_footer_branch
      %16 = sbr.rel target = $region3
    $region8: #{tpu_custom_call.1} parent=1 // loop_exit
      _
    %3489 = vsyncpa [#allocation3], 1
    %s3490 = scalar_lea.sflag [#allocation3], 1
    %3491 = vsyncpa %s3490, 1

</llo_original>
